<compile_context>
chip_gen: v6e
topology: v6e:2x2x1
jax: 0.10.0
libtpu: 0.0.40
codegen_flags: <defaults>
</compile_context>

<pallas_src>
from functools import partial
import math

import jax
import jax.numpy as jnp
from jax.experimental import pallas as pl
from jax.experimental.pallas import tpu as pltpu


def _round_up(x, m):
    return (x + m - 1) // m * m


def _conv_bn_act_kernel(x_ref, w_ref, b_ref, o_ref, acc_ref, *,
                        k, s, d, toh, ow, act, slope):
    """One (batch, output-row-tile) grid step.

    x_ref  : [Hp, Wp, C1]      padded NHWC image of this batch element (bf16)
    w_ref  : [k, k, C1, C2p]   BN-scale-folded conv weights (bf16)
    b_ref  : [1, C2p]          folded conv-bias + BatchNorm bias (f32)
    o_ref  : [toh*ow, C2p]     lane-dense output tile, rows ordered (oh, ow)
    acc_ref: [toh*ow, C2p]     f32 accumulator scratch
    """
    i = pl.program_id(1)                               # output-row tile index
    row0 = pl.multiple_of(i * (toh * s), toh * s)      # first input row of tile

    acc_ref[...] = jnp.zeros_like(acc_ref)

    # In-kernel im2col: one accumulating MXU dot per kernel tap.  Each input
    # element is fetched from HBM exactly once (block is reused across taps).
    for ki in range(k):
        for kj in range(k):
            if s == 1:
                win = x_ref[pl.ds(row0 + ki * d, toh), pl.ds(kj * d, ow), :]
            else:            # strided taps (not exercised by the demo below)
                win = x_ref[pl.ds(row0 + ki * d, toh, stride=s),
                            pl.ds(kj * d, ow, stride=s), :]
            a = win.reshape(toh * ow, win.shape[-1])           # [toh*ow, C1]
            acc_ref[...] += jnp.dot(a, w_ref[ki, kj],
                                    preferred_element_type=jnp.float32)

    y = acc_ref[...] + b_ref[...]                      # conv bias + BN affine
    if act:
        y = jnp.where(y > 0, y, slope * y)             # LeakyReLU(0.1)
    o_ref[...] = y.astype(o_ref.dtype)


def conv_forward(x, weight, conv_bias, gamma, beta, run_mean, run_var,
                 *, k, s=1, p=0, d=1, g=1, act=True, eps=1e-5, slope=0.1):
    """Conv2d(c1,c2,k,s,p,d,g) + BatchNorm2d(c2) (eval) + LeakyReLU(0.1).

    Takes/returns NCHW to match the PyTorch module's interface.
    """
    assert g == 1  # TODO(synk): grouped convolution (g > 1) not implemented
    N, C1, H, W = x.shape
    C2 = weight.shape[0]

    OH = (H + 2 * p - d * (k - 1) - 1) // s + 1
    OW = (W + 2 * p - d * (k - 1) - 1) // s + 1

    # ---- tile plan ---------------------------------------------------------
    C2p = _round_up(C2, 128)                     # lane-dense output channels
    toh = max(1, min(OH, 512 // max(OW, 1)))     # ~512 GEMM rows per tile
    toh = _round_up(toh, 8 // math.gcd(OW, 8))   # keep toh*OW sublane-aligned
    n_h = -(-OH // toh)
    OHp = n_h * toh                              # padded output-row count

    # ---- host-side layout prep (one pass each; NO im2col) -------------------
    Hp = max(H + 2 * p, (OHp - 1) * s + (k - 1) * d + 1)  # rows incl. pad/halo
    Wp = W + 2 * p
    x_nhwc = jnp.transpose(x, (0, 2, 3, 1))                       # NCHW -> NHWC
    x_pad = jnp.pad(x_nhwc, ((0, 0), (p, Hp - H - p), (p, p), (0, 0)))
    x_pad = x_pad.astype(jnp.bfloat16).reshape(N * Hp, Wp, C1)

    # Fold conv-bias + BatchNorm(eval) into an affine; fold the scale into W.
    scale = gamma / jnp.sqrt(run_var + eps)                       # [C2]
    bias = (conv_bias - run_mean) * scale + beta                  # [C2]
    w_taps = jnp.transpose(weight, (2, 3, 1, 0)) * scale          # [k,k,C1,C2]
    w_taps = jnp.pad(w_taps, ((0, 0), (0, 0), (0, 0), (0, C2p - C2)))
    w_taps = w_taps.astype(jnp.bfloat16)
    bias_p = jnp.pad(bias, (0, C2p - C2)).reshape(1, C2p).astype(jnp.float32)

    # ---- VMEM budget + cost hint --------------------------------------------
    out_isz = jnp.dtype(x.dtype).itemsize
    x_blk = Hp * Wp * C1 * 2
    o_blk = toh * OW * C2p * out_isz
    w_bytes = k * k * C1 * C2p * 2
    acc_bytes = toh * OW * C2p * 4
    vmem_limit = 2 * x_blk + 2 * o_blk + w_bytes + acc_bytes + (2 << 20)
    vmem_limit = int(min(max(vmem_limit, 4 << 20), 64 << 20))
    cost = pl.CostEstimate(
        flops=2 * N * OH * OW * k * k * C1 * C2,
        transcendentals=0,
        bytes_accessed=N * Hp * Wp * C1 * 2 + w_bytes
                       + N * OHp * OW * C2p * out_isz)

    kernel = partial(_conv_bn_act_kernel, k=k, s=s, d=d, toh=toh, ow=OW,
                     act=act, slope=slope)

    out = pl.pallas_call(
        kernel,
        out_shape=jax.ShapeDtypeStruct((N * OHp * OW, C2p), x.dtype),
        grid_spec=pltpu.PrefetchScalarGridSpec(
            num_scalar_prefetch=0,
            grid=(N, n_h),
            in_specs=[
                # Whole padded image of batch element n; the block index does
                # not depend on the h-tile axis, so it is DMA'd once per image.
                pl.BlockSpec((Hp, Wp, C1), lambda n, i: (n, 0, 0)),
                pl.BlockSpec((k, k, C1, C2p), lambda n, i: (0, 0, 0, 0)),
                pl.BlockSpec((1, C2p), lambda n, i: (0, 0)),
            ],
            out_specs=pl.BlockSpec((toh * OW, C2p),
                                   lambda n, i: (n * n_h + i, 0)),
            scratch_shapes=[pltpu.VMEM((toh * OW, C2p), jnp.float32)],
        ),
        compiler_params=pltpu.CompilerParams(
            dimension_semantics=("parallel", "parallel"),
            vmem_limit_bytes=vmem_limit),
        cost_estimate=cost,
    )(x_pad, w_taps, bias_p)

    out = out.reshape(N, OHp, OW, C2p)[:, :OH, :, :C2]
    return jnp.transpose(out, (0, 3, 1, 2))                        # -> NCHW


def _reference(x, weight, conv_bias, gamma, beta, run_mean, run_var,
               *, k, s, p, d, act, eps=1e-5, slope=0.1):
    y = jax.lax.conv_general_dilated(
        x, weight, window_strides=(s, s), padding=[(p, p), (p, p)],
        rhs_dilation=(d, d), dimension_numbers=("NCHW", "OIHW", "NCHW"))
    y = y + conv_bias.reshape(1, -1, 1, 1)
    y = (y - run_mean.reshape(1, -1, 1, 1)) / jnp.sqrt(
        run_var.reshape(1, -1, 1, 1) + eps) * gamma.reshape(1, -1, 1, 1) \
        + beta.reshape(1, -1, 1, 1)
    if act:
        y = jnp.where(y > 0, y, slope * y)
    return y


if __name__ == "__main__":
    # Small shapes consistent with the module: c1=4, c2=8, k=3, s=1, p=1.
    N, C1, H, W = 2, 4, 16, 16
    C2, K, S, P, D = 8, 3, 1, 1, 1

    key = jax.random.PRNGKey(0)
    kx, kw, kb, kg, kbt, km, kv = jax.random.split(key, 7)

    x = jax.random.normal(kx, (N, C1, H, W), dtype=jnp.float32)
    weight = jax.random.normal(kw, (C2, C1, K, K), dtype=jnp.float32) * 0.1
    conv_bias = jax.random.normal(kb, (C2,), dtype=jnp.float32) * 0.1
    gamma = 1.0 + 0.1 * jax.random.normal(kg, (C2,), dtype=jnp.float32)
    beta = 0.1 * jax.random.normal(kbt, (C2,), dtype=jnp.float32)
    run_mean = 0.1 * jax.random.normal(km, (C2,), dtype=jnp.float32)
    run_var = 0.5 + jax.random.uniform(kv, (C2,), dtype=jnp.float32)

    out = conv_forward(x, weight, conv_bias, gamma, beta, run_mean, run_var,
                       k=K, s=S, p=P, d=D, g=1, act=True)
    out = jax.block_until_ready(out)

    ref = _reference(x, weight, conv_bias, gamma, beta, run_mean, run_var,
                     k=K, s=S, p=P, d=D, act=True)

    assert out.shape == (N, C2, H, W), out.shape
    # bf16 MXU operands -> looser tolerance than the f32 version.
    assert jnp.allclose(out, ref, rtol=3e-2, atol=3e-2), \
        float(jnp.max(jnp.abs(out - ref)))
    print("KERNEL_OK")
</pallas_src>

<mosaic_0001>
module attributes {stable_mosaic.version = 11 : i64} {
  func.func @_conv_bn_act_kernel(%arg0: i32, %arg1: i32, %arg2: memref<18x18x4xbf16, #tpu.memory_space<vmem>>, %arg3: memref<3x3x4x128xbf16, #tpu.memory_space<vmem>>, %arg4: memref<1x128xf32, #tpu.memory_space<vmem>>, %arg5: memref<256x128xf32, #tpu.memory_space<vmem>>, %arg6: memref<256x128xf32, #tpu.memory_space<vmem>>) attributes {dimension_semantics = [#tpu.dimension_semantics<parallel>, #tpu.dimension_semantics<parallel>], iteration_bounds = array<i64: 2, 1>, scalar_prefetch = 0 : i64, scratch_operands = 1 : i64, tpu.core_type = #tpu.core_type<tc>, window_params = [{transform_indices = @transform_0, window_bounds = array<i64: 18, 18, 4>}, {pipeline_mode = #tpu.pipeline_mode<synchronous>, transform_indices = @transform_1, window_bounds = array<i64: 3, 3, 4, 128>}, {pipeline_mode = #tpu.pipeline_mode<synchronous>, transform_indices = @transform_2, window_bounds = array<i64: 1, 128>}, {transform_indices = @transform_3, window_bounds = array<i64: 256, 128>}]} {
    %c16_i32 = arith.constant 16 : i32
    %0 = arith.muli %arg1, %c16_i32 : i32
    %1 = tpu.assume_multiple %0, 16 : i32
    %cst = arith.constant 0.000000e+00 : f32
    %2 = vector.broadcast %cst : f32 to vector<256x128xf32>
    %c0 = arith.constant 0 : index
    %c0_0 = arith.constant 0 : index
    %3 = vector.load %arg6[%c0, %c0_0] : memref<256x128xf32, #tpu.memory_space<vmem>>, vector<256x128xf32>
    tpu.vector_store %arg6[%c0, %c0_0], %2 {strides = array<i32>} : memref<256x128xf32, #tpu.memory_space<vmem>>, vector<256x128xf32>,
    %c0_i32 = arith.constant 0 : i32
    %4 = arith.addi %1, %c0_i32 : i32
    %5 = arith.index_cast %4 : i32 to index
    %c0_1 = arith.constant 0 : index
    %c0_2 = arith.constant 0 : index
    %6 = vector.load %arg2[%5, %c0_1, %c0_2] : memref<18x18x4xbf16, #tpu.memory_space<vmem>>, vector<16x16x4xbf16>
    %7 = vector.shape_cast %6 : vector<16x16x4xbf16> to vector<256x4xbf16>
    %c0_3 = arith.constant 0 : index
    %c0_4 = arith.constant 0 : index
    %8 = vector.load %arg6[%c0_3, %c0_4] : memref<256x128xf32, #tpu.memory_space<vmem>>, vector<256x128xf32>
    %c0_5 = arith.constant 0 : index
    %c0_6 = arith.constant 0 : index
    %c0_7 = arith.constant 0 : index
    %c0_8 = arith.constant 0 : index
    %9 = vector.load %arg3[%c0_5, %c0_6, %c0_7, %c0_8] : memref<3x3x4x128xbf16, #tpu.memory_space<vmem>>, vector<1x1x4x128xbf16>
    %10 = vector.shape_cast %9 : vector<1x1x4x128xbf16> to vector<4x128xbf16>
    %cst_9 = arith.constant dense<0.000000e+00> : vector<256x128xf32>
    %11 = tpu.matmul %7, %10, %cst_9 {dimension_numbers = #tpu.dot_dimension_numbers<[1], [0], [0], [1], [0, 0, 1, 1], [], []>} : vector<256x4xbf16>, vector<4x128xbf16>, vector<256x128xf32> -> vector<256x128xf32>
    %12 = arith.addf %8, %11 : vector<256x128xf32>
    %c0_10 = arith.constant 0 : index
    %c0_11 = arith.constant 0 : index
    %13 = vector.load %arg6[%c0_10, %c0_11] : memref<256x128xf32, #tpu.memory_space<vmem>>, vector<256x128xf32>
    tpu.vector_store %arg6[%c0_10, %c0_11], %12 {strides = array<i32>} : memref<256x128xf32, #tpu.memory_space<vmem>>, vector<256x128xf32>,
    %c0_i32_12 = arith.constant 0 : i32
    %14 = arith.addi %1, %c0_i32_12 : i32
    %15 = arith.index_cast %14 : i32 to index
    %c1 = arith.constant 1 : index
    %c0_13 = arith.constant 0 : index
    %16 = vector.load %arg2[%15, %c1, %c0_13] : memref<18x18x4xbf16, #tpu.memory_space<vmem>>, vector<16x16x4xbf16>
    %17 = vector.shape_cast %16 : vector<16x16x4xbf16> to vector<256x4xbf16>
    %c0_14 = arith.constant 0 : index
    %c0_15 = arith.constant 0 : index
    %18 = vector.load %arg6[%c0_14, %c0_15] : memref<256x128xf32, #tpu.memory_space<vmem>>, vector<256x128xf32>
    %c0_16 = arith.constant 0 : index
    %c1_17 = arith.constant 1 : index
    %c0_18 = arith.constant 0 : index
    %c0_19 = arith.constant 0 : index
    %19 = vector.load %arg3[%c0_16, %c1_17, %c0_18, %c0_19] : memref<3x3x4x128xbf16, #tpu.memory_space<vmem>>, vector<1x1x4x128xbf16>
    %20 = vector.shape_cast %19 : vector<1x1x4x128xbf16> to vector<4x128xbf16>
    %cst_20 = arith.constant dense<0.000000e+00> : vector<256x128xf32>
    %21 = tpu.matmul %17, %20, %cst_20 {dimension_numbers = #tpu.dot_dimension_numbers<[1], [0], [0], [1], [0, 0, 1, 1], [], []>} : vector<256x4xbf16>, vector<4x128xbf16>, vector<256x128xf32> -> vector<256x128xf32>
    %22 = arith.addf %18, %21 : vector<256x128xf32>
    %c0_21 = arith.constant 0 : index
    %c0_22 = arith.constant 0 : index
    %23 = vector.load %arg6[%c0_21, %c0_22] : memref<256x128xf32, #tpu.memory_space<vmem>>, vector<256x128xf32>
    tpu.vector_store %arg6[%c0_21, %c0_22], %22 {strides = array<i32>} : memref<256x128xf32, #tpu.memory_space<vmem>>, vector<256x128xf32>,
    %c0_i32_23 = arith.constant 0 : i32
    %24 = arith.addi %1, %c0_i32_23 : i32
    %25 = arith.index_cast %24 : i32 to index
    %c2 = arith.constant 2 : index
    %c0_24 = arith.constant 0 : index
    %26 = vector.load %arg2[%25, %c2, %c0_24] : memref<18x18x4xbf16, #tpu.memory_space<vmem>>, vector<16x16x4xbf16>
    %27 = vector.shape_cast %26 : vector<16x16x4xbf16> to vector<256x4xbf16>
    %c0_25 = arith.constant 0 : index
    %c0_26 = arith.constant 0 : index
    %28 = vector.load %arg6[%c0_25, %c0_26] : memref<256x128xf32, #tpu.memory_space<vmem>>, vector<256x128xf32>
    %c0_27 = arith.constant 0 : index
    %c2_28 = arith.constant 2 : index
    %c0_29 = arith.constant 0 : index
    %c0_30 = arith.constant 0 : index
    %29 = vector.load %arg3[%c0_27, %c2_28, %c0_29, %c0_30] : memref<3x3x4x128xbf16, #tpu.memory_space<vmem>>, vector<1x1x4x128xbf16>
    %30 = vector.shape_cast %29 : vector<1x1x4x128xbf16> to vector<4x128xbf16>
    %cst_31 = arith.constant dense<0.000000e+00> : vector<256x128xf32>
    %31 = tpu.matmul %27, %30, %cst_31 {dimension_numbers = #tpu.dot_dimension_numbers<[1], [0], [0], [1], [0, 0, 1, 1], [], []>} : vector<256x4xbf16>, vector<4x128xbf16>, vector<256x128xf32> -> vector<256x128xf32>
    %32 = arith.addf %28, %31 : vector<256x128xf32>
    %c0_32 = arith.constant 0 : index
    %c0_33 = arith.constant 0 : index
    %33 = vector.load %arg6[%c0_32, %c0_33] : memref<256x128xf32, #tpu.memory_space<vmem>>, vector<256x128xf32>
    tpu.vector_store %arg6[%c0_32, %c0_33], %32 {strides = array<i32>} : memref<256x128xf32, #tpu.memory_space<vmem>>, vector<256x128xf32>,
    %c1_i32 = arith.constant 1 : i32
    %34 = arith.addi %1, %c1_i32 : i32
    %35 = arith.index_cast %34 : i32 to index
    %c0_34 = arith.constant 0 : index
    %c0_35 = arith.constant 0 : index
    %36 = vector.load %arg2[%35, %c0_34, %c0_35] : memref<18x18x4xbf16, #tpu.memory_space<vmem>>, vector<16x16x4xbf16>
    %37 = vector.shape_cast %36 : vector<16x16x4xbf16> to vector<256x4xbf16>
    %c0_36 = arith.constant 0 : index
    %c0_37 = arith.constant 0 : index
    %38 = vector.load %arg6[%c0_36, %c0_37] : memref<256x128xf32, #tpu.memory_space<vmem>>, vector<256x128xf32>
    %c1_38 = arith.constant 1 : index
    %c0_39 = arith.constant 0 : index
    %c0_40 = arith.constant 0 : index
    %c0_41 = arith.constant 0 : index
    %39 = vector.load %arg3[%c1_38, %c0_39, %c0_40, %c0_41] : memref<3x3x4x128xbf16, #tpu.memory_space<vmem>>, vector<1x1x4x128xbf16>
    %40 = vector.shape_cast %39 : vector<1x1x4x128xbf16> to vector<4x128xbf16>
    %cst_42 = arith.constant dense<0.000000e+00> : vector<256x128xf32>
    %41 = tpu.matmul %37, %40, %cst_42 {dimension_numbers = #tpu.dot_dimension_numbers<[1], [0], [0], [1], [0, 0, 1, 1], [], []>} : vector<256x4xbf16>, vector<4x128xbf16>, vector<256x128xf32> -> vector<256x128xf32>
    %42 = arith.addf %38, %41 : vector<256x128xf32>
    %c0_43 = arith.constant 0 : index
    %c0_44 = arith.constant 0 : index
    %43 = vector.load %arg6[%c0_43, %c0_44] : memref<256x128xf32, #tpu.memory_space<vmem>>, vector<256x128xf32>
    tpu.vector_store %arg6[%c0_43, %c0_44], %42 {strides = array<i32>} : memref<256x128xf32, #tpu.memory_space<vmem>>, vector<256x128xf32>,
    %c1_i32_45 = arith.constant 1 : i32
    %44 = arith.addi %1, %c1_i32_45 : i32
    %45 = arith.index_cast %44 : i32 to index
    %c1_46 = arith.constant 1 : index
    %c0_47 = arith.constant 0 : index
    %46 = vector.load %arg2[%45, %c1_46, %c0_47] : memref<18x18x4xbf16, #tpu.memory_space<vmem>>, vector<16x16x4xbf16>
    %47 = vector.shape_cast %46 : vector<16x16x4xbf16> to vector<256x4xbf16>
    %c0_48 = arith.constant 0 : index
    %c0_49 = arith.constant 0 : index
    %48 = vector.load %arg6[%c0_48, %c0_49] : memref<256x128xf32, #tpu.memory_space<vmem>>, vector<256x128xf32>
    %c1_50 = arith.constant 1 : index
    %c1_51 = arith.constant 1 : index
    %c0_52 = arith.constant 0 : index
    %c0_53 = arith.constant 0 : index
    %49 = vector.load %arg3[%c1_50, %c1_51, %c0_52, %c0_53] : memref<3x3x4x128xbf16, #tpu.memory_space<vmem>>, vector<1x1x4x128xbf16>
    %50 = vector.shape_cast %49 : vector<1x1x4x128xbf16> to vector<4x128xbf16>
    %cst_54 = arith.constant dense<0.000000e+00> : vector<256x128xf32>
    %51 = tpu.matmul %47, %50, %cst_54 {dimension_numbers = #tpu.dot_dimension_numbers<[1], [0], [0], [1], [0, 0, 1, 1], [], []>} : vector<256x4xbf16>, vector<4x128xbf16>, vector<256x128xf32> -> vector<256x128xf32>
    %52 = arith.addf %48, %51 : vector<256x128xf32>
    %c0_55 = arith.constant 0 : index
    %c0_56 = arith.constant 0 : index
    %53 = vector.load %arg6[%c0_55, %c0_56] : memref<256x128xf32, #tpu.memory_space<vmem>>, vector<256x128xf32>
    tpu.vector_store %arg6[%c0_55, %c0_56], %52 {strides = array<i32>} : memref<256x128xf32, #tpu.memory_space<vmem>>, vector<256x128xf32>,
    %c1_i32_57 = arith.constant 1 : i32
    %54 = arith.addi %1, %c1_i32_57 : i32
    %55 = arith.index_cast %54 : i32 to index
    %c2_58 = arith.constant 2 : index
    %c0_59 = arith.constant 0 : index
    %56 = vector.load %arg2[%55, %c2_58, %c0_59] : memref<18x18x4xbf16, #tpu.memory_space<vmem>>, vector<16x16x4xbf16>
    %57 = vector.shape_cast %56 : vector<16x16x4xbf16> to vector<256x4xbf16>
    %c0_60 = arith.constant 0 : index
    %c0_61 = arith.constant 0 : index
    %58 = vector.load %arg6[%c0_60, %c0_61] : memref<256x128xf32, #tpu.memory_space<vmem>>, vector<256x128xf32>
    %c1_62 = arith.constant 1 : index
    %c2_63 = arith.constant 2 : index
    %c0_64 = arith.constant 0 : index
    %c0_65 = arith.constant 0 : index
    %59 = vector.load %arg3[%c1_62, %c2_63, %c0_64, %c0_65] : memref<3x3x4x128xbf16, #tpu.memory_space<vmem>>, vector<1x1x4x128xbf16>
    %60 = vector.shape_cast %59 : vector<1x1x4x128xbf16> to vector<4x128xbf16>
    %cst_66 = arith.constant dense<0.000000e+00> : vector<256x128xf32>
    %61 = tpu.matmul %57, %60, %cst_66 {dimension_numbers = #tpu.dot_dimension_numbers<[1], [0], [0], [1], [0, 0, 1, 1], [], []>} : vector<256x4xbf16>, vector<4x128xbf16>, vector<256x128xf32> -> vector<256x128xf32>
    %62 = arith.addf %58, %61 : vector<256x128xf32>
    %c0_67 = arith.constant 0 : index
    %c0_68 = arith.constant 0 : index
    %63 = vector.load %arg6[%c0_67, %c0_68] : memref<256x128xf32, #tpu.memory_space<vmem>>, vector<256x128xf32>
    tpu.vector_store %arg6[%c0_67, %c0_68], %62 {strides = array<i32>} : memref<256x128xf32, #tpu.memory_space<vmem>>, vector<256x128xf32>,
    %c2_i32 = arith.constant 2 : i32
    %64 = arith.addi %1, %c2_i32 : i32
    %65 = arith.index_cast %64 : i32 to index
    %c0_69 = arith.constant 0 : index
    %c0_70 = arith.constant 0 : index
    %66 = vector.load %arg2[%65, %c0_69, %c0_70] : memref<18x18x4xbf16, #tpu.memory_space<vmem>>, vector<16x16x4xbf16>
    %67 = vector.shape_cast %66 : vector<16x16x4xbf16> to vector<256x4xbf16>
    %c0_71 = arith.constant 0 : index
    %c0_72 = arith.constant 0 : index
    %68 = vector.load %arg6[%c0_71, %c0_72] : memref<256x128xf32, #tpu.memory_space<vmem>>, vector<256x128xf32>
    %c2_73 = arith.constant 2 : index
    %c0_74 = arith.constant 0 : index
    %c0_75 = arith.constant 0 : index
    %c0_76 = arith.constant 0 : index
    %69 = vector.load %arg3[%c2_73, %c0_74, %c0_75, %c0_76] : memref<3x3x4x128xbf16, #tpu.memory_space<vmem>>, vector<1x1x4x128xbf16>
    %70 = vector.shape_cast %69 : vector<1x1x4x128xbf16> to vector<4x128xbf16>
    %cst_77 = arith.constant dense<0.000000e+00> : vector<256x128xf32>
    %71 = tpu.matmul %67, %70, %cst_77 {dimension_numbers = #tpu.dot_dimension_numbers<[1], [0], [0], [1], [0, 0, 1, 1], [], []>} : vector<256x4xbf16>, vector<4x128xbf16>, vector<256x128xf32> -> vector<256x128xf32>
    %72 = arith.addf %68, %71 : vector<256x128xf32>
    %c0_78 = arith.constant 0 : index
    %c0_79 = arith.constant 0 : index
    %73 = vector.load %arg6[%c0_78, %c0_79] : memref<256x128xf32, #tpu.memory_space<vmem>>, vector<256x128xf32>
    tpu.vector_store %arg6[%c0_78, %c0_79], %72 {strides = array<i32>} : memref<256x128xf32, #tpu.memory_space<vmem>>, vector<256x128xf32>,
    %c2_i32_80 = arith.constant 2 : i32
    %74 = arith.addi %1, %c2_i32_80 : i32
    %75 = arith.index_cast %74 : i32 to index
    %c1_81 = arith.constant 1 : index
    %c0_82 = arith.constant 0 : index
    %76 = vector.load %arg2[%75, %c1_81, %c0_82] : memref<18x18x4xbf16, #tpu.memory_space<vmem>>, vector<16x16x4xbf16>
    %77 = vector.shape_cast %76 : vector<16x16x4xbf16> to vector<256x4xbf16>
    %c0_83 = arith.constant 0 : index
    %c0_84 = arith.constant 0 : index
    %78 = vector.load %arg6[%c0_83, %c0_84] : memref<256x128xf32, #tpu.memory_space<vmem>>, vector<256x128xf32>
    %c2_85 = arith.constant 2 : index
    %c1_86 = arith.constant 1 : index
    %c0_87 = arith.constant 0 : index
    %c0_88 = arith.constant 0 : index
    %79 = vector.load %arg3[%c2_85, %c1_86, %c0_87, %c0_88] : memref<3x3x4x128xbf16, #tpu.memory_space<vmem>>, vector<1x1x4x128xbf16>
    %80 = vector.shape_cast %79 : vector<1x1x4x128xbf16> to vector<4x128xbf16>
    %cst_89 = arith.constant dense<0.000000e+00> : vector<256x128xf32>
    %81 = tpu.matmul %77, %80, %cst_89 {dimension_numbers = #tpu.dot_dimension_numbers<[1], [0], [0], [1], [0, 0, 1, 1], [], []>} : vector<256x4xbf16>, vector<4x128xbf16>, vector<256x128xf32> -> vector<256x128xf32>
    %82 = arith.addf %78, %81 : vector<256x128xf32>
    %c0_90 = arith.constant 0 : index
    %c0_91 = arith.constant 0 : index
    %83 = vector.load %arg6[%c0_90, %c0_91] : memref<256x128xf32, #tpu.memory_space<vmem>>, vector<256x128xf32>
    tpu.vector_store %arg6[%c0_90, %c0_91], %82 {strides = array<i32>} : memref<256x128xf32, #tpu.memory_space<vmem>>, vector<256x128xf32>,
    %c2_i32_92 = arith.constant 2 : i32
    %84 = arith.addi %1, %c2_i32_92 : i32
    %85 = arith.index_cast %84 : i32 to index
    %c2_93 = arith.constant 2 : index
    %c0_94 = arith.constant 0 : index
    %86 = vector.load %arg2[%85, %c2_93, %c0_94] : memref<18x18x4xbf16, #tpu.memory_space<vmem>>, vector<16x16x4xbf16>
    %87 = vector.shape_cast %86 : vector<16x16x4xbf16> to vector<256x4xbf16>
    %c0_95 = arith.constant 0 : index
    %c0_96 = arith.constant 0 : index
    %88 = vector.load %arg6[%c0_95, %c0_96] : memref<256x128xf32, #tpu.memory_space<vmem>>, vector<256x128xf32>
    %c2_97 = arith.constant 2 : index
    %c2_98 = arith.constant 2 : index
    %c0_99 = arith.constant 0 : index
    %c0_100 = arith.constant 0 : index
    %89 = vector.load %arg3[%c2_97, %c2_98, %c0_99, %c0_100] : memref<3x3x4x128xbf16, #tpu.memory_space<vmem>>, vector<1x1x4x128xbf16>
    %90 = vector.shape_cast %89 : vector<1x1x4x128xbf16> to vector<4x128xbf16>
    %cst_101 = arith.constant dense<0.000000e+00> : vector<256x128xf32>
    %91 = tpu.matmul %87, %90, %cst_101 {dimension_numbers = #tpu.dot_dimension_numbers<[1], [0], [0], [1], [0, 0, 1, 1], [], []>} : vector<256x4xbf16>, vector<4x128xbf16>, vector<256x128xf32> -> vector<256x128xf32>
    %92 = arith.addf %88, %91 : vector<256x128xf32>
    %c0_102 = arith.constant 0 : index
    %c0_103 = arith.constant 0 : index
    %93 = vector.load %arg6[%c0_102, %c0_103] : memref<256x128xf32, #tpu.memory_space<vmem>>, vector<256x128xf32>
    tpu.vector_store %arg6[%c0_102, %c0_103], %92 {strides = array<i32>} : memref<256x128xf32, #tpu.memory_space<vmem>>, vector<256x128xf32>,
    %c0_104 = arith.constant 0 : index
    %c0_105 = arith.constant 0 : index
    %94 = vector.load %arg6[%c0_104, %c0_105] : memref<256x128xf32, #tpu.memory_space<vmem>>, vector<256x128xf32>
    %c0_106 = arith.constant 0 : index
    %c0_107 = arith.constant 0 : index
    %95 = vector.load %arg4[%c0_106, %c0_107] : memref<1x128xf32, #tpu.memory_space<vmem>>, vector<1x128xf32>
    %96 = vector.broadcast %95 : vector<1x128xf32> to vector<256x128xf32>
    %97 = arith.addf %94, %96 : vector<256x128xf32>
    %cst_108 = arith.constant 0.000000e+00 : f32
    %98 = vector.broadcast %cst_108 : f32 to vector<256x128xf32>
    %99 = arith.cmpf ogt, %97, %98 : vector<256x128xf32>
    %cst_109 = arith.constant 1.000000e-01 : f32
    %100 = vector.broadcast %cst_109 : f32 to vector<256x128xf32>
    %101 = arith.mulf %100, %97 : vector<256x128xf32>
    %102 = arith.select %99, %97, %101 : vector<256x128xi1>, vector<256x128xf32>
    %c0_110 = arith.constant 0 : index
    %c0_111 = arith.constant 0 : index
    %103 = vector.load %arg5[%c0_110, %c0_111] : memref<256x128xf32, #tpu.memory_space<vmem>>, vector<256x128xf32>
    tpu.vector_store %arg5[%c0_110, %c0_111], %102 {strides = array<i32>} : memref<256x128xf32, #tpu.memory_space<vmem>>, vector<256x128xf32>,
    return
  }
  func.func @transform_0(%arg0: i32, %arg1: i32) -> (i32, i32, i32) {
    %c0_i32 = arith.constant 0 : i32
    %c0_i32_0 = arith.constant 0 : i32
    %c0_i32_1 = arith.constant 0 : i32
    return %arg0, %c0_i32, %c0_i32_0 : i32, i32, i32
  }
  func.func @transform_1(%arg0: i32, %arg1: i32) -> (i32, i32, i32, i32) {
    %c0_i32 = arith.constant 0 : i32
    %c0_i32_0 = arith.constant 0 : i32
    %c0_i32_1 = arith.constant 0 : i32
    %c0_i32_2 = arith.constant 0 : i32
    %c0_i32_3 = arith.constant 0 : i32
    return %c0_i32, %c0_i32_0, %c0_i32_1, %c0_i32_2 : i32, i32, i32, i32
  }
  func.func @transform_2(%arg0: i32, %arg1: i32) -> (i32, i32) {
    %c0_i32 = arith.constant 0 : i32
    %c0_i32_0 = arith.constant 0 : i32
    %c0_i32_1 = arith.constant 0 : i32
    return %c0_i32, %c0_i32_0 : i32, i32
  }
  func.func @transform_3(%arg0: i32, %arg1: i32) -> (i32, i32) {
    %c1_i32 = arith.constant 1 : i32
    %0 = arith.muli %arg0, %c1_i32 : i32
    %1 = arith.addi %0, %arg1 : i32
    %c0_i32 = arith.constant 0 : i32
    %c0_i32_0 = arith.constant 0 : i32
    return %1, %c0_i32 : i32, i32
  }
}

</mosaic_0001>

<llo_original>
// kernel: tpu_custom_call.1
$region0: #{tpu_custom_call.1}
  #allocation0 [shape = 'u32[]', space=smem, size = 0x4, offset = 0x4, fixed_abs, tag = 'smem constant byte address 0x4 - core index']
  #allocation1 [shape = 'u32[144,128]{1,0:T(1,128)}', space=vmem, size = 0x12000, scoped, tag = 'internal scratch']
  #allocation2 [shape = 'f32[256,128]{1,0:T(8,128)}', space=vmem, size = 0x20000, scoped, tag = 'scratch operand']
  %s0 = inlined_call_operand.vmem [shape: bf16[36,18,4], index: 0, kind: input, shape index: {}]
  %s1 = inlined_call_operand.vmem [shape: bf16[3,3,4,128], index: 1, kind: input, shape index: {}]
  %s2 = inlined_call_operand.vmem [shape: f32[1,128], index: 2, kind: input, shape index: {}]
  %s3 = inlined_call_operand.hbm [shape: f32[512,128], index: 3, kind: output, shape index: {}]
  %s4 = sld [smem:[#allocation0]]
  $region45: #{tpu_custom_call.1} parent=0
    _
  %s6 = ssub.s32 1, %s4
  %s7 = scalar_select 0, %s6, %s4
  $region1: #{tpu_custom_call.1} parent=0
    #allocation3 [shape = 'u8[262144]{0}', space=vmem, size = 0x40000, scoped, tag = 'output window, operand 0']
    #allocation4 [shape = 's32[2]{0}', space=sflag, size = 0x8, scoped, tag = 'scoped memory for tpu_custom_call.1']
    %8 = vsyncpa [#allocation4], 0
    %s9 = scalar_lea.sflag [#allocation4], 1
    %10 = vsyncpa %s9, 0
    loop: start=0, step=1, limit=4
    $region2: #{tpu_custom_call.1} parent=1 // loop_pre_header
      _
    $region3: #{tpu_custom_call.1} parent=1 // loop_header
      %s12 = sphi 0, %s16
      %p13 = scmp.ge.s32.totalorder %s12, 4
      %s19 = sphi 0, %s31
      %s20 = sphi 0, %s27
      %s21 = sphi 0, %s19
      %s22 = sphi 0, %s20
      %s23 = sphi 0, %s21
      %s24 = sphi 0, %s22
      %s34 = sphi 0, %s36
      %s37 = sphi 0, %s34
      %s38 = sphi 0, %s37
      %s54 = sphi 0, %s38
      %s58 = sphi 0, %s58
      %s60 = sphi 0, %s58
      %s61 = sphi 0, %s60
      %s75 = sphi 0, %s61
      %s79 = sphi 0, %s79
      %s81 = sphi 0, %s79
      %s82 = sphi 0, %s81
      %s96 = sphi 0, %s82
      %s104 = sphi 0, %s106
      %s107 = sphi 0, %s104
      %s108 = sphi 0, %s107
      %s124 = sphi 0, %s108
    $region4: #{tpu_custom_call.1} parent=1 // loop_header_branch
      %15 = sbr.rel (%p13) target = $region8
    $region5: #{tpu_custom_call.1} parent=1 // loop_body
      %s17 = ssub.s32 %s12, 1
      %s18 = ssub.s32 %s12, 2
      %s25 = sadd.s32 1, %s20
      %p26 = scmp.ge.s32.totalorder %s25, 1
      %s27 = scalar_select %p26, 0, %s25
      %s28 = sadd.s32 1, %s19
      %s29 = scalar_select %p26, %s28, %s19
      %p30 = scmp.ge.s32.totalorder %s29, 2
      %s31 = scalar_select %p30, 0, %s29
      %s32 = ssub.s32 %s19, %s31
      %p33 = scmp.eq.s32.totalorder %s32, 0
      %s35 = sadd.s32 %s34, 1
      %s36 = scalar_select %p33, %s34, %s35
      %p39 = pneg %p33
      %p40 = scmp.eq.s32.totalorder %s12, 1
      %p41 = por %p39, %p40
      %p42 = scmp.ne.s32.totalorder %s34, %s37
      %p43 = scmp.eq.s32.totalorder %s12, 0
      %p44 = por %p42, %p43
      %p45 = scmp.ne.s32.totalorder %s34, %s37
      %p46 = scmp.eq.s32.totalorder %s17, 1
      %p47 = por %p45, %p46
      %p48 = scmp.ne.s32.totalorder %s37, %s38
      %p49 = scmp.eq.s32.totalorder %s17, 0
      %p50 = por %p48, %p49
      %p51 = scmp.ne.s32.totalorder %s37, %s38
      %p52 = scmp.eq.s32.totalorder %s18, 1
      %p53 = por %p51, %p52
      %p55 = scmp.ne.s32.totalorder %s38, %s54
      %p56 = scmp.eq.s32.totalorder %s18, 0
      %p57 = por %p55, %p56
      %s59 = sadd.s32 %s58, 1
      %p62 = scmp.eq.s32.totalorder %s12, 1
      %p63 = scmp.ne.s32.totalorder %s58, %s60
      %p64 = scmp.eq.s32.totalorder %s12, 0
      %p65 = por %p63, %p64
      %p66 = scmp.ne.s32.totalorder %s58, %s60
      %p67 = scmp.eq.s32.totalorder %s17, 1
      %p68 = por %p66, %p67
      %p69 = scmp.ne.s32.totalorder %s60, %s61
      %p70 = scmp.eq.s32.totalorder %s17, 0
      %p71 = por %p69, %p70
      %p72 = scmp.ne.s32.totalorder %s60, %s61
      %p73 = scmp.eq.s32.totalorder %s18, 1
      %p74 = por %p72, %p73
      %p76 = scmp.ne.s32.totalorder %s61, %s75
      %p77 = scmp.eq.s32.totalorder %s18, 0
      %p78 = por %p76, %p77
      %s80 = sadd.s32 %s79, 1
      %p83 = scmp.eq.s32.totalorder %s12, 1
      %p84 = scmp.ne.s32.totalorder %s79, %s81
      %p85 = scmp.eq.s32.totalorder %s12, 0
      %p86 = por %p84, %p85
      %p87 = scmp.ne.s32.totalorder %s79, %s81
      %p88 = scmp.eq.s32.totalorder %s17, 1
      %p89 = por %p87, %p88
      %p90 = scmp.ne.s32.totalorder %s81, %s82
      %p91 = scmp.eq.s32.totalorder %s17, 0
      %p92 = por %p90, %p91
      %p93 = scmp.ne.s32.totalorder %s81, %s82
      %p94 = scmp.eq.s32.totalorder %s18, 1
      %p95 = por %p93, %p94
      %p97 = scmp.ne.s32.totalorder %s82, %s96
      %p98 = scmp.eq.s32.totalorder %s18, 0
      %p99 = por %p97, %p98
      %s100 = sadd.s32 %s19, %s20
      %s101 = sadd.s32 %s31, %s27
      %s102 = ssub.s32 %s100, %s101
      %p103 = scmp.eq.s32.totalorder %s102, 0
      %s105 = sadd.s32 %s104, 1
      %s106 = scalar_select %p103, %s104, %s105
      %p109 = pneg %p103
      %p110 = scmp.eq.s32.totalorder %s12, 1
      %p111 = por %p109, %p110
      %p112 = scmp.ne.s32.totalorder %s104, %s107
      %p113 = scmp.eq.s32.totalorder %s12, 0
      %p114 = por %p112, %p113
      %p115 = scmp.ne.s32.totalorder %s104, %s107
      %p116 = scmp.eq.s32.totalorder %s17, 1
      %p117 = por %p115, %p116
      %p118 = scmp.ne.s32.totalorder %s107, %s108
      %p119 = scmp.eq.s32.totalorder %s17, 0
      %p120 = por %p118, %p119
      %p121 = scmp.ne.s32.totalorder %s107, %s108
      %p122 = scmp.eq.s32.totalorder %s18, 1
      %p123 = por %p121, %p122
      %p125 = scmp.ne.s32.totalorder %s108, %s124
      %p126 = scmp.eq.s32.totalorder %s18, 0
      %p127 = por %p125, %p126
      %p128 = scmp.le.s32.totalorder 1, %s12
      %p129 = scmp.lt.s32.totalorder %s12, 3
      %p130 = pnand %p128, %p129
      %p131 = pneg %p130
      // Predicated region
      $region9: #{tpu_custom_call.1} parent=5 // pred_check
        _
      $region10: #{tpu_custom_call.1} parent=5 // pred_check_branch
        %133 = sbr.rel (%p130) target = $region12
      $region11: #{tpu_custom_call.1} parent=5 // pred_region
        %s134 = ssub.s32 %s12, 1
        // Predicated region
        $region13: #{tpu_custom_call.1} parent=11 // pred_check
          %p135 = pneg %p71
        $region14: #{tpu_custom_call.1} parent=11 // pred_check_branch
          %137 = sbr.rel (%p135) target = $region16
        $region15: #{tpu_custom_call.1} parent=11 // pred_region
          _
        $region16: #{tpu_custom_call.1} parent=11 // pred_fallthru
          _
        // Predicated region
        $region17: #{tpu_custom_call.1} parent=11 // pred_check
          %p138 = pneg %p92
        $region18: #{tpu_custom_call.1} parent=11 // pred_check_branch
          %140 = sbr.rel (%p138) target = $region20
        $region19: #{tpu_custom_call.1} parent=11 // pred_region
          _
        $region20: #{tpu_custom_call.1} parent=11 // pred_fallthru
          _
      $region12: #{tpu_custom_call.1} parent=5 // pred_fallthru
        _
      %p141 = scmp.lt.s32.totalorder %s12, 2
      // Predicated region
      $region21: #{tpu_custom_call.1} parent=5 // pred_check
        %p142 = pneg %p141
      $region22: #{tpu_custom_call.1} parent=5 // pred_check_branch
        %144 = sbr.rel (%p142) target = $region24
      $region23: #{tpu_custom_call.1} parent=5 // pred_region
        // Predicated region
        $region25: #{tpu_custom_call.1} parent=23 // pred_check
          %p145 = pneg %p44
        $region26: #{tpu_custom_call.1} parent=23 // pred_check_branch
          %147 = sbr.rel (%p145) target = $region28
        $region27: #{tpu_custom_call.1} parent=23 // pred_region
          %s148 = smul.u32 18, %s19
          %p149 = scmp.lt.s32.totalorder %s148, 35
          %s150 = scalar_select %p149, %s148, 35
          %s151 = smul.addr %s150, 3
          %s152 = smul.addr %s151, 4
          %s153 = scalar_lea.vmem %s0, %s152
          %s154 = smul.u32 18, %s19
        $region28: #{tpu_custom_call.1} parent=23 // pred_fallthru
          _
      $region24: #{tpu_custom_call.1} parent=5 // pred_fallthru
        _
      %p155 = scmp.le.s32.totalorder 1, %s12
      %p156 = scmp.lt.s32.totalorder %s12, 3
      %p157 = pnand %p155, %p156
      %p158 = pneg %p157
      // Predicated region
      $region29: #{tpu_custom_call.1} parent=5 // pred_check
        _
      $region30: #{tpu_custom_call.1} parent=5 // pred_check_branch
        %160 = sbr.rel (%p157) target = $region32
      $region31: #{tpu_custom_call.1} parent=5 // pred_region
        %s161 = ssub.s32 %s12, 1
        %s162 = smul.u32 18, %s21
        %p163 = scmp.lt.s32.totalorder %s162, 35
        %s164 = scalar_select %p163, %s162, 35
        %s165 = smul.addr %s164, 3
        %s166 = smul.addr %s165, 4
        %s167 = scalar_lea.vmem %s0, %s166
        %p168 = pneg %p50
        %p169 = pneg %p47
        %p170 = pneg %p71
        %p171 = pneg %p68
        %p172 = pneg %p92
        %p173 = pneg %p89
        %p174 = pneg %p120
        %p175 = pneg %p117
        %s176 = sand.u32 %s107, 1
        %s177 = scalar_lea.sflag [#allocation4], %s176
        %s178 = sand.u32 %s107, 1
        %s179 = smul.addr %s178, 256
        %s180 = scalar_lea.vmem [#allocation3], %s179
        %s181 = smul.u32 18, %s21
        %p182 = scmp.lt.s32.totalorder %s181, 35
        %s183 = scalar_select %p182, %s181, 35
        %s184 = smul.addr %s183, 3
        %s185 = smul.addr %s184, 4
        %s186 = scalar_lea.vmem %s0, %s185
        %s187 = smul.u32 18, %s21
        %s188 = sadd.s32 %s21, %s22
        %s189 = smul.u32 32, %s188
        %s191 = smul.u32 %s22, 16
        %192 = vst [vmem:[#allocation2] sm:$0xff] 0.0
        %193 = vst [vmem:[#allocation2 + $0x8] sm:$0xff] 0.0
        %194 = vst [vmem:[#allocation2 + $0x10] sm:$0xff] 0.0
        %195 = vst [vmem:[#allocation2 + $0x18] sm:$0xff] 0.0
        %196 = vst [vmem:[#allocation2 + $0x20] sm:$0xff] 0.0
        %197 = vst [vmem:[#allocation2 + $0x28] sm:$0xff] 0.0
        %198 = vst [vmem:[#allocation2 + $0x30] sm:$0xff] 0.0
        %199 = vst [vmem:[#allocation2 + $0x38] sm:$0xff] 0.0
        %200 = vst [vmem:[#allocation2 + $0x40] sm:$0xff] 0.0
        %201 = vst [vmem:[#allocation2 + $0x48] sm:$0xff] 0.0
        %202 = vst [vmem:[#allocation2 + $0x50] sm:$0xff] 0.0
        %203 = vst [vmem:[#allocation2 + $0x58] sm:$0xff] 0.0
        %204 = vst [vmem:[#allocation2 + $0x60] sm:$0xff] 0.0
        %205 = vst [vmem:[#allocation2 + $0x68] sm:$0xff] 0.0
        %206 = vst [vmem:[#allocation2 + $0x70] sm:$0xff] 0.0
        %207 = vst [vmem:[#allocation2 + $0x78] sm:$0xff] 0.0
        %208 = vst [vmem:[#allocation2 + $0x80] sm:$0xff] 0.0
        %209 = vst [vmem:[#allocation2 + $0x88] sm:$0xff] 0.0
        %210 = vst [vmem:[#allocation2 + $0x90] sm:$0xff] 0.0
        %211 = vst [vmem:[#allocation2 + $0x98] sm:$0xff] 0.0
        %212 = vst [vmem:[#allocation2 + $0xa0] sm:$0xff] 0.0
        %213 = vst [vmem:[#allocation2 + $0xa8] sm:$0xff] 0.0
        %214 = vst [vmem:[#allocation2 + $0xb0] sm:$0xff] 0.0
        %215 = vst [vmem:[#allocation2 + $0xb8] sm:$0xff] 0.0
        %216 = vst [vmem:[#allocation2 + $0xc0] sm:$0xff] 0.0
        %217 = vst [vmem:[#allocation2 + $0xc8] sm:$0xff] 0.0
        %218 = vst [vmem:[#allocation2 + $0xd0] sm:$0xff] 0.0
        %219 = vst [vmem:[#allocation2 + $0xd8] sm:$0xff] 0.0
        %220 = vst [vmem:[#allocation2 + $0xe0] sm:$0xff] 0.0
        %221 = vst [vmem:[#allocation2 + $0xe8] sm:$0xff] 0.0
        %222 = vst [vmem:[#allocation2 + $0xf0] sm:$0xff] 0.0
        %223 = vst [vmem:[#allocation2 + $0xf8] sm:$0xff] 0.0
        %s224 = smul.u32 %s191, 3
        %s225 = smul.addr %s224, 4
        %s226 = scalar_lea.vmem %s186, %s225
        %v227 = vld [vmem:[%s226] sm:$0xf]
        %v228 = vld [vmem:[%s226 + $0x4] sm:$0xf]
        %v229 = vld [vmem:[%s226 + $0xc] sm:$0xf]
        %v230 = vld [vmem:[%s226 + $0x10] sm:$0xf]
        %v231 = vld [vmem:[%s226 + $0x18] sm:$0xf]
        %v232 = vld [vmem:[%s226 + $0x1c] sm:$0xf]
        %v233 = vld [vmem:[%s226 + $0x24] sm:$0xf]
        %v234 = vld [vmem:[%s226 + $0x28] sm:$0xf]
        %v235 = vld [vmem:[%s226 + $0x30] sm:$0xf]
        %v236 = vld [vmem:[%s226 + $0x34] sm:$0xf]
        %v237 = vld [vmem:[%s226 + $0x3c] sm:$0xf]
        %v238 = vld [vmem:[%s226 + $0x40] sm:$0xf]
        %v239 = vld [vmem:[%s226 + $0x48] sm:$0xf]
        %v240 = vld [vmem:[%s226 + $0x4c] sm:$0xf]
        %v241 = vld [vmem:[%s226 + $0x54] sm:$0xf]
        %v242 = vld [vmem:[%s226 + $0x58] sm:$0xf]
        %v243 = vld [vmem:[%s226 + $0x60] sm:$0xf]
        %v244 = vld [vmem:[%s226 + $0x64] sm:$0xf]
        %v245 = vld [vmem:[%s226 + $0x6c] sm:$0xf]
        %v246 = vld [vmem:[%s226 + $0x70] sm:$0xf]
        %v247 = vld [vmem:[%s226 + $0x78] sm:$0xf]
        %v248 = vld [vmem:[%s226 + $0x7c] sm:$0xf]
        %v249 = vld [vmem:[%s226 + $0x84] sm:$0xf]
        %v250 = vld [vmem:[%s226 + $0x88] sm:$0xf]
        %v251 = vld [vmem:[%s226 + $0x90] sm:$0xf]
        %v252 = vld [vmem:[%s226 + $0x94] sm:$0xf]
        %v253 = vld [vmem:[%s226 + $0x9c] sm:$0xf]
        %v254 = vld [vmem:[%s226 + $0xa0] sm:$0xf]
        %v255 = vld [vmem:[%s226 + $0xa8] sm:$0xf]
        %v256 = vld [vmem:[%s226 + $0xac] sm:$0xf]
        %v257 = vld [vmem:[%s226 + $0xb4] sm:$0xf]
        %v258 = vld [vmem:[%s226 + $0xb8] sm:$0xf]
        %v259 = vld [vmem:[#allocation2] sm:$0xff]
        %v260 = vld [vmem:[#allocation2 + $0x8] sm:$0xff]
        %v261 = vld [vmem:[#allocation2 + $0x10] sm:$0xff]
        %v262 = vld [vmem:[#allocation2 + $0x18] sm:$0xff]
        %v263 = vld [vmem:[#allocation2 + $0x20] sm:$0xff]
        %v264 = vld [vmem:[#allocation2 + $0x28] sm:$0xff]
        %v265 = vld [vmem:[#allocation2 + $0x30] sm:$0xff]
        %v266 = vld [vmem:[#allocation2 + $0x38] sm:$0xff]
        %v267 = vld [vmem:[#allocation2 + $0x40] sm:$0xff]
        %v268 = vld [vmem:[#allocation2 + $0x48] sm:$0xff]
        %v269 = vld [vmem:[#allocation2 + $0x50] sm:$0xff]
        %v270 = vld [vmem:[#allocation2 + $0x58] sm:$0xff]
        %v271 = vld [vmem:[#allocation2 + $0x60] sm:$0xff]
        %v272 = vld [vmem:[#allocation2 + $0x68] sm:$0xff]
        %v273 = vld [vmem:[#allocation2 + $0x70] sm:$0xff]
        %v274 = vld [vmem:[#allocation2 + $0x78] sm:$0xff]
        %v275 = vld [vmem:[#allocation2 + $0x80] sm:$0xff]
        %v276 = vld [vmem:[#allocation2 + $0x88] sm:$0xff]
        %v277 = vld [vmem:[#allocation2 + $0x90] sm:$0xff]
        %v278 = vld [vmem:[#allocation2 + $0x98] sm:$0xff]
        %v279 = vld [vmem:[#allocation2 + $0xa0] sm:$0xff]
        %v280 = vld [vmem:[#allocation2 + $0xa8] sm:$0xff]
        %v281 = vld [vmem:[#allocation2 + $0xb0] sm:$0xff]
        %v282 = vld [vmem:[#allocation2 + $0xb8] sm:$0xff]
        %v283 = vld [vmem:[#allocation2 + $0xc0] sm:$0xff]
        %v284 = vld [vmem:[#allocation2 + $0xc8] sm:$0xff]
        %v285 = vld [vmem:[#allocation2 + $0xd0] sm:$0xff]
        %v286 = vld [vmem:[#allocation2 + $0xd8] sm:$0xff]
        %v287 = vld [vmem:[#allocation2 + $0xe0] sm:$0xff]
        %v288 = vld [vmem:[#allocation2 + $0xe8] sm:$0xff]
        %v289 = vld [vmem:[#allocation2 + $0xf0] sm:$0xff]
        %v290 = vld [vmem:[#allocation2 + $0xf8] sm:$0xff]
        %v291 = vld [vmem:[%s1] sm:$0x3]
        %v324 = vunpack.c.l.b16 %v227
        %v325 = vunpack.c.l.b16 %v228
        %v326 = vunpack.c.l.b16 %v229
        %v327 = vunpack.c.l.b16 %v230
        %v328 = vunpack.c.l.b16 %v231
        %v329 = vunpack.c.l.b16 %v232
        %v330 = vunpack.c.l.b16 %v233
        %v331 = vunpack.c.l.b16 %v234
        %v332 = vunpack.c.l.b16 %v235
        %v333 = vunpack.c.l.b16 %v236
        %v334 = vunpack.c.l.b16 %v237
        %v335 = vunpack.c.l.b16 %v238
        %v336 = vunpack.c.l.b16 %v239
        %v337 = vunpack.c.l.b16 %v240
        %v338 = vunpack.c.l.b16 %v241
        %v339 = vunpack.c.l.b16 %v242
        %v340 = vunpack.c.l.b16 %v243
        %v341 = vunpack.c.l.b16 %v244
        %v342 = vunpack.c.l.b16 %v245
        %v343 = vunpack.c.l.b16 %v246
        %v344 = vunpack.c.l.b16 %v247
        %v345 = vunpack.c.l.b16 %v248
        %v346 = vunpack.c.l.b16 %v249
        %v347 = vunpack.c.l.b16 %v250
        %v348 = vunpack.c.l.b16 %v251
        %v349 = vunpack.c.l.b16 %v252
        %v350 = vunpack.c.l.b16 %v253
        %v351 = vunpack.c.l.b16 %v254
        %v352 = vunpack.c.l.b16 %v255
        %v353 = vunpack.c.l.b16 %v256
        %v354 = vunpack.c.l.b16 %v257
        %v355 = vunpack.c.l.b16 %v258
        %v356 = vpack.c.b16 %v325, %v324
        %v357 = vpack.c.b16 %v327, %v326
        %v358 = vpack.c.b16 %v329, %v328
        %v359 = vpack.c.b16 %v331, %v330
        %v360 = vpack.c.b16 %v333, %v332
        %v361 = vpack.c.b16 %v335, %v334
        %v362 = vpack.c.b16 %v337, %v336
        %v363 = vpack.c.b16 %v339, %v338
        %v364 = vpack.c.b16 %v341, %v340
        %v365 = vpack.c.b16 %v343, %v342
        %v366 = vpack.c.b16 %v345, %v344
        %v367 = vpack.c.b16 %v347, %v346
        %v368 = vpack.c.b16 %v349, %v348
        %v369 = vpack.c.b16 %v351, %v350
        %v370 = vpack.c.b16 %v353, %v352
        %v371 = vpack.c.b16 %v355, %v354
        %vm372 = vcmask 31744
        %v374 = vsel %vm372, %v356, 0
        %v377 = vsel %vm372, %v357, 0
        %v380 = vsel %vm372, %v358, 0
        %v383 = vsel %vm372, %v359, 0
        %v386 = vsel %vm372, %v360, 0
        %v389 = vsel %vm372, %v361, 0
        %v392 = vsel %vm372, %v362, 0
        %v395 = vsel %vm372, %v363, 0
        %v398 = vsel %vm372, %v364, 0
        %v401 = vsel %vm372, %v365, 0
        %v404 = vsel %vm372, %v366, 0
        %v407 = vsel %vm372, %v367, 0
        %v410 = vsel %vm372, %v368, 0
        %v413 = vsel %vm372, %v369, 0
        %v416 = vsel %vm372, %v370, 0
        %v419 = vsel %vm372, %v371, 0
        %vm421 = vcmask 1041408
        %v423 = vsel %vm421, %v291, 0
        %425 = vmatprep.subr.bf16.mxu0 0
        %426 = vmatpush1.bf16.msra.mxu0 0
        %427 = vmatprep.subr.bf16.mxu0 0
        %428 = vmatpush1.bf16.msra.mxu0 0
        %429 = vmatprep.subr.bf16.mxu0 0
        %430 = vmatpush1.bf16.msra.mxu0 0
        %431 = vmatprep.subr.bf16.mxu0 0
        %432 = vmatpush1.bf16.msra.mxu0 0
        %433 = vmatprep.subr.bf16.mxu0 0
        %434 = vmatpush1.bf16.msra.mxu0 0
        %435 = vmatprep.subr.bf16.mxu0 0
        %436 = vmatpush1.bf16.msra.mxu0 0
        %437 = vmatprep.subr.bf16.mxu0 0
        %438 = vmatpush1.bf16.msra.mxu0 0
        %439 = vmatprep.subr.bf16.mxu0 0
        %440 = vmatpush1.bf16.msra.mxu0 %v423
        %441 = vmatprep.subr.bf16.mxu0 0
        %442 = vmatpush2.bf16.msra.mxu0 0
        %443 = vmatprep.subr.bf16.mxu0 0
        %444 = vmatpush2.bf16.msra.mxu0 0
        %445 = vmatprep.subr.bf16.mxu0 0
        %446 = vmatpush2.bf16.msra.mxu0 0
        %447 = vmatprep.subr.bf16.mxu0 0
        %448 = vmatpush2.bf16.msra.mxu0 0
        %449 = vmatprep.subr.bf16.mxu0 0
        %450 = vmatpush2.bf16.msra.mxu0 0
        %451 = vmatprep.subr.bf16.mxu0 0
        %452 = vmatpush2.bf16.msra.mxu0 0
        %453 = vmatprep.subr.bf16.mxu0 0
        %454 = vmatpush2.bf16.msra.mxu0 0
        %455 = vmatprep.subr.bf16.mxu0 0
        %456 = vmatpush2.bf16.msra.mxu0 0
        %457 = vmatprep.mubr.bf16.mxu0 0
        %458 = vmatmul.mubr.bf16.gmra.mxu0 %v374
        %v459 = vpop.f32.mrf.mxu0
        %v460 = vadd.f32 0.0, %v459
        %v461 = vpop.f32.mrf.mxu0
        %v462 = vpop.f32.mrf.mxu0
        %v463 = vadd.f32 0.0, %v462
        %v464 = vpop.f32.mrf.mxu0
        %465 = vmatprep.mubr.bf16.mxu0 0
        %466 = vmatmul.mubr.bf16.gmra.mxu0 %v377
        %v467 = vpop.f32.mrf.mxu0
        %v468 = vadd.f32 0.0, %v467
        %v469 = vpop.f32.mrf.mxu0
        %v470 = vpop.f32.mrf.mxu0
        %v471 = vadd.f32 0.0, %v470
        %v472 = vpop.f32.mrf.mxu0
        %473 = vmatprep.mubr.bf16.mxu0 0
        %474 = vmatmul.mubr.bf16.gmra.mxu0 %v380
        %v475 = vpop.f32.mrf.mxu0
        %v476 = vadd.f32 0.0, %v475
        %v477 = vpop.f32.mrf.mxu0
        %v478 = vpop.f32.mrf.mxu0
        %v479 = vadd.f32 0.0, %v478
        %v480 = vpop.f32.mrf.mxu0
        %481 = vmatprep.mubr.bf16.mxu0 0
        %482 = vmatmul.mubr.bf16.gmra.mxu0 %v383
        %v483 = vpop.f32.mrf.mxu0
        %v484 = vadd.f32 0.0, %v483
        %v485 = vpop.f32.mrf.mxu0
        %v486 = vpop.f32.mrf.mxu0
        %v487 = vadd.f32 0.0, %v486
        %v488 = vpop.f32.mrf.mxu0
        %489 = vmatprep.mubr.bf16.mxu0 0
        %490 = vmatmul.mubr.bf16.gmra.mxu0 %v386
        %v491 = vpop.f32.mrf.mxu0
        %v492 = vadd.f32 0.0, %v491
        %v493 = vpop.f32.mrf.mxu0
        %v494 = vpop.f32.mrf.mxu0
        %v495 = vadd.f32 0.0, %v494
        %v496 = vpop.f32.mrf.mxu0
        %497 = vmatprep.mubr.bf16.mxu0 0
        %498 = vmatmul.mubr.bf16.gmra.mxu0 %v389
        %v499 = vpop.f32.mrf.mxu0
        %v500 = vadd.f32 0.0, %v499
        %v501 = vpop.f32.mrf.mxu0
        %v502 = vpop.f32.mrf.mxu0
        %v503 = vadd.f32 0.0, %v502
        %v504 = vpop.f32.mrf.mxu0
        %505 = vmatprep.mubr.bf16.mxu0 0
        %506 = vmatmul.mubr.bf16.gmra.mxu0 %v392
        %v507 = vpop.f32.mrf.mxu0
        %v508 = vadd.f32 0.0, %v507
        %v509 = vpop.f32.mrf.mxu0
        %v510 = vpop.f32.mrf.mxu0
        %v511 = vadd.f32 0.0, %v510
        %v512 = vpop.f32.mrf.mxu0
        %513 = vmatprep.mubr.bf16.mxu0 0
        %514 = vmatmul.mubr.bf16.gmra.mxu0 %v395
        %v515 = vpop.f32.mrf.mxu0
        %v516 = vadd.f32 0.0, %v515
        %v517 = vpop.f32.mrf.mxu0
        %v518 = vpop.f32.mrf.mxu0
        %v519 = vadd.f32 0.0, %v518
        %v520 = vpop.f32.mrf.mxu0
        %521 = vmatprep.mubr.bf16.mxu0 0
        %522 = vmatmul.mubr.bf16.gmra.mxu0 %v398
        %v523 = vpop.f32.mrf.mxu0
        %v524 = vadd.f32 0.0, %v523
        %v525 = vpop.f32.mrf.mxu0
        %v526 = vpop.f32.mrf.mxu0
        %v527 = vadd.f32 0.0, %v526
        %v528 = vpop.f32.mrf.mxu0
        %529 = vmatprep.mubr.bf16.mxu0 0
        %530 = vmatmul.mubr.bf16.gmra.mxu0 %v401
        %v531 = vpop.f32.mrf.mxu0
        %v532 = vadd.f32 0.0, %v531
        %v533 = vpop.f32.mrf.mxu0
        %v534 = vpop.f32.mrf.mxu0
        %v535 = vadd.f32 0.0, %v534
        %v536 = vpop.f32.mrf.mxu0
        %537 = vmatprep.mubr.bf16.mxu0 0
        %538 = vmatmul.mubr.bf16.gmra.mxu0 %v404
        %v539 = vpop.f32.mrf.mxu0
        %v540 = vadd.f32 0.0, %v539
        %v541 = vpop.f32.mrf.mxu0
        %v542 = vpop.f32.mrf.mxu0
        %v543 = vadd.f32 0.0, %v542
        %v544 = vpop.f32.mrf.mxu0
        %545 = vmatprep.mubr.bf16.mxu0 0
        %546 = vmatmul.mubr.bf16.gmra.mxu0 %v407
        %v547 = vpop.f32.mrf.mxu0
        %v548 = vadd.f32 0.0, %v547
        %v549 = vpop.f32.mrf.mxu0
        %v550 = vpop.f32.mrf.mxu0
        %v551 = vadd.f32 0.0, %v550
        %v552 = vpop.f32.mrf.mxu0
        %553 = vmatprep.mubr.bf16.mxu0 0
        %554 = vmatmul.mubr.bf16.gmra.mxu0 %v410
        %v555 = vpop.f32.mrf.mxu0
        %v556 = vadd.f32 0.0, %v555
        %v557 = vpop.f32.mrf.mxu0
        %v558 = vpop.f32.mrf.mxu0
        %v559 = vadd.f32 0.0, %v558
        %v560 = vpop.f32.mrf.mxu0
        %561 = vmatprep.mubr.bf16.mxu0 0
        %562 = vmatmul.mubr.bf16.gmra.mxu0 %v413
        %v563 = vpop.f32.mrf.mxu0
        %v564 = vadd.f32 0.0, %v563
        %v565 = vpop.f32.mrf.mxu0
        %v566 = vpop.f32.mrf.mxu0
        %v567 = vadd.f32 0.0, %v566
        %v568 = vpop.f32.mrf.mxu0
        %569 = vmatprep.mubr.bf16.mxu0 0
        %570 = vmatmul.mubr.bf16.gmra.mxu0 %v416
        %v571 = vpop.f32.mrf.mxu0
        %v572 = vadd.f32 0.0, %v571
        %v573 = vpop.f32.mrf.mxu0
        %v574 = vpop.f32.mrf.mxu0
        %v575 = vadd.f32 0.0, %v574
        %v576 = vpop.f32.mrf.mxu0
        %577 = vmatprep.mubr.bf16.mxu0 0
        %578 = vmatmul.mubr.bf16.gmra.mxu0 %v419
        %v579 = vpop.f32.mrf.mxu0
        %v580 = vadd.f32 0.0, %v579
        %v581 = vpop.f32.mrf.mxu0
        %v582 = vpop.f32.mrf.mxu0
        %v583 = vadd.f32 0.0, %v582
        %v584 = vpop.f32.mrf.mxu0
        %585 = vdwg.mxu0
        %v586 = vadd.f32 %v259, %v460
        %v587 = vadd.f32 %v260, %v463
        %v588 = vadd.f32 %v261, %v468
        %v589 = vadd.f32 %v262, %v471
        %v590 = vadd.f32 %v263, %v476
        %v591 = vadd.f32 %v264, %v479
        %v592 = vadd.f32 %v265, %v484
        %v593 = vadd.f32 %v266, %v487
        %v594 = vadd.f32 %v267, %v492
        %v595 = vadd.f32 %v268, %v495
        %v596 = vadd.f32 %v269, %v500
        %v597 = vadd.f32 %v270, %v503
        %v598 = vadd.f32 %v271, %v508
        %v599 = vadd.f32 %v272, %v511
        %v600 = vadd.f32 %v273, %v516
        %v601 = vadd.f32 %v274, %v519
        %v602 = vadd.f32 %v275, %v524
        %v603 = vadd.f32 %v276, %v527
        %v604 = vadd.f32 %v277, %v532
        %v605 = vadd.f32 %v278, %v535
        %v606 = vadd.f32 %v279, %v540
        %v607 = vadd.f32 %v280, %v543
        %v608 = vadd.f32 %v281, %v548
        %v609 = vadd.f32 %v282, %v551
        %v610 = vadd.f32 %v283, %v556
        %v611 = vadd.f32 %v284, %v559
        %v612 = vadd.f32 %v285, %v564
        %v613 = vadd.f32 %v286, %v567
        %v614 = vadd.f32 %v287, %v572
        %v615 = vadd.f32 %v288, %v575
        %v616 = vadd.f32 %v289, %v580
        %v617 = vadd.f32 %v290, %v583
        %618 = vst [vmem:[#allocation2] sm:$0xff] %v586
        %619 = vst [vmem:[#allocation2 + $0x8] sm:$0xff] %v587
        %620 = vst [vmem:[#allocation2 + $0x10] sm:$0xff] %v588
        %621 = vst [vmem:[#allocation2 + $0x18] sm:$0xff] %v589
        %622 = vst [vmem:[#allocation2 + $0x20] sm:$0xff] %v590
        %623 = vst [vmem:[#allocation2 + $0x28] sm:$0xff] %v591
        %624 = vst [vmem:[#allocation2 + $0x30] sm:$0xff] %v592
        %625 = vst [vmem:[#allocation2 + $0x38] sm:$0xff] %v593
        %626 = vst [vmem:[#allocation2 + $0x40] sm:$0xff] %v594
        %627 = vst [vmem:[#allocation2 + $0x48] sm:$0xff] %v595
        %628 = vst [vmem:[#allocation2 + $0x50] sm:$0xff] %v596
        %629 = vst [vmem:[#allocation2 + $0x58] sm:$0xff] %v597
        %630 = vst [vmem:[#allocation2 + $0x60] sm:$0xff] %v598
        %631 = vst [vmem:[#allocation2 + $0x68] sm:$0xff] %v599
        %632 = vst [vmem:[#allocation2 + $0x70] sm:$0xff] %v600
        %633 = vst [vmem:[#allocation2 + $0x78] sm:$0xff] %v601
        %634 = vst [vmem:[#allocation2 + $0x80] sm:$0xff] %v602
        %635 = vst [vmem:[#allocation2 + $0x88] sm:$0xff] %v603
        %636 = vst [vmem:[#allocation2 + $0x90] sm:$0xff] %v604
        %637 = vst [vmem:[#allocation2 + $0x98] sm:$0xff] %v605
        %638 = vst [vmem:[#allocation2 + $0xa0] sm:$0xff] %v606
        %639 = vst [vmem:[#allocation2 + $0xa8] sm:$0xff] %v607
        %640 = vst [vmem:[#allocation2 + $0xb0] sm:$0xff] %v608
        %641 = vst [vmem:[#allocation2 + $0xb8] sm:$0xff] %v609
        %642 = vst [vmem:[#allocation2 + $0xc0] sm:$0xff] %v610
        %643 = vst [vmem:[#allocation2 + $0xc8] sm:$0xff] %v611
        %644 = vst [vmem:[#allocation2 + $0xd0] sm:$0xff] %v612
        %645 = vst [vmem:[#allocation2 + $0xd8] sm:$0xff] %v613
        %646 = vst [vmem:[#allocation2 + $0xe0] sm:$0xff] %v614
        %647 = vst [vmem:[#allocation2 + $0xe8] sm:$0xff] %v615
        %648 = vst [vmem:[#allocation2 + $0xf0] sm:$0xff] %v616
        %649 = vst [vmem:[#allocation2 + $0xf8] sm:$0xff] %v617
        %v650 = vld [vmem:[%s226] sm:$0xf]
        %v651 = vld [vmem:[%s226 + $0x4] sm:$0xf]
        %v652 = vld [vmem:[%s226 + $0x8] sm:$0x1]
        %v653 = vld [vmem:[%s226 + $0xc] sm:$0xf]
        %v654 = vld [vmem:[%s226 + $0x10] sm:$0xf]
        %v655 = vld [vmem:[%s226 + $0x14] sm:$0x1]
        %v656 = vld [vmem:[%s226 + $0x18] sm:$0xf]
        %v657 = vld [vmem:[%s226 + $0x1c] sm:$0xf]
        %v658 = vld [vmem:[%s226 + $0x20] sm:$0x1]
        %v659 = vld [vmem:[%s226 + $0x24] sm:$0xf]
        %v660 = vld [vmem:[%s226 + $0x28] sm:$0xf]
        %v661 = vld [vmem:[%s226 + $0x2c] sm:$0x1]
        %v662 = vld [vmem:[%s226 + $0x30] sm:$0xf]
        %v663 = vld [vmem:[%s226 + $0x34] sm:$0xf]
        %v664 = vld [vmem:[%s226 + $0x38] sm:$0x1]
        %v665 = vld [vmem:[%s226 + $0x3c] sm:$0xf]
        %v666 = vld [vmem:[%s226 + $0x40] sm:$0xf]
        %v667 = vld [vmem:[%s226 + $0x44] sm:$0x1]
        %v668 = vld [vmem:[%s226 + $0x48] sm:$0xf]
        %v669 = vld [vmem:[%s226 + $0x4c] sm:$0xf]
        %v670 = vld [vmem:[%s226 + $0x50] sm:$0x1]
        %v671 = vld [vmem:[%s226 + $0x54] sm:$0xf]
        %v672 = vld [vmem:[%s226 + $0x58] sm:$0xf]
        %v673 = vld [vmem:[%s226 + $0x5c] sm:$0x1]
        %v674 = vld [vmem:[%s226 + $0x60] sm:$0xf]
        %v675 = vld [vmem:[%s226 + $0x64] sm:$0xf]
        %v676 = vld [vmem:[%s226 + $0x68] sm:$0x1]
        %v677 = vld [vmem:[%s226 + $0x6c] sm:$0xf]
        %v678 = vld [vmem:[%s226 + $0x70] sm:$0xf]
        %v679 = vld [vmem:[%s226 + $0x74] sm:$0x1]
        %v680 = vld [vmem:[%s226 + $0x78] sm:$0xf]
        %v681 = vld [vmem:[%s226 + $0x7c] sm:$0xf]
        %v682 = vld [vmem:[%s226 + $0x80] sm:$0x1]
        %v683 = vld [vmem:[%s226 + $0x84] sm:$0xf]
        %v684 = vld [vmem:[%s226 + $0x88] sm:$0xf]
        %v685 = vld [vmem:[%s226 + $0x8c] sm:$0x1]
        %v686 = vld [vmem:[%s226 + $0x90] sm:$0xf]
        %v687 = vld [vmem:[%s226 + $0x94] sm:$0xf]
        %v688 = vld [vmem:[%s226 + $0x98] sm:$0x1]
        %v689 = vld [vmem:[%s226 + $0x9c] sm:$0xf]
        %v690 = vld [vmem:[%s226 + $0xa0] sm:$0xf]
        %v691 = vld [vmem:[%s226 + $0xa4] sm:$0x1]
        %v692 = vld [vmem:[%s226 + $0xa8] sm:$0xf]
        %v693 = vld [vmem:[%s226 + $0xac] sm:$0xf]
        %v694 = vld [vmem:[%s226 + $0xb0] sm:$0x1]
        %v695 = vld [vmem:[%s226 + $0xb4] sm:$0xf]
        %v696 = vld [vmem:[%s226 + $0xb8] sm:$0xf]
        %v697 = vld [vmem:[%s226 + $0xbc] sm:$0x1]
        %vm698 = vsmask.f32 3328
        %vm699 = vsmask.f32 7440
        %vm700 = vmor %vm698, %vm699
        %v702 = vshrl.u32 %v650, 16
        %v704 = vrot.slane %v702, 4
        %v705 = vshll.u32 %v650, 16
        %v707 = vrot.slane %v705, 5
        %v708 = vor.u32 %v704, %v707
        %v709 = vrot.slane %v708, 4
        %v711 = vshll.u32 %v651, 16
        %v713 = vrot.slane %v711, 5
        %v714 = vsel %vm700, %v709, %v713
        %v715 = vshrl.u32 %v651, 16
        %v717 = vrot.slane %v715, 4
        %v718 = vor.u32 %v717, %v713
        %v719 = vrot.slane %v718, 4
        %v721 = vshll.u32 %v652, 16
        %v723 = vrot.slane %v721, 5
        %v724 = vsel %vm700, %v719, %v723
        %v726 = vshrl.u32 %v653, 16
        %v728 = vrot.slane %v726, 4
        %v729 = vshll.u32 %v653, 16
        %v731 = vrot.slane %v729, 5
        %v732 = vor.u32 %v728, %v731
        %v733 = vrot.slane %v732, 4
        %v735 = vshll.u32 %v654, 16
        %v737 = vrot.slane %v735, 5
        %v738 = vsel %vm700, %v733, %v737
        %v739 = vshrl.u32 %v654, 16
        %v741 = vrot.slane %v739, 4
        %v742 = vor.u32 %v741, %v737
        %v743 = vrot.slane %v742, 4
        %v745 = vshll.u32 %v655, 16
        %v747 = vrot.slane %v745, 5
        %v748 = vsel %vm700, %v743, %v747
        %v750 = vshrl.u32 %v656, 16
        %v752 = vrot.slane %v750, 4
        %v753 = vshll.u32 %v656, 16
        %v755 = vrot.slane %v753, 5
        %v756 = vor.u32 %v752, %v755
        %v757 = vrot.slane %v756, 4
        %v759 = vshll.u32 %v657, 16
        %v761 = vrot.slane %v759, 5
        %v762 = vsel %vm700, %v757, %v761
        %v763 = vshrl.u32 %v657, 16
        %v765 = vrot.slane %v763, 4
        %v766 = vor.u32 %v765, %v761
        %v767 = vrot.slane %v766, 4
        %v769 = vshll.u32 %v658, 16
        %v771 = vrot.slane %v769, 5
        %v772 = vsel %vm700, %v767, %v771
        %v774 = vshrl.u32 %v659, 16
        %v776 = vrot.slane %v774, 4
        %v777 = vshll.u32 %v659, 16
        %v779 = vrot.slane %v777, 5
        %v780 = vor.u32 %v776, %v779
        %v781 = vrot.slane %v780, 4
        %v783 = vshll.u32 %v660, 16
        %v785 = vrot.slane %v783, 5
        %v786 = vsel %vm700, %v781, %v785
        %v787 = vshrl.u32 %v660, 16
        %v789 = vrot.slane %v787, 4
        %v790 = vor.u32 %v789, %v785
        %v791 = vrot.slane %v790, 4
        %v793 = vshll.u32 %v661, 16
        %v795 = vrot.slane %v793, 5
        %v796 = vsel %vm700, %v791, %v795
        %v798 = vshrl.u32 %v662, 16
        %v800 = vrot.slane %v798, 4
        %v801 = vshll.u32 %v662, 16
        %v803 = vrot.slane %v801, 5
        %v804 = vor.u32 %v800, %v803
        %v805 = vrot.slane %v804, 4
        %v807 = vshll.u32 %v663, 16
        %v809 = vrot.slane %v807, 5
        %v810 = vsel %vm700, %v805, %v809
        %v811 = vshrl.u32 %v663, 16
        %v813 = vrot.slane %v811, 4
        %v814 = vor.u32 %v813, %v809
        %v815 = vrot.slane %v814, 4
        %v817 = vshll.u32 %v664, 16
        %v819 = vrot.slane %v817, 5
        %v820 = vsel %vm700, %v815, %v819
        %v822 = vshrl.u32 %v665, 16
        %v824 = vrot.slane %v822, 4
        %v825 = vshll.u32 %v665, 16
        %v827 = vrot.slane %v825, 5
        %v828 = vor.u32 %v824, %v827
        %v829 = vrot.slane %v828, 4
        %v831 = vshll.u32 %v666, 16
        %v833 = vrot.slane %v831, 5
        %v834 = vsel %vm700, %v829, %v833
        %v835 = vshrl.u32 %v666, 16
        %v837 = vrot.slane %v835, 4
        %v838 = vor.u32 %v837, %v833
        %v839 = vrot.slane %v838, 4
        %v841 = vshll.u32 %v667, 16
        %v843 = vrot.slane %v841, 5
        %v844 = vsel %vm700, %v839, %v843
        %v846 = vshrl.u32 %v668, 16
        %v848 = vrot.slane %v846, 4
        %v849 = vshll.u32 %v668, 16
        %v851 = vrot.slane %v849, 5
        %v852 = vor.u32 %v848, %v851
        %v853 = vrot.slane %v852, 4
        %v855 = vshll.u32 %v669, 16
        %v857 = vrot.slane %v855, 5
        %v858 = vsel %vm700, %v853, %v857
        %v859 = vshrl.u32 %v669, 16
        %v861 = vrot.slane %v859, 4
        %v862 = vor.u32 %v861, %v857
        %v863 = vrot.slane %v862, 4
        %v865 = vshll.u32 %v670, 16
        %v867 = vrot.slane %v865, 5
        %v868 = vsel %vm700, %v863, %v867
        %v870 = vshrl.u32 %v671, 16
        %v872 = vrot.slane %v870, 4
        %v873 = vshll.u32 %v671, 16
        %v875 = vrot.slane %v873, 5
        %v876 = vor.u32 %v872, %v875
        %v877 = vrot.slane %v876, 4
        %v879 = vshll.u32 %v672, 16
        %v881 = vrot.slane %v879, 5
        %v882 = vsel %vm700, %v877, %v881
        %v883 = vshrl.u32 %v672, 16
        %v885 = vrot.slane %v883, 4
        %v886 = vor.u32 %v885, %v881
        %v887 = vrot.slane %v886, 4
        %v889 = vshll.u32 %v673, 16
        %v891 = vrot.slane %v889, 5
        %v892 = vsel %vm700, %v887, %v891
        %v894 = vshrl.u32 %v674, 16
        %v896 = vrot.slane %v894, 4
        %v897 = vshll.u32 %v674, 16
        %v899 = vrot.slane %v897, 5
        %v900 = vor.u32 %v896, %v899
        %v901 = vrot.slane %v900, 4
        %v903 = vshll.u32 %v675, 16
        %v905 = vrot.slane %v903, 5
        %v906 = vsel %vm700, %v901, %v905
        %v907 = vshrl.u32 %v675, 16
        %v909 = vrot.slane %v907, 4
        %v910 = vor.u32 %v909, %v905
        %v911 = vrot.slane %v910, 4
        %v913 = vshll.u32 %v676, 16
        %v915 = vrot.slane %v913, 5
        %v916 = vsel %vm700, %v911, %v915
        %v918 = vshrl.u32 %v677, 16
        %v920 = vrot.slane %v918, 4
        %v921 = vshll.u32 %v677, 16
        %v923 = vrot.slane %v921, 5
        %v924 = vor.u32 %v920, %v923
        %v925 = vrot.slane %v924, 4
        %v927 = vshll.u32 %v678, 16
        %v929 = vrot.slane %v927, 5
        %v930 = vsel %vm700, %v925, %v929
        %v931 = vshrl.u32 %v678, 16
        %v933 = vrot.slane %v931, 4
        %v934 = vor.u32 %v933, %v929
        %v935 = vrot.slane %v934, 4
        %v937 = vshll.u32 %v679, 16
        %v939 = vrot.slane %v937, 5
        %v940 = vsel %vm700, %v935, %v939
        %v942 = vshrl.u32 %v680, 16
        %v944 = vrot.slane %v942, 4
        %v945 = vshll.u32 %v680, 16
        %v947 = vrot.slane %v945, 5
        %v948 = vor.u32 %v944, %v947
        %v949 = vrot.slane %v948, 4
        %v951 = vshll.u32 %v681, 16
        %v953 = vrot.slane %v951, 5
        %v954 = vsel %vm700, %v949, %v953
        %v955 = vshrl.u32 %v681, 16
        %v957 = vrot.slane %v955, 4
        %v958 = vor.u32 %v957, %v953
        %v959 = vrot.slane %v958, 4
        %v961 = vshll.u32 %v682, 16
        %v963 = vrot.slane %v961, 5
        %v964 = vsel %vm700, %v959, %v963
        %v966 = vshrl.u32 %v683, 16
        %v968 = vrot.slane %v966, 4
        %v969 = vshll.u32 %v683, 16
        %v971 = vrot.slane %v969, 5
        %v972 = vor.u32 %v968, %v971
        %v973 = vrot.slane %v972, 4
        %v975 = vshll.u32 %v684, 16
        %v977 = vrot.slane %v975, 5
        %v978 = vsel %vm700, %v973, %v977
        %v979 = vshrl.u32 %v684, 16
        %v981 = vrot.slane %v979, 4
        %v982 = vor.u32 %v981, %v977
        %v983 = vrot.slane %v982, 4
        %v985 = vshll.u32 %v685, 16
        %v987 = vrot.slane %v985, 5
        %v988 = vsel %vm700, %v983, %v987
        %v990 = vshrl.u32 %v686, 16
        %v992 = vrot.slane %v990, 4
        %v993 = vshll.u32 %v686, 16
        %v995 = vrot.slane %v993, 5
        %v996 = vor.u32 %v992, %v995
        %v997 = vrot.slane %v996, 4
        %v999 = vshll.u32 %v687, 16
        %v1001 = vrot.slane %v999, 5
        %v1002 = vsel %vm700, %v997, %v1001
        %v1003 = vshrl.u32 %v687, 16
        %v1005 = vrot.slane %v1003, 4
        %v1006 = vor.u32 %v1005, %v1001
        %v1007 = vrot.slane %v1006, 4
        %v1009 = vshll.u32 %v688, 16
        %v1011 = vrot.slane %v1009, 5
        %v1012 = vsel %vm700, %v1007, %v1011
        %v1014 = vshrl.u32 %v689, 16
        %v1016 = vrot.slane %v1014, 4
        %v1017 = vshll.u32 %v689, 16
        %v1019 = vrot.slane %v1017, 5
        %v1020 = vor.u32 %v1016, %v1019
        %v1021 = vrot.slane %v1020, 4
        %v1023 = vshll.u32 %v690, 16
        %v1025 = vrot.slane %v1023, 5
        %v1026 = vsel %vm700, %v1021, %v1025
        %v1027 = vshrl.u32 %v690, 16
        %v1029 = vrot.slane %v1027, 4
        %v1030 = vor.u32 %v1029, %v1025
        %v1031 = vrot.slane %v1030, 4
        %v1033 = vshll.u32 %v691, 16
        %v1035 = vrot.slane %v1033, 5
        %v1036 = vsel %vm700, %v1031, %v1035
        %v1038 = vshrl.u32 %v692, 16
        %v1040 = vrot.slane %v1038, 4
        %v1041 = vshll.u32 %v692, 16
        %v1043 = vrot.slane %v1041, 5
        %v1044 = vor.u32 %v1040, %v1043
        %v1045 = vrot.slane %v1044, 4
        %v1047 = vshll.u32 %v693, 16
        %v1049 = vrot.slane %v1047, 5
        %v1050 = vsel %vm700, %v1045, %v1049
        %v1051 = vshrl.u32 %v693, 16
        %v1053 = vrot.slane %v1051, 4
        %v1054 = vor.u32 %v1053, %v1049
        %v1055 = vrot.slane %v1054, 4
        %v1057 = vshll.u32 %v694, 16
        %v1059 = vrot.slane %v1057, 5
        %v1060 = vsel %vm700, %v1055, %v1059
        %v1062 = vshrl.u32 %v695, 16
        %v1064 = vrot.slane %v1062, 4
        %v1065 = vshll.u32 %v695, 16
        %v1067 = vrot.slane %v1065, 5
        %v1068 = vor.u32 %v1064, %v1067
        %v1069 = vrot.slane %v1068, 4
        %v1071 = vshll.u32 %v696, 16
        %v1073 = vrot.slane %v1071, 5
        %v1074 = vsel %vm700, %v1069, %v1073
        %v1075 = vshrl.u32 %v696, 16
        %v1077 = vrot.slane %v1075, 4
        %v1078 = vor.u32 %v1077, %v1073
        %v1079 = vrot.slane %v1078, 4
        %v1081 = vshll.u32 %v697, 16
        %v1083 = vrot.slane %v1081, 5
        %v1084 = vsel %vm700, %v1079, %v1083
        %v1085 = vld [vmem:[#allocation2] sm:$0xff]
        %v1086 = vld [vmem:[#allocation2 + $0x8] sm:$0xff]
        %v1087 = vld [vmem:[#allocation2 + $0x10] sm:$0xff]
        %v1088 = vld [vmem:[#allocation2 + $0x18] sm:$0xff]
        %v1089 = vld [vmem:[#allocation2 + $0x20] sm:$0xff]
        %v1090 = vld [vmem:[#allocation2 + $0x28] sm:$0xff]
        %v1091 = vld [vmem:[#allocation2 + $0x30] sm:$0xff]
        %v1092 = vld [vmem:[#allocation2 + $0x38] sm:$0xff]
        %v1093 = vld [vmem:[#allocation2 + $0x40] sm:$0xff]
        %v1094 = vld [vmem:[#allocation2 + $0x48] sm:$0xff]
        %v1095 = vld [vmem:[#allocation2 + $0x50] sm:$0xff]
        %v1096 = vld [vmem:[#allocation2 + $0x58] sm:$0xff]
        %v1097 = vld [vmem:[#allocation2 + $0x60] sm:$0xff]
        %v1098 = vld [vmem:[#allocation2 + $0x68] sm:$0xff]
        %v1099 = vld [vmem:[#allocation2 + $0x70] sm:$0xff]
        %v1100 = vld [vmem:[#allocation2 + $0x78] sm:$0xff]
        %v1101 = vld [vmem:[#allocation2 + $0x80] sm:$0xff]
        %v1102 = vld [vmem:[#allocation2 + $0x88] sm:$0xff]
        %v1103 = vld [vmem:[#allocation2 + $0x90] sm:$0xff]
        %v1104 = vld [vmem:[#allocation2 + $0x98] sm:$0xff]
        %v1105 = vld [vmem:[#allocation2 + $0xa0] sm:$0xff]
        %v1106 = vld [vmem:[#allocation2 + $0xa8] sm:$0xff]
        %v1107 = vld [vmem:[#allocation2 + $0xb0] sm:$0xff]
        %v1108 = vld [vmem:[#allocation2 + $0xb8] sm:$0xff]
        %v1109 = vld [vmem:[#allocation2 + $0xc0] sm:$0xff]
        %v1110 = vld [vmem:[#allocation2 + $0xc8] sm:$0xff]
        %v1111 = vld [vmem:[#allocation2 + $0xd0] sm:$0xff]
        %v1112 = vld [vmem:[#allocation2 + $0xd8] sm:$0xff]
        %v1113 = vld [vmem:[#allocation2 + $0xe0] sm:$0xff]
        %v1114 = vld [vmem:[#allocation2 + $0xe8] sm:$0xff]
        %v1115 = vld [vmem:[#allocation2 + $0xf0] sm:$0xff]
        %v1116 = vld [vmem:[#allocation2 + $0xf8] sm:$0xff]
        %s1117 = scalar_lea.vmem %s1, 2
        %v1118 = vld [vmem:[%s1117] sm:$0x3]
        %v1119 = vunpack.c.l.b16 %v714
        %v1120 = vunpack.c.l.b16 %v724
        %v1121 = vunpack.c.l.b16 %v738
        %v1122 = vunpack.c.l.b16 %v748
        %v1123 = vunpack.c.l.b16 %v762
        %v1124 = vunpack.c.l.b16 %v772
        %v1125 = vunpack.c.l.b16 %v786
        %v1126 = vunpack.c.l.b16 %v796
        %v1127 = vunpack.c.l.b16 %v810
        %v1128 = vunpack.c.l.b16 %v820
        %v1129 = vunpack.c.l.b16 %v834
        %v1130 = vunpack.c.l.b16 %v844
        %v1131 = vunpack.c.l.b16 %v858
        %v1132 = vunpack.c.l.b16 %v868
        %v1133 = vunpack.c.l.b16 %v882
        %v1134 = vunpack.c.l.b16 %v892
        %v1135 = vunpack.c.l.b16 %v906
        %v1136 = vunpack.c.l.b16 %v916
        %v1137 = vunpack.c.l.b16 %v930
        %v1138 = vunpack.c.l.b16 %v940
        %v1139 = vunpack.c.l.b16 %v954
        %v1140 = vunpack.c.l.b16 %v964
        %v1141 = vunpack.c.l.b16 %v978
        %v1142 = vunpack.c.l.b16 %v988
        %v1143 = vunpack.c.l.b16 %v1002
        %v1144 = vunpack.c.l.b16 %v1012
        %v1145 = vunpack.c.l.b16 %v1026
        %v1146 = vunpack.c.l.b16 %v1036
        %v1147 = vunpack.c.l.b16 %v1050
        %v1148 = vunpack.c.l.b16 %v1060
        %v1149 = vunpack.c.l.b16 %v1074
        %v1150 = vunpack.c.l.b16 %v1084
        %v1151 = vpack.c.b16 %v1120, %v1119
        %v1152 = vpack.c.b16 %v1122, %v1121
        %v1153 = vpack.c.b16 %v1124, %v1123
        %v1154 = vpack.c.b16 %v1126, %v1125
        %v1155 = vpack.c.b16 %v1128, %v1127
        %v1156 = vpack.c.b16 %v1130, %v1129
        %v1157 = vpack.c.b16 %v1132, %v1131
        %v1158 = vpack.c.b16 %v1134, %v1133
        %v1159 = vpack.c.b16 %v1136, %v1135
        %v1160 = vpack.c.b16 %v1138, %v1137
        %v1161 = vpack.c.b16 %v1140, %v1139
        %v1162 = vpack.c.b16 %v1142, %v1141
        %v1163 = vpack.c.b16 %v1144, %v1143
        %v1164 = vpack.c.b16 %v1146, %v1145
        %v1165 = vpack.c.b16 %v1148, %v1147
        %v1166 = vpack.c.b16 %v1150, %v1149
        %v1168 = vsel %vm372, %v1151, 0
        %v1171 = vsel %vm372, %v1152, 0
        %v1174 = vsel %vm372, %v1153, 0
        %v1177 = vsel %vm372, %v1154, 0
        %v1180 = vsel %vm372, %v1155, 0
        %v1183 = vsel %vm372, %v1156, 0
        %v1186 = vsel %vm372, %v1157, 0
        %v1189 = vsel %vm372, %v1158, 0
        %v1192 = vsel %vm372, %v1159, 0
        %v1195 = vsel %vm372, %v1160, 0
        %v1198 = vsel %vm372, %v1161, 0
        %v1201 = vsel %vm372, %v1162, 0
        %v1204 = vsel %vm372, %v1163, 0
        %v1207 = vsel %vm372, %v1164, 0
        %v1210 = vsel %vm372, %v1165, 0
        %v1213 = vsel %vm372, %v1166, 0
        %v1216 = vsel %vm421, %v1118, 0
        %1218 = vmatprep.subr.bf16.mxu0 0
        %1219 = vmatpush1.bf16.msra.mxu0 0
        %1220 = vmatprep.subr.bf16.mxu0 0
        %1221 = vmatpush1.bf16.msra.mxu0 0
        %1222 = vmatprep.subr.bf16.mxu0 0
        %1223 = vmatpush1.bf16.msra.mxu0 0
        %1224 = vmatprep.subr.bf16.mxu0 0
        %1225 = vmatpush1.bf16.msra.mxu0 0
        %1226 = vmatprep.subr.bf16.mxu0 0
        %1227 = vmatpush1.bf16.msra.mxu0 0
        %1228 = vmatprep.subr.bf16.mxu0 0
        %1229 = vmatpush1.bf16.msra.mxu0 0
        %1230 = vmatprep.subr.bf16.mxu0 0
        %1231 = vmatpush1.bf16.msra.mxu0 0
        %1232 = vmatprep.subr.bf16.mxu0 0
        %1233 = vmatpush1.bf16.msra.mxu0 %v1216
        %1234 = vmatprep.subr.bf16.mxu0 0
        %1235 = vmatpush2.bf16.msra.mxu0 0
        %1236 = vmatprep.subr.bf16.mxu0 0
        %1237 = vmatpush2.bf16.msra.mxu0 0
        %1238 = vmatprep.subr.bf16.mxu0 0
        %1239 = vmatpush2.bf16.msra.mxu0 0
        %1240 = vmatprep.subr.bf16.mxu0 0
        %1241 = vmatpush2.bf16.msra.mxu0 0
        %1242 = vmatprep.subr.bf16.mxu0 0
        %1243 = vmatpush2.bf16.msra.mxu0 0
        %1244 = vmatprep.subr.bf16.mxu0 0
        %1245 = vmatpush2.bf16.msra.mxu0 0
        %1246 = vmatprep.subr.bf16.mxu0 0
        %1247 = vmatpush2.bf16.msra.mxu0 0
        %1248 = vmatprep.subr.bf16.mxu0 0
        %1249 = vmatpush2.bf16.msra.mxu0 0
        %1250 = vmatprep.mubr.bf16.mxu0 0
        %1251 = vmatmul.mubr.bf16.gmra.mxu0 %v1168
        %v1252 = vpop.f32.mrf.mxu0
        %v1253 = vadd.f32 0.0, %v1252
        %v1254 = vpop.f32.mrf.mxu0
        %v1255 = vpop.f32.mrf.mxu0
        %v1256 = vadd.f32 0.0, %v1255
        %v1257 = vpop.f32.mrf.mxu0
        %1258 = vmatprep.mubr.bf16.mxu0 0
        %1259 = vmatmul.mubr.bf16.gmra.mxu0 %v1171
        %v1260 = vpop.f32.mrf.mxu0
        %v1261 = vadd.f32 0.0, %v1260
        %v1262 = vpop.f32.mrf.mxu0
        %v1263 = vpop.f32.mrf.mxu0
        %v1264 = vadd.f32 0.0, %v1263
        %v1265 = vpop.f32.mrf.mxu0
        %1266 = vmatprep.mubr.bf16.mxu0 0
        %1267 = vmatmul.mubr.bf16.gmra.mxu0 %v1174
        %v1268 = vpop.f32.mrf.mxu0
        %v1269 = vadd.f32 0.0, %v1268
        %v1270 = vpop.f32.mrf.mxu0
        %v1271 = vpop.f32.mrf.mxu0
        %v1272 = vadd.f32 0.0, %v1271
        %v1273 = vpop.f32.mrf.mxu0
        %1274 = vmatprep.mubr.bf16.mxu0 0
        %1275 = vmatmul.mubr.bf16.gmra.mxu0 %v1177
        %v1276 = vpop.f32.mrf.mxu0
        %v1277 = vadd.f32 0.0, %v1276
        %v1278 = vpop.f32.mrf.mxu0
        %v1279 = vpop.f32.mrf.mxu0
        %v1280 = vadd.f32 0.0, %v1279
        %v1281 = vpop.f32.mrf.mxu0
        %1282 = vmatprep.mubr.bf16.mxu0 0
        %1283 = vmatmul.mubr.bf16.gmra.mxu0 %v1180
        %v1284 = vpop.f32.mrf.mxu0
        %v1285 = vadd.f32 0.0, %v1284
        %v1286 = vpop.f32.mrf.mxu0
        %v1287 = vpop.f32.mrf.mxu0
        %v1288 = vadd.f32 0.0, %v1287
        %v1289 = vpop.f32.mrf.mxu0
        %1290 = vmatprep.mubr.bf16.mxu0 0
        %1291 = vmatmul.mubr.bf16.gmra.mxu0 %v1183
        %v1292 = vpop.f32.mrf.mxu0
        %v1293 = vadd.f32 0.0, %v1292
        %v1294 = vpop.f32.mrf.mxu0
        %v1295 = vpop.f32.mrf.mxu0
        %v1296 = vadd.f32 0.0, %v1295
        %v1297 = vpop.f32.mrf.mxu0
        %1298 = vmatprep.mubr.bf16.mxu0 0
        %1299 = vmatmul.mubr.bf16.gmra.mxu0 %v1186
        %v1300 = vpop.f32.mrf.mxu0
        %v1301 = vadd.f32 0.0, %v1300
        %v1302 = vpop.f32.mrf.mxu0
        %v1303 = vpop.f32.mrf.mxu0
        %v1304 = vadd.f32 0.0, %v1303
        %v1305 = vpop.f32.mrf.mxu0
        %1306 = vmatprep.mubr.bf16.mxu0 0
        %1307 = vmatmul.mubr.bf16.gmra.mxu0 %v1189
        %v1308 = vpop.f32.mrf.mxu0
        %v1309 = vadd.f32 0.0, %v1308
        %v1310 = vpop.f32.mrf.mxu0
        %v1311 = vpop.f32.mrf.mxu0
        %v1312 = vadd.f32 0.0, %v1311
        %v1313 = vpop.f32.mrf.mxu0
        %1314 = vmatprep.mubr.bf16.mxu0 0
        %1315 = vmatmul.mubr.bf16.gmra.mxu0 %v1192
        %v1316 = vpop.f32.mrf.mxu0
        %v1317 = vadd.f32 0.0, %v1316
        %v1318 = vpop.f32.mrf.mxu0
        %v1319 = vpop.f32.mrf.mxu0
        %v1320 = vadd.f32 0.0, %v1319
        %v1321 = vpop.f32.mrf.mxu0
        %1322 = vmatprep.mubr.bf16.mxu0 0
        %1323 = vmatmul.mubr.bf16.gmra.mxu0 %v1195
        %v1324 = vpop.f32.mrf.mxu0
        %v1325 = vadd.f32 0.0, %v1324
        %v1326 = vpop.f32.mrf.mxu0
        %v1327 = vpop.f32.mrf.mxu0
        %v1328 = vadd.f32 0.0, %v1327
        %v1329 = vpop.f32.mrf.mxu0
        %1330 = vmatprep.mubr.bf16.mxu0 0
        %1331 = vmatmul.mubr.bf16.gmra.mxu0 %v1198
        %v1332 = vpop.f32.mrf.mxu0
        %v1333 = vadd.f32 0.0, %v1332
        %v1334 = vpop.f32.mrf.mxu0
        %v1335 = vpop.f32.mrf.mxu0
        %v1336 = vadd.f32 0.0, %v1335
        %v1337 = vpop.f32.mrf.mxu0
        %1338 = vmatprep.mubr.bf16.mxu0 0
        %1339 = vmatmul.mubr.bf16.gmra.mxu0 %v1201
        %v1340 = vpop.f32.mrf.mxu0
        %v1341 = vadd.f32 0.0, %v1340
        %v1342 = vpop.f32.mrf.mxu0
        %v1343 = vpop.f32.mrf.mxu0
        %v1344 = vadd.f32 0.0, %v1343
        %v1345 = vpop.f32.mrf.mxu0
        %1346 = vmatprep.mubr.bf16.mxu0 0
        %1347 = vmatmul.mubr.bf16.gmra.mxu0 %v1204
        %v1348 = vpop.f32.mrf.mxu0
        %v1349 = vadd.f32 0.0, %v1348
        %v1350 = vpop.f32.mrf.mxu0
        %v1351 = vpop.f32.mrf.mxu0
        %v1352 = vadd.f32 0.0, %v1351
        %v1353 = vpop.f32.mrf.mxu0
        %1354 = vmatprep.mubr.bf16.mxu0 0
        %1355 = vmatmul.mubr.bf16.gmra.mxu0 %v1207
        %v1356 = vpop.f32.mrf.mxu0
        %v1357 = vadd.f32 0.0, %v1356
        %v1358 = vpop.f32.mrf.mxu0
        %v1359 = vpop.f32.mrf.mxu0
        %v1360 = vadd.f32 0.0, %v1359
        %v1361 = vpop.f32.mrf.mxu0
        %1362 = vmatprep.mubr.bf16.mxu0 0
        %1363 = vmatmul.mubr.bf16.gmra.mxu0 %v1210
        %v1364 = vpop.f32.mrf.mxu0
        %v1365 = vadd.f32 0.0, %v1364
        %v1366 = vpop.f32.mrf.mxu0
        %v1367 = vpop.f32.mrf.mxu0
        %v1368 = vadd.f32 0.0, %v1367
        %v1369 = vpop.f32.mrf.mxu0
        %1370 = vmatprep.mubr.bf16.mxu0 0
        %1371 = vmatmul.mubr.bf16.gmra.mxu0 %v1213
        %v1372 = vpop.f32.mrf.mxu0
        %v1373 = vadd.f32 0.0, %v1372
        %v1374 = vpop.f32.mrf.mxu0
        %v1375 = vpop.f32.mrf.mxu0
        %v1376 = vadd.f32 0.0, %v1375
        %v1377 = vpop.f32.mrf.mxu0
        %1378 = vdwg.mxu0
        %v1379 = vadd.f32 %v1085, %v1253
        %v1380 = vadd.f32 %v1086, %v1256
        %v1381 = vadd.f32 %v1087, %v1261
        %v1382 = vadd.f32 %v1088, %v1264
        %v1383 = vadd.f32 %v1089, %v1269
        %v1384 = vadd.f32 %v1090, %v1272
        %v1385 = vadd.f32 %v1091, %v1277
        %v1386 = vadd.f32 %v1092, %v1280
        %v1387 = vadd.f32 %v1093, %v1285
        %v1388 = vadd.f32 %v1094, %v1288
        %v1389 = vadd.f32 %v1095, %v1293
        %v1390 = vadd.f32 %v1096, %v1296
        %v1391 = vadd.f32 %v1097, %v1301
        %v1392 = vadd.f32 %v1098, %v1304
        %v1393 = vadd.f32 %v1099, %v1309
        %v1394 = vadd.f32 %v1100, %v1312
        %v1395 = vadd.f32 %v1101, %v1317
        %v1396 = vadd.f32 %v1102, %v1320
        %v1397 = vadd.f32 %v1103, %v1325
        %v1398 = vadd.f32 %v1104, %v1328
        %v1399 = vadd.f32 %v1105, %v1333
        %v1400 = vadd.f32 %v1106, %v1336
        %v1401 = vadd.f32 %v1107, %v1341
        %v1402 = vadd.f32 %v1108, %v1344
        %v1403 = vadd.f32 %v1109, %v1349
        %v1404 = vadd.f32 %v1110, %v1352
        %v1405 = vadd.f32 %v1111, %v1357
        %v1406 = vadd.f32 %v1112, %v1360
        %v1407 = vadd.f32 %v1113, %v1365
        %v1408 = vadd.f32 %v1114, %v1368
        %v1409 = vadd.f32 %v1115, %v1373
        %v1410 = vadd.f32 %v1116, %v1376
        %1411 = vst [vmem:[#allocation2] sm:$0xff] %v1379
        %1412 = vst [vmem:[#allocation2 + $0x8] sm:$0xff] %v1380
        %1413 = vst [vmem:[#allocation2 + $0x10] sm:$0xff] %v1381
        %1414 = vst [vmem:[#allocation2 + $0x18] sm:$0xff] %v1382
        %1415 = vst [vmem:[#allocation2 + $0x20] sm:$0xff] %v1383
        %1416 = vst [vmem:[#allocation2 + $0x28] sm:$0xff] %v1384
        %1417 = vst [vmem:[#allocation2 + $0x30] sm:$0xff] %v1385
        %1418 = vst [vmem:[#allocation2 + $0x38] sm:$0xff] %v1386
        %1419 = vst [vmem:[#allocation2 + $0x40] sm:$0xff] %v1387
        %1420 = vst [vmem:[#allocation2 + $0x48] sm:$0xff] %v1388
        %1421 = vst [vmem:[#allocation2 + $0x50] sm:$0xff] %v1389
        %1422 = vst [vmem:[#allocation2 + $0x58] sm:$0xff] %v1390
        %1423 = vst [vmem:[#allocation2 + $0x60] sm:$0xff] %v1391
        %1424 = vst [vmem:[#allocation2 + $0x68] sm:$0xff] %v1392
        %1425 = vst [vmem:[#allocation2 + $0x70] sm:$0xff] %v1393
        %1426 = vst [vmem:[#allocation2 + $0x78] sm:$0xff] %v1394
        %1427 = vst [vmem:[#allocation2 + $0x80] sm:$0xff] %v1395
        %1428 = vst [vmem:[#allocation2 + $0x88] sm:$0xff] %v1396
        %1429 = vst [vmem:[#allocation2 + $0x90] sm:$0xff] %v1397
        %1430 = vst [vmem:[#allocation2 + $0x98] sm:$0xff] %v1398
        %1431 = vst [vmem:[#allocation2 + $0xa0] sm:$0xff] %v1399
        %1432 = vst [vmem:[#allocation2 + $0xa8] sm:$0xff] %v1400
        %1433 = vst [vmem:[#allocation2 + $0xb0] sm:$0xff] %v1401
        %1434 = vst [vmem:[#allocation2 + $0xb8] sm:$0xff] %v1402
        %1435 = vst [vmem:[#allocation2 + $0xc0] sm:$0xff] %v1403
        %1436 = vst [vmem:[#allocation2 + $0xc8] sm:$0xff] %v1404
        %1437 = vst [vmem:[#allocation2 + $0xd0] sm:$0xff] %v1405
        %1438 = vst [vmem:[#allocation2 + $0xd8] sm:$0xff] %v1406
        %1439 = vst [vmem:[#allocation2 + $0xe0] sm:$0xff] %v1407
        %1440 = vst [vmem:[#allocation2 + $0xe8] sm:$0xff] %v1408
        %1441 = vst [vmem:[#allocation2 + $0xf0] sm:$0xff] %v1409
        %1442 = vst [vmem:[#allocation2 + $0xf8] sm:$0xff] %v1410
        %v1443 = vld [vmem:[%s226] sm:$0xe]
        %v1444 = vld [vmem:[%s226 + $0x4] sm:$0xf]
        %v1445 = vld [vmem:[%s226 + $0x8] sm:$0x1]
        %v1446 = vld [vmem:[%s226 + $0xc] sm:$0xe]
        %v1447 = vld [vmem:[%s226 + $0x10] sm:$0xf]
        %v1448 = vld [vmem:[%s226 + $0x14] sm:$0x1]
        %v1449 = vld [vmem:[%s226 + $0x18] sm:$0xe]
        %v1450 = vld [vmem:[%s226 + $0x1c] sm:$0xf]
        %v1451 = vld [vmem:[%s226 + $0x20] sm:$0x1]
        %v1452 = vld [vmem:[%s226 + $0x24] sm:$0xe]
        %v1453 = vld [vmem:[%s226 + $0x28] sm:$0xf]
        %v1454 = vld [vmem:[%s226 + $0x2c] sm:$0x1]
        %v1455 = vld [vmem:[%s226 + $0x30] sm:$0xe]
        %v1456 = vld [vmem:[%s226 + $0x34] sm:$0xf]
        %v1457 = vld [vmem:[%s226 + $0x38] sm:$0x1]
        %v1458 = vld [vmem:[%s226 + $0x3c] sm:$0xe]
        %v1459 = vld [vmem:[%s226 + $0x40] sm:$0xf]
        %v1460 = vld [vmem:[%s226 + $0x44] sm:$0x1]
        %v1461 = vld [vmem:[%s226 + $0x48] sm:$0xe]
        %v1462 = vld [vmem:[%s226 + $0x4c] sm:$0xf]
        %v1463 = vld [vmem:[%s226 + $0x50] sm:$0x1]
        %v1464 = vld [vmem:[%s226 + $0x54] sm:$0xe]
        %v1465 = vld [vmem:[%s226 + $0x58] sm:$0xf]
        %v1466 = vld [vmem:[%s226 + $0x5c] sm:$0x1]
        %v1467 = vld [vmem:[%s226 + $0x60] sm:$0xe]
        %v1468 = vld [vmem:[%s226 + $0x64] sm:$0xf]
        %v1469 = vld [vmem:[%s226 + $0x68] sm:$0x1]
        %v1470 = vld [vmem:[%s226 + $0x6c] sm:$0xe]
        %v1471 = vld [vmem:[%s226 + $0x70] sm:$0xf]
        %v1472 = vld [vmem:[%s226 + $0x74] sm:$0x1]
        %v1473 = vld [vmem:[%s226 + $0x78] sm:$0xe]
        %v1474 = vld [vmem:[%s226 + $0x7c] sm:$0xf]
        %v1475 = vld [vmem:[%s226 + $0x80] sm:$0x1]
        %v1476 = vld [vmem:[%s226 + $0x84] sm:$0xe]
        %v1477 = vld [vmem:[%s226 + $0x88] sm:$0xf]
        %v1478 = vld [vmem:[%s226 + $0x8c] sm:$0x1]
        %v1479 = vld [vmem:[%s226 + $0x90] sm:$0xe]
        %v1480 = vld [vmem:[%s226 + $0x94] sm:$0xf]
        %v1481 = vld [vmem:[%s226 + $0x98] sm:$0x1]
        %v1482 = vld [vmem:[%s226 + $0x9c] sm:$0xe]
        %v1483 = vld [vmem:[%s226 + $0xa0] sm:$0xf]
        %v1484 = vld [vmem:[%s226 + $0xa4] sm:$0x1]
        %v1485 = vld [vmem:[%s226 + $0xa8] sm:$0xe]
        %v1486 = vld [vmem:[%s226 + $0xac] sm:$0xf]
        %v1487 = vld [vmem:[%s226 + $0xb0] sm:$0x1]
        %v1488 = vld [vmem:[%s226 + $0xb4] sm:$0xe]
        %v1489 = vld [vmem:[%s226 + $0xb8] sm:$0xf]
        %v1490 = vld [vmem:[%s226 + $0xbc] sm:$0x1]
        %vm1539 = vcmask 1042432
        %vm1540 = vcmask 1046532
        %vm1541 = vmor %vm1539, %vm1540
        %v1542 = vrot.slane %v1443, 5
        %v1543 = vrot.slane %v1542, 4
        %v1544 = vrot.slane %v1444, 5
        %v1545 = vsel %vm1541, %v1543, %v1544
        %v1546 = vrot.slane %v1544, 4
        %v1547 = vrot.slane %v1445, 5
        %v1548 = vsel %vm1541, %v1546, %v1547
        %v1549 = vrot.slane %v1446, 5
        %v1550 = vrot.slane %v1549, 4
        %v1551 = vrot.slane %v1447, 5
        %v1552 = vsel %vm1541, %v1550, %v1551
        %v1553 = vrot.slane %v1551, 4
        %v1554 = vrot.slane %v1448, 5
        %v1555 = vsel %vm1541, %v1553, %v1554
        %v1556 = vrot.slane %v1449, 5
        %v1557 = vrot.slane %v1556, 4
        %v1558 = vrot.slane %v1450, 5
        %v1559 = vsel %vm1541, %v1557, %v1558
        %v1560 = vrot.slane %v1558, 4
        %v1561 = vrot.slane %v1451, 5
        %v1562 = vsel %vm1541, %v1560, %v1561
        %v1563 = vrot.slane %v1452, 5
        %v1564 = vrot.slane %v1563, 4
        %v1565 = vrot.slane %v1453, 5
        %v1566 = vsel %vm1541, %v1564, %v1565
        %v1567 = vrot.slane %v1565, 4
        %v1568 = vrot.slane %v1454, 5
        %v1569 = vsel %vm1541, %v1567, %v1568
        %v1570 = vrot.slane %v1455, 5
        %v1571 = vrot.slane %v1570, 4
        %v1572 = vrot.slane %v1456, 5
        %v1573 = vsel %vm1541, %v1571, %v1572
        %v1574 = vrot.slane %v1572, 4
        %v1575 = vrot.slane %v1457, 5
        %v1576 = vsel %vm1541, %v1574, %v1575
        %v1577 = vrot.slane %v1458, 5
        %v1578 = vrot.slane %v1577, 4
        %v1579 = vrot.slane %v1459, 5
        %v1580 = vsel %vm1541, %v1578, %v1579
        %v1581 = vrot.slane %v1579, 4
        %v1582 = vrot.slane %v1460, 5
        %v1583 = vsel %vm1541, %v1581, %v1582
        %v1584 = vrot.slane %v1461, 5
        %v1585 = vrot.slane %v1584, 4
        %v1586 = vrot.slane %v1462, 5
        %v1587 = vsel %vm1541, %v1585, %v1586
        %v1588 = vrot.slane %v1586, 4
        %v1589 = vrot.slane %v1463, 5
        %v1590 = vsel %vm1541, %v1588, %v1589
        %v1591 = vrot.slane %v1464, 5
        %v1592 = vrot.slane %v1591, 4
        %v1593 = vrot.slane %v1465, 5
        %v1594 = vsel %vm1541, %v1592, %v1593
        %v1595 = vrot.slane %v1593, 4
        %v1596 = vrot.slane %v1466, 5
        %v1597 = vsel %vm1541, %v1595, %v1596
        %v1598 = vrot.slane %v1467, 5
        %v1599 = vrot.slane %v1598, 4
        %v1600 = vrot.slane %v1468, 5
        %v1601 = vsel %vm1541, %v1599, %v1600
        %v1602 = vrot.slane %v1600, 4
        %v1603 = vrot.slane %v1469, 5
        %v1604 = vsel %vm1541, %v1602, %v1603
        %v1605 = vrot.slane %v1470, 5
        %v1606 = vrot.slane %v1605, 4
        %v1607 = vrot.slane %v1471, 5
        %v1608 = vsel %vm1541, %v1606, %v1607
        %v1609 = vrot.slane %v1607, 4
        %v1610 = vrot.slane %v1472, 5
        %v1611 = vsel %vm1541, %v1609, %v1610
        %v1612 = vrot.slane %v1473, 5
        %v1613 = vrot.slane %v1612, 4
        %v1614 = vrot.slane %v1474, 5
        %v1615 = vsel %vm1541, %v1613, %v1614
        %v1616 = vrot.slane %v1614, 4
        %v1617 = vrot.slane %v1475, 5
        %v1618 = vsel %vm1541, %v1616, %v1617
        %v1619 = vrot.slane %v1476, 5
        %v1620 = vrot.slane %v1619, 4
        %v1621 = vrot.slane %v1477, 5
        %v1622 = vsel %vm1541, %v1620, %v1621
        %v1623 = vrot.slane %v1621, 4
        %v1624 = vrot.slane %v1478, 5
        %v1625 = vsel %vm1541, %v1623, %v1624
        %v1626 = vrot.slane %v1479, 5
        %v1627 = vrot.slane %v1626, 4
        %v1628 = vrot.slane %v1480, 5
        %v1629 = vsel %vm1541, %v1627, %v1628
        %v1630 = vrot.slane %v1628, 4
        %v1631 = vrot.slane %v1481, 5
        %v1632 = vsel %vm1541, %v1630, %v1631
        %v1633 = vrot.slane %v1482, 5
        %v1634 = vrot.slane %v1633, 4
        %v1635 = vrot.slane %v1483, 5
        %v1636 = vsel %vm1541, %v1634, %v1635
        %v1637 = vrot.slane %v1635, 4
        %v1638 = vrot.slane %v1484, 5
        %v1639 = vsel %vm1541, %v1637, %v1638
        %v1640 = vrot.slane %v1485, 5
        %v1641 = vrot.slane %v1640, 4
        %v1642 = vrot.slane %v1486, 5
        %v1643 = vsel %vm1541, %v1641, %v1642
        %v1644 = vrot.slane %v1642, 4
        %v1645 = vrot.slane %v1487, 5
        %v1646 = vsel %vm1541, %v1644, %v1645
        %v1647 = vrot.slane %v1488, 5
        %v1648 = vrot.slane %v1647, 4
        %v1649 = vrot.slane %v1489, 5
        %v1650 = vsel %vm1541, %v1648, %v1649
        %v1651 = vrot.slane %v1649, 4
        %v1652 = vrot.slane %v1490, 5
        %v1653 = vsel %vm1541, %v1651, %v1652
        %v1654 = vld [vmem:[#allocation2] sm:$0xff]
        %v1655 = vld [vmem:[#allocation2 + $0x8] sm:$0xff]
        %v1656 = vld [vmem:[#allocation2 + $0x10] sm:$0xff]
        %v1657 = vld [vmem:[#allocation2 + $0x18] sm:$0xff]
        %v1658 = vld [vmem:[#allocation2 + $0x20] sm:$0xff]
        %v1659 = vld [vmem:[#allocation2 + $0x28] sm:$0xff]
        %v1660 = vld [vmem:[#allocation2 + $0x30] sm:$0xff]
        %v1661 = vld [vmem:[#allocation2 + $0x38] sm:$0xff]
        %v1662 = vld [vmem:[#allocation2 + $0x40] sm:$0xff]
        %v1663 = vld [vmem:[#allocation2 + $0x48] sm:$0xff]
        %v1664 = vld [vmem:[#allocation2 + $0x50] sm:$0xff]
        %v1665 = vld [vmem:[#allocation2 + $0x58] sm:$0xff]
        %v1666 = vld [vmem:[#allocation2 + $0x60] sm:$0xff]
        %v1667 = vld [vmem:[#allocation2 + $0x68] sm:$0xff]
        %v1668 = vld [vmem:[#allocation2 + $0x70] sm:$0xff]
        %v1669 = vld [vmem:[#allocation2 + $0x78] sm:$0xff]
        %v1670 = vld [vmem:[#allocation2 + $0x80] sm:$0xff]
        %v1671 = vld [vmem:[#allocation2 + $0x88] sm:$0xff]
        %v1672 = vld [vmem:[#allocation2 + $0x90] sm:$0xff]
        %v1673 = vld [vmem:[#allocation2 + $0x98] sm:$0xff]
        %v1674 = vld [vmem:[#allocation2 + $0xa0] sm:$0xff]
        %v1675 = vld [vmem:[#allocation2 + $0xa8] sm:$0xff]
        %v1676 = vld [vmem:[#allocation2 + $0xb0] sm:$0xff]
        %v1677 = vld [vmem:[#allocation2 + $0xb8] sm:$0xff]
        %v1678 = vld [vmem:[#allocation2 + $0xc0] sm:$0xff]
        %v1679 = vld [vmem:[#allocation2 + $0xc8] sm:$0xff]
        %v1680 = vld [vmem:[#allocation2 + $0xd0] sm:$0xff]
        %v1681 = vld [vmem:[#allocation2 + $0xd8] sm:$0xff]
        %v1682 = vld [vmem:[#allocation2 + $0xe0] sm:$0xff]
        %v1683 = vld [vmem:[#allocation2 + $0xe8] sm:$0xff]
        %v1684 = vld [vmem:[#allocation2 + $0xf0] sm:$0xff]
        %v1685 = vld [vmem:[#allocation2 + $0xf8] sm:$0xff]
        %s1686 = scalar_lea.vmem %s1, 4
        %v1687 = vld [vmem:[%s1686] sm:$0x3]
        %v1688 = vunpack.c.l.b16 %v1545
        %v1689 = vunpack.c.l.b16 %v1548
        %v1690 = vunpack.c.l.b16 %v1552
        %v1691 = vunpack.c.l.b16 %v1555
        %v1692 = vunpack.c.l.b16 %v1559
        %v1693 = vunpack.c.l.b16 %v1562
        %v1694 = vunpack.c.l.b16 %v1566
        %v1695 = vunpack.c.l.b16 %v1569
        %v1696 = vunpack.c.l.b16 %v1573
        %v1697 = vunpack.c.l.b16 %v1576
        %v1698 = vunpack.c.l.b16 %v1580
        %v1699 = vunpack.c.l.b16 %v1583
        %v1700 = vunpack.c.l.b16 %v1587
        %v1701 = vunpack.c.l.b16 %v1590
        %v1702 = vunpack.c.l.b16 %v1594
        %v1703 = vunpack.c.l.b16 %v1597
        %v1704 = vunpack.c.l.b16 %v1601
        %v1705 = vunpack.c.l.b16 %v1604
        %v1706 = vunpack.c.l.b16 %v1608
        %v1707 = vunpack.c.l.b16 %v1611
        %v1708 = vunpack.c.l.b16 %v1615
        %v1709 = vunpack.c.l.b16 %v1618
        %v1710 = vunpack.c.l.b16 %v1622
        %v1711 = vunpack.c.l.b16 %v1625
        %v1712 = vunpack.c.l.b16 %v1629
        %v1713 = vunpack.c.l.b16 %v1632
        %v1714 = vunpack.c.l.b16 %v1636
        %v1715 = vunpack.c.l.b16 %v1639
        %v1716 = vunpack.c.l.b16 %v1643
        %v1717 = vunpack.c.l.b16 %v1646
        %v1718 = vunpack.c.l.b16 %v1650
        %v1719 = vunpack.c.l.b16 %v1653
        %v1720 = vpack.c.b16 %v1689, %v1688
        %v1721 = vpack.c.b16 %v1691, %v1690
        %v1722 = vpack.c.b16 %v1693, %v1692
        %v1723 = vpack.c.b16 %v1695, %v1694
        %v1724 = vpack.c.b16 %v1697, %v1696
        %v1725 = vpack.c.b16 %v1699, %v1698
        %v1726 = vpack.c.b16 %v1701, %v1700
        %v1727 = vpack.c.b16 %v1703, %v1702
        %v1728 = vpack.c.b16 %v1705, %v1704
        %v1729 = vpack.c.b16 %v1707, %v1706
        %v1730 = vpack.c.b16 %v1709, %v1708
        %v1731 = vpack.c.b16 %v1711, %v1710
        %v1732 = vpack.c.b16 %v1713, %v1712
        %v1733 = vpack.c.b16 %v1715, %v1714
        %v1734 = vpack.c.b16 %v1717, %v1716
        %v1735 = vpack.c.b16 %v1719, %v1718
        %v1737 = vsel %vm372, %v1720, 0
        %v1740 = vsel %vm372, %v1721, 0
        %v1743 = vsel %vm372, %v1722, 0
        %v1746 = vsel %vm372, %v1723, 0
        %v1749 = vsel %vm372, %v1724, 0
        %v1752 = vsel %vm372, %v1725, 0
        %v1755 = vsel %vm372, %v1726, 0
        %v1758 = vsel %vm372, %v1727, 0
        %v1761 = vsel %vm372, %v1728, 0
        %v1764 = vsel %vm372, %v1729, 0
        %v1767 = vsel %vm372, %v1730, 0
        %v1770 = vsel %vm372, %v1731, 0
        %v1773 = vsel %vm372, %v1732, 0
        %v1776 = vsel %vm372, %v1733, 0
        %v1779 = vsel %vm372, %v1734, 0
        %v1782 = vsel %vm372, %v1735, 0
        %v1785 = vsel %vm421, %v1687, 0
        %1787 = vmatprep.subr.bf16.mxu0 0
        %1788 = vmatpush1.bf16.msra.mxu0 0
        %1789 = vmatprep.subr.bf16.mxu0 0
        %1790 = vmatpush1.bf16.msra.mxu0 0
        %1791 = vmatprep.subr.bf16.mxu0 0
        %1792 = vmatpush1.bf16.msra.mxu0 0
        %1793 = vmatprep.subr.bf16.mxu0 0
        %1794 = vmatpush1.bf16.msra.mxu0 0
        %1795 = vmatprep.subr.bf16.mxu0 0
        %1796 = vmatpush1.bf16.msra.mxu0 0
        %1797 = vmatprep.subr.bf16.mxu0 0
        %1798 = vmatpush1.bf16.msra.mxu0 0
        %1799 = vmatprep.subr.bf16.mxu0 0
        %1800 = vmatpush1.bf16.msra.mxu0 0
        %1801 = vmatprep.subr.bf16.mxu0 0
        %1802 = vmatpush1.bf16.msra.mxu0 %v1785
        %1803 = vmatprep.subr.bf16.mxu0 0
        %1804 = vmatpush2.bf16.msra.mxu0 0
        %1805 = vmatprep.subr.bf16.mxu0 0
        %1806 = vmatpush2.bf16.msra.mxu0 0
        %1807 = vmatprep.subr.bf16.mxu0 0
        %1808 = vmatpush2.bf16.msra.mxu0 0
        %1809 = vmatprep.subr.bf16.mxu0 0
        %1810 = vmatpush2.bf16.msra.mxu0 0
        %1811 = vmatprep.subr.bf16.mxu0 0
        %1812 = vmatpush2.bf16.msra.mxu0 0
        %1813 = vmatprep.subr.bf16.mxu0 0
        %1814 = vmatpush2.bf16.msra.mxu0 0
        %1815 = vmatprep.subr.bf16.mxu0 0
        %1816 = vmatpush2.bf16.msra.mxu0 0
        %1817 = vmatprep.subr.bf16.mxu0 0
        %1818 = vmatpush2.bf16.msra.mxu0 0
        %1819 = vmatprep.mubr.bf16.mxu0 0
        %1820 = vmatmul.mubr.bf16.gmra.mxu0 %v1737
        %v1821 = vpop.f32.mrf.mxu0
        %v1822 = vadd.f32 0.0, %v1821
        %v1823 = vpop.f32.mrf.mxu0
        %v1824 = vpop.f32.mrf.mxu0
        %v1825 = vadd.f32 0.0, %v1824
        %v1826 = vpop.f32.mrf.mxu0
        %1827 = vmatprep.mubr.bf16.mxu0 0
        %1828 = vmatmul.mubr.bf16.gmra.mxu0 %v1740
        %v1829 = vpop.f32.mrf.mxu0
        %v1830 = vadd.f32 0.0, %v1829
        %v1831 = vpop.f32.mrf.mxu0
        %v1832 = vpop.f32.mrf.mxu0
        %v1833 = vadd.f32 0.0, %v1832
        %v1834 = vpop.f32.mrf.mxu0
        %1835 = vmatprep.mubr.bf16.mxu0 0
        %1836 = vmatmul.mubr.bf16.gmra.mxu0 %v1743
        %v1837 = vpop.f32.mrf.mxu0
        %v1838 = vadd.f32 0.0, %v1837
        %v1839 = vpop.f32.mrf.mxu0
        %v1840 = vpop.f32.mrf.mxu0
        %v1841 = vadd.f32 0.0, %v1840
        %v1842 = vpop.f32.mrf.mxu0
        %1843 = vmatprep.mubr.bf16.mxu0 0
        %1844 = vmatmul.mubr.bf16.gmra.mxu0 %v1746
        %v1845 = vpop.f32.mrf.mxu0
        %v1846 = vadd.f32 0.0, %v1845
        %v1847 = vpop.f32.mrf.mxu0
        %v1848 = vpop.f32.mrf.mxu0
        %v1849 = vadd.f32 0.0, %v1848
        %v1850 = vpop.f32.mrf.mxu0
        %1851 = vmatprep.mubr.bf16.mxu0 0
        %1852 = vmatmul.mubr.bf16.gmra.mxu0 %v1749
        %v1853 = vpop.f32.mrf.mxu0
        %v1854 = vadd.f32 0.0, %v1853
        %v1855 = vpop.f32.mrf.mxu0
        %v1856 = vpop.f32.mrf.mxu0
        %v1857 = vadd.f32 0.0, %v1856
        %v1858 = vpop.f32.mrf.mxu0
        %1859 = vmatprep.mubr.bf16.mxu0 0
        %1860 = vmatmul.mubr.bf16.gmra.mxu0 %v1752
        %v1861 = vpop.f32.mrf.mxu0
        %v1862 = vadd.f32 0.0, %v1861
        %v1863 = vpop.f32.mrf.mxu0
        %v1864 = vpop.f32.mrf.mxu0
        %v1865 = vadd.f32 0.0, %v1864
        %v1866 = vpop.f32.mrf.mxu0
        %1867 = vmatprep.mubr.bf16.mxu0 0
        %1868 = vmatmul.mubr.bf16.gmra.mxu0 %v1755
        %v1869 = vpop.f32.mrf.mxu0
        %v1870 = vadd.f32 0.0, %v1869
        %v1871 = vpop.f32.mrf.mxu0
        %v1872 = vpop.f32.mrf.mxu0
        %v1873 = vadd.f32 0.0, %v1872
        %v1874 = vpop.f32.mrf.mxu0
        %1875 = vmatprep.mubr.bf16.mxu0 0
        %1876 = vmatmul.mubr.bf16.gmra.mxu0 %v1758
        %v1877 = vpop.f32.mrf.mxu0
        %v1878 = vadd.f32 0.0, %v1877
        %v1879 = vpop.f32.mrf.mxu0
        %v1880 = vpop.f32.mrf.mxu0
        %v1881 = vadd.f32 0.0, %v1880
        %v1882 = vpop.f32.mrf.mxu0
        %1883 = vmatprep.mubr.bf16.mxu0 0
        %1884 = vmatmul.mubr.bf16.gmra.mxu0 %v1761
        %v1885 = vpop.f32.mrf.mxu0
        %v1886 = vadd.f32 0.0, %v1885
        %v1887 = vpop.f32.mrf.mxu0
        %v1888 = vpop.f32.mrf.mxu0
        %v1889 = vadd.f32 0.0, %v1888
        %v1890 = vpop.f32.mrf.mxu0
        %1891 = vmatprep.mubr.bf16.mxu0 0
        %1892 = vmatmul.mubr.bf16.gmra.mxu0 %v1764
        %v1893 = vpop.f32.mrf.mxu0
        %v1894 = vadd.f32 0.0, %v1893
        %v1895 = vpop.f32.mrf.mxu0
        %v1896 = vpop.f32.mrf.mxu0
        %v1897 = vadd.f32 0.0, %v1896
        %v1898 = vpop.f32.mrf.mxu0
        %1899 = vmatprep.mubr.bf16.mxu0 0
        %1900 = vmatmul.mubr.bf16.gmra.mxu0 %v1767
        %v1901 = vpop.f32.mrf.mxu0
        %v1902 = vadd.f32 0.0, %v1901
        %v1903 = vpop.f32.mrf.mxu0
        %v1904 = vpop.f32.mrf.mxu0
        %v1905 = vadd.f32 0.0, %v1904
        %v1906 = vpop.f32.mrf.mxu0
        %1907 = vmatprep.mubr.bf16.mxu0 0
        %1908 = vmatmul.mubr.bf16.gmra.mxu0 %v1770
        %v1909 = vpop.f32.mrf.mxu0
        %v1910 = vadd.f32 0.0, %v1909
        %v1911 = vpop.f32.mrf.mxu0
        %v1912 = vpop.f32.mrf.mxu0
        %v1913 = vadd.f32 0.0, %v1912
        %v1914 = vpop.f32.mrf.mxu0
        %1915 = vmatprep.mubr.bf16.mxu0 0
        %1916 = vmatmul.mubr.bf16.gmra.mxu0 %v1773
        %v1917 = vpop.f32.mrf.mxu0
        %v1918 = vadd.f32 0.0, %v1917
        %v1919 = vpop.f32.mrf.mxu0
        %v1920 = vpop.f32.mrf.mxu0
        %v1921 = vadd.f32 0.0, %v1920
        %v1922 = vpop.f32.mrf.mxu0
        %1923 = vmatprep.mubr.bf16.mxu0 0
        %1924 = vmatmul.mubr.bf16.gmra.mxu0 %v1776
        %v1925 = vpop.f32.mrf.mxu0
        %v1926 = vadd.f32 0.0, %v1925
        %v1927 = vpop.f32.mrf.mxu0
        %v1928 = vpop.f32.mrf.mxu0
        %v1929 = vadd.f32 0.0, %v1928
        %v1930 = vpop.f32.mrf.mxu0
        %1931 = vmatprep.mubr.bf16.mxu0 0
        %1932 = vmatmul.mubr.bf16.gmra.mxu0 %v1779
        %v1933 = vpop.f32.mrf.mxu0
        %v1934 = vadd.f32 0.0, %v1933
        %v1935 = vpop.f32.mrf.mxu0
        %v1936 = vpop.f32.mrf.mxu0
        %v1937 = vadd.f32 0.0, %v1936
        %v1938 = vpop.f32.mrf.mxu0
        %1939 = vmatprep.mubr.bf16.mxu0 0
        %1940 = vmatmul.mubr.bf16.gmra.mxu0 %v1782
        %v1941 = vpop.f32.mrf.mxu0
        %v1942 = vadd.f32 0.0, %v1941
        %v1943 = vpop.f32.mrf.mxu0
        %v1944 = vpop.f32.mrf.mxu0
        %v1945 = vadd.f32 0.0, %v1944
        %v1946 = vpop.f32.mrf.mxu0
        %1947 = vdwg.mxu0
        %v1948 = vadd.f32 %v1654, %v1822
        %v1949 = vadd.f32 %v1655, %v1825
        %v1950 = vadd.f32 %v1656, %v1830
        %v1951 = vadd.f32 %v1657, %v1833
        %v1952 = vadd.f32 %v1658, %v1838
        %v1953 = vadd.f32 %v1659, %v1841
        %v1954 = vadd.f32 %v1660, %v1846
        %v1955 = vadd.f32 %v1661, %v1849
        %v1956 = vadd.f32 %v1662, %v1854
        %v1957 = vadd.f32 %v1663, %v1857
        %v1958 = vadd.f32 %v1664, %v1862
        %v1959 = vadd.f32 %v1665, %v1865
        %v1960 = vadd.f32 %v1666, %v1870
        %v1961 = vadd.f32 %v1667, %v1873
        %v1962 = vadd.f32 %v1668, %v1878
        %v1963 = vadd.f32 %v1669, %v1881
        %v1964 = vadd.f32 %v1670, %v1886
        %v1965 = vadd.f32 %v1671, %v1889
        %v1966 = vadd.f32 %v1672, %v1894
        %v1967 = vadd.f32 %v1673, %v1897
        %v1968 = vadd.f32 %v1674, %v1902
        %v1969 = vadd.f32 %v1675, %v1905
        %v1970 = vadd.f32 %v1676, %v1910
        %v1971 = vadd.f32 %v1677, %v1913
        %v1972 = vadd.f32 %v1678, %v1918
        %v1973 = vadd.f32 %v1679, %v1921
        %v1974 = vadd.f32 %v1680, %v1926
        %v1975 = vadd.f32 %v1681, %v1929
        %v1976 = vadd.f32 %v1682, %v1934
        %v1977 = vadd.f32 %v1683, %v1937
        %v1978 = vadd.f32 %v1684, %v1942
        %v1979 = vadd.f32 %v1685, %v1945
        %1980 = vst [vmem:[#allocation2] sm:$0xff] %v1948
        %1981 = vst [vmem:[#allocation2 + $0x8] sm:$0xff] %v1949
        %1982 = vst [vmem:[#allocation2 + $0x10] sm:$0xff] %v1950
        %1983 = vst [vmem:[#allocation2 + $0x18] sm:$0xff] %v1951
        %1984 = vst [vmem:[#allocation2 + $0x20] sm:$0xff] %v1952
        %1985 = vst [vmem:[#allocation2 + $0x28] sm:$0xff] %v1953
        %1986 = vst [vmem:[#allocation2 + $0x30] sm:$0xff] %v1954
        %1987 = vst [vmem:[#allocation2 + $0x38] sm:$0xff] %v1955
        %1988 = vst [vmem:[#allocation2 + $0x40] sm:$0xff] %v1956
        %1989 = vst [vmem:[#allocation2 + $0x48] sm:$0xff] %v1957
        %1990 = vst [vmem:[#allocation2 + $0x50] sm:$0xff] %v1958
        %1991 = vst [vmem:[#allocation2 + $0x58] sm:$0xff] %v1959
        %1992 = vst [vmem:[#allocation2 + $0x60] sm:$0xff] %v1960
        %1993 = vst [vmem:[#allocation2 + $0x68] sm:$0xff] %v1961
        %1994 = vst [vmem:[#allocation2 + $0x70] sm:$0xff] %v1962
        %1995 = vst [vmem:[#allocation2 + $0x78] sm:$0xff] %v1963
        %1996 = vst [vmem:[#allocation2 + $0x80] sm:$0xff] %v1964
        %1997 = vst [vmem:[#allocation2 + $0x88] sm:$0xff] %v1965
        %1998 = vst [vmem:[#allocation2 + $0x90] sm:$0xff] %v1966
        %1999 = vst [vmem:[#allocation2 + $0x98] sm:$0xff] %v1967
        %2000 = vst [vmem:[#allocation2 + $0xa0] sm:$0xff] %v1968
        %2001 = vst [vmem:[#allocation2 + $0xa8] sm:$0xff] %v1969
        %2002 = vst [vmem:[#allocation2 + $0xb0] sm:$0xff] %v1970
        %2003 = vst [vmem:[#allocation2 + $0xb8] sm:$0xff] %v1971
        %2004 = vst [vmem:[#allocation2 + $0xc0] sm:$0xff] %v1972
        %2005 = vst [vmem:[#allocation2 + $0xc8] sm:$0xff] %v1973
        %2006 = vst [vmem:[#allocation2 + $0xd0] sm:$0xff] %v1974
        %2007 = vst [vmem:[#allocation2 + $0xd8] sm:$0xff] %v1975
        %2008 = vst [vmem:[#allocation2 + $0xe0] sm:$0xff] %v1976
        %2009 = vst [vmem:[#allocation2 + $0xe8] sm:$0xff] %v1977
        %2010 = vst [vmem:[#allocation2 + $0xf0] sm:$0xff] %v1978
        %2011 = vst [vmem:[#allocation2 + $0xf8] sm:$0xff] %v1979
        %s2012 = sadd.s32 %s191, 1
        %s2013 = smul.u32 %s2012, 3
        %s2014 = smul.addr %s2013, 4
        %s2015 = scalar_lea.vmem %s186, %s2014
        %v2016 = vld [vmem:[%s2015] sm:$0xf]
        %v2017 = vld [vmem:[%s2015 + $0x4] sm:$0xf]
        %v2018 = vld [vmem:[%s2015 + $0xc] sm:$0xf]
        %v2019 = vld [vmem:[%s2015 + $0x10] sm:$0xf]
        %v2020 = vld [vmem:[%s2015 + $0x18] sm:$0xf]
        %v2021 = vld [vmem:[%s2015 + $0x1c] sm:$0xf]
        %v2022 = vld [vmem:[%s2015 + $0x24] sm:$0xf]
        %v2023 = vld [vmem:[%s2015 + $0x28] sm:$0xf]
        %v2024 = vld [vmem:[%s2015 + $0x30] sm:$0xf]
        %v2025 = vld [vmem:[%s2015 + $0x34] sm:$0xf]
        %v2026 = vld [vmem:[%s2015 + $0x3c] sm:$0xf]
        %v2027 = vld [vmem:[%s2015 + $0x40] sm:$0xf]
        %v2028 = vld [vmem:[%s2015 + $0x48] sm:$0xf]
        %v2029 = vld [vmem:[%s2015 + $0x4c] sm:$0xf]
        %v2030 = vld [vmem:[%s2015 + $0x54] sm:$0xf]
        %v2031 = vld [vmem:[%s2015 + $0x58] sm:$0xf]
        %v2032 = vld [vmem:[%s2015 + $0x60] sm:$0xf]
        %v2033 = vld [vmem:[%s2015 + $0x64] sm:$0xf]
        %v2034 = vld [vmem:[%s2015 + $0x6c] sm:$0xf]
        %v2035 = vld [vmem:[%s2015 + $0x70] sm:$0xf]
        %v2036 = vld [vmem:[%s2015 + $0x78] sm:$0xf]
        %v2037 = vld [vmem:[%s2015 + $0x7c] sm:$0xf]
        %v2038 = vld [vmem:[%s2015 + $0x84] sm:$0xf]
        %v2039 = vld [vmem:[%s2015 + $0x88] sm:$0xf]
        %v2040 = vld [vmem:[%s2015 + $0x90] sm:$0xf]
        %v2041 = vld [vmem:[%s2015 + $0x94] sm:$0xf]
        %v2042 = vld [vmem:[%s2015 + $0x9c] sm:$0xf]
        %v2043 = vld [vmem:[%s2015 + $0xa0] sm:$0xf]
        %v2044 = vld [vmem:[%s2015 + $0xa8] sm:$0xf]
        %v2045 = vld [vmem:[%s2015 + $0xac] sm:$0xf]
        %v2046 = vld [vmem:[%s2015 + $0xb4] sm:$0xf]
        %v2047 = vld [vmem:[%s2015 + $0xb8] sm:$0xf]
        %v2048 = vld [vmem:[#allocation2] sm:$0xff]
        %v2049 = vld [vmem:[#allocation2 + $0x8] sm:$0xff]
        %v2050 = vld [vmem:[#allocation2 + $0x10] sm:$0xff]
        %v2051 = vld [vmem:[#allocation2 + $0x18] sm:$0xff]
        %v2052 = vld [vmem:[#allocation2 + $0x20] sm:$0xff]
        %v2053 = vld [vmem:[#allocation2 + $0x28] sm:$0xff]
        %v2054 = vld [vmem:[#allocation2 + $0x30] sm:$0xff]
        %v2055 = vld [vmem:[#allocation2 + $0x38] sm:$0xff]
        %v2056 = vld [vmem:[#allocation2 + $0x40] sm:$0xff]
        %v2057 = vld [vmem:[#allocation2 + $0x48] sm:$0xff]
        %v2058 = vld [vmem:[#allocation2 + $0x50] sm:$0xff]
        %v2059 = vld [vmem:[#allocation2 + $0x58] sm:$0xff]
        %v2060 = vld [vmem:[#allocation2 + $0x60] sm:$0xff]
        %v2061 = vld [vmem:[#allocation2 + $0x68] sm:$0xff]
        %v2062 = vld [vmem:[#allocation2 + $0x70] sm:$0xff]
        %v2063 = vld [vmem:[#allocation2 + $0x78] sm:$0xff]
        %v2064 = vld [vmem:[#allocation2 + $0x80] sm:$0xff]
        %v2065 = vld [vmem:[#allocation2 + $0x88] sm:$0xff]
        %v2066 = vld [vmem:[#allocation2 + $0x90] sm:$0xff]
        %v2067 = vld [vmem:[#allocation2 + $0x98] sm:$0xff]
        %v2068 = vld [vmem:[#allocation2 + $0xa0] sm:$0xff]
        %v2069 = vld [vmem:[#allocation2 + $0xa8] sm:$0xff]
        %v2070 = vld [vmem:[#allocation2 + $0xb0] sm:$0xff]
        %v2071 = vld [vmem:[#allocation2 + $0xb8] sm:$0xff]
        %v2072 = vld [vmem:[#allocation2 + $0xc0] sm:$0xff]
        %v2073 = vld [vmem:[#allocation2 + $0xc8] sm:$0xff]
        %v2074 = vld [vmem:[#allocation2 + $0xd0] sm:$0xff]
        %v2075 = vld [vmem:[#allocation2 + $0xd8] sm:$0xff]
        %v2076 = vld [vmem:[#allocation2 + $0xe0] sm:$0xff]
        %v2077 = vld [vmem:[#allocation2 + $0xe8] sm:$0xff]
        %v2078 = vld [vmem:[#allocation2 + $0xf0] sm:$0xff]
        %v2079 = vld [vmem:[#allocation2 + $0xf8] sm:$0xff]
        %s2080 = scalar_lea.vmem %s1, 6
        %v2081 = vld [vmem:[%s2080] sm:$0x3]
        %v2114 = vunpack.c.l.b16 %v2016
        %v2115 = vunpack.c.l.b16 %v2017
        %v2116 = vunpack.c.l.b16 %v2018
        %v2117 = vunpack.c.l.b16 %v2019
        %v2118 = vunpack.c.l.b16 %v2020
        %v2119 = vunpack.c.l.b16 %v2021
        %v2120 = vunpack.c.l.b16 %v2022
        %v2121 = vunpack.c.l.b16 %v2023
        %v2122 = vunpack.c.l.b16 %v2024
        %v2123 = vunpack.c.l.b16 %v2025
        %v2124 = vunpack.c.l.b16 %v2026
        %v2125 = vunpack.c.l.b16 %v2027
        %v2126 = vunpack.c.l.b16 %v2028
        %v2127 = vunpack.c.l.b16 %v2029
        %v2128 = vunpack.c.l.b16 %v2030
        %v2129 = vunpack.c.l.b16 %v2031
        %v2130 = vunpack.c.l.b16 %v2032
        %v2131 = vunpack.c.l.b16 %v2033
        %v2132 = vunpack.c.l.b16 %v2034
        %v2133 = vunpack.c.l.b16 %v2035
        %v2134 = vunpack.c.l.b16 %v2036
        %v2135 = vunpack.c.l.b16 %v2037
        %v2136 = vunpack.c.l.b16 %v2038
        %v2137 = vunpack.c.l.b16 %v2039
        %v2138 = vunpack.c.l.b16 %v2040
        %v2139 = vunpack.c.l.b16 %v2041
        %v2140 = vunpack.c.l.b16 %v2042
        %v2141 = vunpack.c.l.b16 %v2043
        %v2142 = vunpack.c.l.b16 %v2044
        %v2143 = vunpack.c.l.b16 %v2045
        %v2144 = vunpack.c.l.b16 %v2046
        %v2145 = vunpack.c.l.b16 %v2047
        %v2146 = vpack.c.b16 %v2115, %v2114
        %v2147 = vpack.c.b16 %v2117, %v2116
        %v2148 = vpack.c.b16 %v2119, %v2118
        %v2149 = vpack.c.b16 %v2121, %v2120
        %v2150 = vpack.c.b16 %v2123, %v2122
        %v2151 = vpack.c.b16 %v2125, %v2124
        %v2152 = vpack.c.b16 %v2127, %v2126
        %v2153 = vpack.c.b16 %v2129, %v2128
        %v2154 = vpack.c.b16 %v2131, %v2130
        %v2155 = vpack.c.b16 %v2133, %v2132
        %v2156 = vpack.c.b16 %v2135, %v2134
        %v2157 = vpack.c.b16 %v2137, %v2136
        %v2158 = vpack.c.b16 %v2139, %v2138
        %v2159 = vpack.c.b16 %v2141, %v2140
        %v2160 = vpack.c.b16 %v2143, %v2142
        %v2161 = vpack.c.b16 %v2145, %v2144
        %v2163 = vsel %vm372, %v2146, 0
        %v2166 = vsel %vm372, %v2147, 0
        %v2169 = vsel %vm372, %v2148, 0
        %v2172 = vsel %vm372, %v2149, 0
        %v2175 = vsel %vm372, %v2150, 0
        %v2178 = vsel %vm372, %v2151, 0
        %v2181 = vsel %vm372, %v2152, 0
        %v2184 = vsel %vm372, %v2153, 0
        %v2187 = vsel %vm372, %v2154, 0
        %v2190 = vsel %vm372, %v2155, 0
        %v2193 = vsel %vm372, %v2156, 0
        %v2196 = vsel %vm372, %v2157, 0
        %v2199 = vsel %vm372, %v2158, 0
        %v2202 = vsel %vm372, %v2159, 0
        %v2205 = vsel %vm372, %v2160, 0
        %v2208 = vsel %vm372, %v2161, 0
        %v2211 = vsel %vm421, %v2081, 0
        %2213 = vmatprep.subr.bf16.mxu0 0
        %2214 = vmatpush1.bf16.msra.mxu0 0
        %2215 = vmatprep.subr.bf16.mxu0 0
        %2216 = vmatpush1.bf16.msra.mxu0 0
        %2217 = vmatprep.subr.bf16.mxu0 0
        %2218 = vmatpush1.bf16.msra.mxu0 0
        %2219 = vmatprep.subr.bf16.mxu0 0
        %2220 = vmatpush1.bf16.msra.mxu0 0
        %2221 = vmatprep.subr.bf16.mxu0 0
        %2222 = vmatpush1.bf16.msra.mxu0 0
        %2223 = vmatprep.subr.bf16.mxu0 0
        %2224 = vmatpush1.bf16.msra.mxu0 0
        %2225 = vmatprep.subr.bf16.mxu0 0
        %2226 = vmatpush1.bf16.msra.mxu0 0
        %2227 = vmatprep.subr.bf16.mxu0 0
        %2228 = vmatpush1.bf16.msra.mxu0 %v2211
        %2229 = vmatprep.subr.bf16.mxu0 0
        %2230 = vmatpush2.bf16.msra.mxu0 0
        %2231 = vmatprep.subr.bf16.mxu0 0
        %2232 = vmatpush2.bf16.msra.mxu0 0
        %2233 = vmatprep.subr.bf16.mxu0 0
        %2234 = vmatpush2.bf16.msra.mxu0 0
        %2235 = vmatprep.subr.bf16.mxu0 0
        %2236 = vmatpush2.bf16.msra.mxu0 0
        %2237 = vmatprep.subr.bf16.mxu0 0
        %2238 = vmatpush2.bf16.msra.mxu0 0
        %2239 = vmatprep.subr.bf16.mxu0 0
        %2240 = vmatpush2.bf16.msra.mxu0 0
        %2241 = vmatprep.subr.bf16.mxu0 0
        %2242 = vmatpush2.bf16.msra.mxu0 0
        %2243 = vmatprep.subr.bf16.mxu0 0
        %2244 = vmatpush2.bf16.msra.mxu0 0
        %2245 = vmatprep.mubr.bf16.mxu0 0
        %2246 = vmatmul.mubr.bf16.gmra.mxu0 %v2163
        %v2247 = vpop.f32.mrf.mxu0
        %v2248 = vadd.f32 0.0, %v2247
        %v2249 = vpop.f32.mrf.mxu0
        %v2250 = vpop.f32.mrf.mxu0
        %v2251 = vadd.f32 0.0, %v2250
        %v2252 = vpop.f32.mrf.mxu0
        %2253 = vmatprep.mubr.bf16.mxu0 0
        %2254 = vmatmul.mubr.bf16.gmra.mxu0 %v2166
        %v2255 = vpop.f32.mrf.mxu0
        %v2256 = vadd.f32 0.0, %v2255
        %v2257 = vpop.f32.mrf.mxu0
        %v2258 = vpop.f32.mrf.mxu0
        %v2259 = vadd.f32 0.0, %v2258
        %v2260 = vpop.f32.mrf.mxu0
        %2261 = vmatprep.mubr.bf16.mxu0 0
        %2262 = vmatmul.mubr.bf16.gmra.mxu0 %v2169
        %v2263 = vpop.f32.mrf.mxu0
        %v2264 = vadd.f32 0.0, %v2263
        %v2265 = vpop.f32.mrf.mxu0
        %v2266 = vpop.f32.mrf.mxu0
        %v2267 = vadd.f32 0.0, %v2266
        %v2268 = vpop.f32.mrf.mxu0
        %2269 = vmatprep.mubr.bf16.mxu0 0
        %2270 = vmatmul.mubr.bf16.gmra.mxu0 %v2172
        %v2271 = vpop.f32.mrf.mxu0
        %v2272 = vadd.f32 0.0, %v2271
        %v2273 = vpop.f32.mrf.mxu0
        %v2274 = vpop.f32.mrf.mxu0
        %v2275 = vadd.f32 0.0, %v2274
        %v2276 = vpop.f32.mrf.mxu0
        %2277 = vmatprep.mubr.bf16.mxu0 0
        %2278 = vmatmul.mubr.bf16.gmra.mxu0 %v2175
        %v2279 = vpop.f32.mrf.mxu0
        %v2280 = vadd.f32 0.0, %v2279
        %v2281 = vpop.f32.mrf.mxu0
        %v2282 = vpop.f32.mrf.mxu0
        %v2283 = vadd.f32 0.0, %v2282
        %v2284 = vpop.f32.mrf.mxu0
        %2285 = vmatprep.mubr.bf16.mxu0 0
        %2286 = vmatmul.mubr.bf16.gmra.mxu0 %v2178
        %v2287 = vpop.f32.mrf.mxu0
        %v2288 = vadd.f32 0.0, %v2287
        %v2289 = vpop.f32.mrf.mxu0
        %v2290 = vpop.f32.mrf.mxu0
        %v2291 = vadd.f32 0.0, %v2290
        %v2292 = vpop.f32.mrf.mxu0
        %2293 = vmatprep.mubr.bf16.mxu0 0
        %2294 = vmatmul.mubr.bf16.gmra.mxu0 %v2181
        %v2295 = vpop.f32.mrf.mxu0
        %v2296 = vadd.f32 0.0, %v2295
        %v2297 = vpop.f32.mrf.mxu0
        %v2298 = vpop.f32.mrf.mxu0
        %v2299 = vadd.f32 0.0, %v2298
        %v2300 = vpop.f32.mrf.mxu0
        %2301 = vmatprep.mubr.bf16.mxu0 0
        %2302 = vmatmul.mubr.bf16.gmra.mxu0 %v2184
        %v2303 = vpop.f32.mrf.mxu0
        %v2304 = vadd.f32 0.0, %v2303
        %v2305 = vpop.f32.mrf.mxu0
        %v2306 = vpop.f32.mrf.mxu0
        %v2307 = vadd.f32 0.0, %v2306
        %v2308 = vpop.f32.mrf.mxu0
        %2309 = vmatprep.mubr.bf16.mxu0 0
        %2310 = vmatmul.mubr.bf16.gmra.mxu0 %v2187
        %v2311 = vpop.f32.mrf.mxu0
        %v2312 = vadd.f32 0.0, %v2311
        %v2313 = vpop.f32.mrf.mxu0
        %v2314 = vpop.f32.mrf.mxu0
        %v2315 = vadd.f32 0.0, %v2314
        %v2316 = vpop.f32.mrf.mxu0
        %2317 = vmatprep.mubr.bf16.mxu0 0
        %2318 = vmatmul.mubr.bf16.gmra.mxu0 %v2190
        %v2319 = vpop.f32.mrf.mxu0
        %v2320 = vadd.f32 0.0, %v2319
        %v2321 = vpop.f32.mrf.mxu0
        %v2322 = vpop.f32.mrf.mxu0
        %v2323 = vadd.f32 0.0, %v2322
        %v2324 = vpop.f32.mrf.mxu0
        %2325 = vmatprep.mubr.bf16.mxu0 0
        %2326 = vmatmul.mubr.bf16.gmra.mxu0 %v2193
        %v2327 = vpop.f32.mrf.mxu0
        %v2328 = vadd.f32 0.0, %v2327
        %v2329 = vpop.f32.mrf.mxu0
        %v2330 = vpop.f32.mrf.mxu0
        %v2331 = vadd.f32 0.0, %v2330
        %v2332 = vpop.f32.mrf.mxu0
        %2333 = vmatprep.mubr.bf16.mxu0 0
        %2334 = vmatmul.mubr.bf16.gmra.mxu0 %v2196
        %v2335 = vpop.f32.mrf.mxu0
        %v2336 = vadd.f32 0.0, %v2335
        %v2337 = vpop.f32.mrf.mxu0
        %v2338 = vpop.f32.mrf.mxu0
        %v2339 = vadd.f32 0.0, %v2338
        %v2340 = vpop.f32.mrf.mxu0
        %2341 = vmatprep.mubr.bf16.mxu0 0
        %2342 = vmatmul.mubr.bf16.gmra.mxu0 %v2199
        %v2343 = vpop.f32.mrf.mxu0
        %v2344 = vadd.f32 0.0, %v2343
        %v2345 = vpop.f32.mrf.mxu0
        %v2346 = vpop.f32.mrf.mxu0
        %v2347 = vadd.f32 0.0, %v2346
        %v2348 = vpop.f32.mrf.mxu0
        %2349 = vmatprep.mubr.bf16.mxu0 0
        %2350 = vmatmul.mubr.bf16.gmra.mxu0 %v2202
        %v2351 = vpop.f32.mrf.mxu0
        %v2352 = vadd.f32 0.0, %v2351
        %v2353 = vpop.f32.mrf.mxu0
        %v2354 = vpop.f32.mrf.mxu0
        %v2355 = vadd.f32 0.0, %v2354
        %v2356 = vpop.f32.mrf.mxu0
        %2357 = vmatprep.mubr.bf16.mxu0 0
        %2358 = vmatmul.mubr.bf16.gmra.mxu0 %v2205
        %v2359 = vpop.f32.mrf.mxu0
        %v2360 = vadd.f32 0.0, %v2359
        %v2361 = vpop.f32.mrf.mxu0
        %v2362 = vpop.f32.mrf.mxu0
        %v2363 = vadd.f32 0.0, %v2362
        %v2364 = vpop.f32.mrf.mxu0
        %2365 = vmatprep.mubr.bf16.mxu0 0
        %2366 = vmatmul.mubr.bf16.gmra.mxu0 %v2208
        %v2367 = vpop.f32.mrf.mxu0
        %v2368 = vadd.f32 0.0, %v2367
        %v2369 = vpop.f32.mrf.mxu0
        %v2370 = vpop.f32.mrf.mxu0
        %v2371 = vadd.f32 0.0, %v2370
        %v2372 = vpop.f32.mrf.mxu0
        %2373 = vdwg.mxu0
        %v2374 = vadd.f32 %v2048, %v2248
        %v2375 = vadd.f32 %v2049, %v2251
        %v2376 = vadd.f32 %v2050, %v2256
        %v2377 = vadd.f32 %v2051, %v2259
        %v2378 = vadd.f32 %v2052, %v2264
        %v2379 = vadd.f32 %v2053, %v2267
        %v2380 = vadd.f32 %v2054, %v2272
        %v2381 = vadd.f32 %v2055, %v2275
        %v2382 = vadd.f32 %v2056, %v2280
        %v2383 = vadd.f32 %v2057, %v2283
        %v2384 = vadd.f32 %v2058, %v2288
        %v2385 = vadd.f32 %v2059, %v2291
        %v2386 = vadd.f32 %v2060, %v2296
        %v2387 = vadd.f32 %v2061, %v2299
        %v2388 = vadd.f32 %v2062, %v2304
        %v2389 = vadd.f32 %v2063, %v2307
        %v2390 = vadd.f32 %v2064, %v2312
        %v2391 = vadd.f32 %v2065, %v2315
        %v2392 = vadd.f32 %v2066, %v2320
        %v2393 = vadd.f32 %v2067, %v2323
        %v2394 = vadd.f32 %v2068, %v2328
        %v2395 = vadd.f32 %v2069, %v2331
        %v2396 = vadd.f32 %v2070, %v2336
        %v2397 = vadd.f32 %v2071, %v2339
        %v2398 = vadd.f32 %v2072, %v2344
        %v2399 = vadd.f32 %v2073, %v2347
        %v2400 = vadd.f32 %v2074, %v2352
        %v2401 = vadd.f32 %v2075, %v2355
        %v2402 = vadd.f32 %v2076, %v2360
        %v2403 = vadd.f32 %v2077, %v2363
        %v2404 = vadd.f32 %v2078, %v2368
        %v2405 = vadd.f32 %v2079, %v2371
        %2406 = vst [vmem:[#allocation2] sm:$0xff] %v2374
        %2407 = vst [vmem:[#allocation2 + $0x8] sm:$0xff] %v2375
        %2408 = vst [vmem:[#allocation2 + $0x10] sm:$0xff] %v2376
        %2409 = vst [vmem:[#allocation2 + $0x18] sm:$0xff] %v2377
        %2410 = vst [vmem:[#allocation2 + $0x20] sm:$0xff] %v2378
        %2411 = vst [vmem:[#allocation2 + $0x28] sm:$0xff] %v2379
        %2412 = vst [vmem:[#allocation2 + $0x30] sm:$0xff] %v2380
        %2413 = vst [vmem:[#allocation2 + $0x38] sm:$0xff] %v2381
        %2414 = vst [vmem:[#allocation2 + $0x40] sm:$0xff] %v2382
        %2415 = vst [vmem:[#allocation2 + $0x48] sm:$0xff] %v2383
        %2416 = vst [vmem:[#allocation2 + $0x50] sm:$0xff] %v2384
        %2417 = vst [vmem:[#allocation2 + $0x58] sm:$0xff] %v2385
        %2418 = vst [vmem:[#allocation2 + $0x60] sm:$0xff] %v2386
        %2419 = vst [vmem:[#allocation2 + $0x68] sm:$0xff] %v2387
        %2420 = vst [vmem:[#allocation2 + $0x70] sm:$0xff] %v2388
        %2421 = vst [vmem:[#allocation2 + $0x78] sm:$0xff] %v2389
        %2422 = vst [vmem:[#allocation2 + $0x80] sm:$0xff] %v2390
        %2423 = vst [vmem:[#allocation2 + $0x88] sm:$0xff] %v2391
        %2424 = vst [vmem:[#allocation2 + $0x90] sm:$0xff] %v2392
        %2425 = vst [vmem:[#allocation2 + $0x98] sm:$0xff] %v2393
        %2426 = vst [vmem:[#allocation2 + $0xa0] sm:$0xff] %v2394
        %2427 = vst [vmem:[#allocation2 + $0xa8] sm:$0xff] %v2395
        %2428 = vst [vmem:[#allocation2 + $0xb0] sm:$0xff] %v2396
        %2429 = vst [vmem:[#allocation2 + $0xb8] sm:$0xff] %v2397
        %2430 = vst [vmem:[#allocation2 + $0xc0] sm:$0xff] %v2398
        %2431 = vst [vmem:[#allocation2 + $0xc8] sm:$0xff] %v2399
        %2432 = vst [vmem:[#allocation2 + $0xd0] sm:$0xff] %v2400
        %2433 = vst [vmem:[#allocation2 + $0xd8] sm:$0xff] %v2401
        %2434 = vst [vmem:[#allocation2 + $0xe0] sm:$0xff] %v2402
        %2435 = vst [vmem:[#allocation2 + $0xe8] sm:$0xff] %v2403
        %2436 = vst [vmem:[#allocation2 + $0xf0] sm:$0xff] %v2404
        %2437 = vst [vmem:[#allocation2 + $0xf8] sm:$0xff] %v2405
        %v2438 = vld [vmem:[%s2015] sm:$0xf]
        %v2439 = vld [vmem:[%s2015 + $0x4] sm:$0xf]
        %v2440 = vld [vmem:[%s2015 + $0x8] sm:$0x1]
        %v2441 = vld [vmem:[%s2015 + $0xc] sm:$0xf]
        %v2442 = vld [vmem:[%s2015 + $0x10] sm:$0xf]
        %v2443 = vld [vmem:[%s2015 + $0x14] sm:$0x1]
        %v2444 = vld [vmem:[%s2015 + $0x18] sm:$0xf]
        %v2445 = vld [vmem:[%s2015 + $0x1c] sm:$0xf]
        %v2446 = vld [vmem:[%s2015 + $0x20] sm:$0x1]
        %v2447 = vld [vmem:[%s2015 + $0x24] sm:$0xf]
        %v2448 = vld [vmem:[%s2015 + $0x28] sm:$0xf]
        %v2449 = vld [vmem:[%s2015 + $0x2c] sm:$0x1]
        %v2450 = vld [vmem:[%s2015 + $0x30] sm:$0xf]
        %v2451 = vld [vmem:[%s2015 + $0x34] sm:$0xf]
        %v2452 = vld [vmem:[%s2015 + $0x38] sm:$0x1]
        %v2453 = vld [vmem:[%s2015 + $0x3c] sm:$0xf]
        %v2454 = vld [vmem:[%s2015 + $0x40] sm:$0xf]
        %v2455 = vld [vmem:[%s2015 + $0x44] sm:$0x1]
        %v2456 = vld [vmem:[%s2015 + $0x48] sm:$0xf]
        %v2457 = vld [vmem:[%s2015 + $0x4c] sm:$0xf]
        %v2458 = vld [vmem:[%s2015 + $0x50] sm:$0x1]
        %v2459 = vld [vmem:[%s2015 + $0x54] sm:$0xf]
        %v2460 = vld [vmem:[%s2015 + $0x58] sm:$0xf]
        %v2461 = vld [vmem:[%s2015 + $0x5c] sm:$0x1]
        %v2462 = vld [vmem:[%s2015 + $0x60] sm:$0xf]
        %v2463 = vld [vmem:[%s2015 + $0x64] sm:$0xf]
        %v2464 = vld [vmem:[%s2015 + $0x68] sm:$0x1]
        %v2465 = vld [vmem:[%s2015 + $0x6c] sm:$0xf]
        %v2466 = vld [vmem:[%s2015 + $0x70] sm:$0xf]
        %v2467 = vld [vmem:[%s2015 + $0x74] sm:$0x1]
        %v2468 = vld [vmem:[%s2015 + $0x78] sm:$0xf]
        %v2469 = vld [vmem:[%s2015 + $0x7c] sm:$0xf]
        %v2470 = vld [vmem:[%s2015 + $0x80] sm:$0x1]
        %v2471 = vld [vmem:[%s2015 + $0x84] sm:$0xf]
        %v2472 = vld [vmem:[%s2015 + $0x88] sm:$0xf]
        %v2473 = vld [vmem:[%s2015 + $0x8c] sm:$0x1]
        %v2474 = vld [vmem:[%s2015 + $0x90] sm:$0xf]
        %v2475 = vld [vmem:[%s2015 + $0x94] sm:$0xf]
        %v2476 = vld [vmem:[%s2015 + $0x98] sm:$0x1]
        %v2477 = vld [vmem:[%s2015 + $0x9c] sm:$0xf]
        %v2478 = vld [vmem:[%s2015 + $0xa0] sm:$0xf]
        %v2479 = vld [vmem:[%s2015 + $0xa4] sm:$0x1]
        %v2480 = vld [vmem:[%s2015 + $0xa8] sm:$0xf]
        %v2481 = vld [vmem:[%s2015 + $0xac] sm:$0xf]
        %v2482 = vld [vmem:[%s2015 + $0xb0] sm:$0x1]
        %v2483 = vld [vmem:[%s2015 + $0xb4] sm:$0xf]
        %v2484 = vld [vmem:[%s2015 + $0xb8] sm:$0xf]
        %v2485 = vld [vmem:[%s2015 + $0xbc] sm:$0x1]
        %v2487 = vshrl.u32 %v2438, 16
        %v2489 = vrot.slane %v2487, 4
        %v2490 = vshll.u32 %v2438, 16
        %v2492 = vrot.slane %v2490, 5
        %v2493 = vor.u32 %v2489, %v2492
        %v2494 = vrot.slane %v2493, 4
        %v2496 = vshll.u32 %v2439, 16
        %v2498 = vrot.slane %v2496, 5
        %v2499 = vsel %vm700, %v2494, %v2498
        %v2500 = vshrl.u32 %v2439, 16
        %v2502 = vrot.slane %v2500, 4
        %v2503 = vor.u32 %v2502, %v2498
        %v2504 = vrot.slane %v2503, 4
        %v2506 = vshll.u32 %v2440, 16
        %v2508 = vrot.slane %v2506, 5
        %v2509 = vsel %vm700, %v2504, %v2508
        %v2511 = vshrl.u32 %v2441, 16
        %v2513 = vrot.slane %v2511, 4
        %v2514 = vshll.u32 %v2441, 16
        %v2516 = vrot.slane %v2514, 5
        %v2517 = vor.u32 %v2513, %v2516
        %v2518 = vrot.slane %v2517, 4
        %v2520 = vshll.u32 %v2442, 16
        %v2522 = vrot.slane %v2520, 5
        %v2523 = vsel %vm700, %v2518, %v2522
        %v2524 = vshrl.u32 %v2442, 16
        %v2526 = vrot.slane %v2524, 4
        %v2527 = vor.u32 %v2526, %v2522
        %v2528 = vrot.slane %v2527, 4
        %v2530 = vshll.u32 %v2443, 16
        %v2532 = vrot.slane %v2530, 5
        %v2533 = vsel %vm700, %v2528, %v2532
        %v2535 = vshrl.u32 %v2444, 16
        %v2537 = vrot.slane %v2535, 4
        %v2538 = vshll.u32 %v2444, 16
        %v2540 = vrot.slane %v2538, 5
        %v2541 = vor.u32 %v2537, %v2540
        %v2542 = vrot.slane %v2541, 4
        %v2544 = vshll.u32 %v2445, 16
        %v2546 = vrot.slane %v2544, 5
        %v2547 = vsel %vm700, %v2542, %v2546
        %v2548 = vshrl.u32 %v2445, 16
        %v2550 = vrot.slane %v2548, 4
        %v2551 = vor.u32 %v2550, %v2546
        %v2552 = vrot.slane %v2551, 4
        %v2554 = vshll.u32 %v2446, 16
        %v2556 = vrot.slane %v2554, 5
        %v2557 = vsel %vm700, %v2552, %v2556
        %v2559 = vshrl.u32 %v2447, 16
        %v2561 = vrot.slane %v2559, 4
        %v2562 = vshll.u32 %v2447, 16
        %v2564 = vrot.slane %v2562, 5
        %v2565 = vor.u32 %v2561, %v2564
        %v2566 = vrot.slane %v2565, 4
        %v2568 = vshll.u32 %v2448, 16
        %v2570 = vrot.slane %v2568, 5
        %v2571 = vsel %vm700, %v2566, %v2570
        %v2572 = vshrl.u32 %v2448, 16
        %v2574 = vrot.slane %v2572, 4
        %v2575 = vor.u32 %v2574, %v2570
        %v2576 = vrot.slane %v2575, 4
        %v2578 = vshll.u32 %v2449, 16
        %v2580 = vrot.slane %v2578, 5
        %v2581 = vsel %vm700, %v2576, %v2580
        %v2583 = vshrl.u32 %v2450, 16
        %v2585 = vrot.slane %v2583, 4
        %v2586 = vshll.u32 %v2450, 16
        %v2588 = vrot.slane %v2586, 5
        %v2589 = vor.u32 %v2585, %v2588
        %v2590 = vrot.slane %v2589, 4
        %v2592 = vshll.u32 %v2451, 16
        %v2594 = vrot.slane %v2592, 5
        %v2595 = vsel %vm700, %v2590, %v2594
        %v2596 = vshrl.u32 %v2451, 16
        %v2598 = vrot.slane %v2596, 4
        %v2599 = vor.u32 %v2598, %v2594
        %v2600 = vrot.slane %v2599, 4
        %v2602 = vshll.u32 %v2452, 16
        %v2604 = vrot.slane %v2602, 5
        %v2605 = vsel %vm700, %v2600, %v2604
        %v2607 = vshrl.u32 %v2453, 16
        %v2609 = vrot.slane %v2607, 4
        %v2610 = vshll.u32 %v2453, 16
        %v2612 = vrot.slane %v2610, 5
        %v2613 = vor.u32 %v2609, %v2612
        %v2614 = vrot.slane %v2613, 4
        %v2616 = vshll.u32 %v2454, 16
        %v2618 = vrot.slane %v2616, 5
        %v2619 = vsel %vm700, %v2614, %v2618
        %v2620 = vshrl.u32 %v2454, 16
        %v2622 = vrot.slane %v2620, 4
        %v2623 = vor.u32 %v2622, %v2618
        %v2624 = vrot.slane %v2623, 4
        %v2626 = vshll.u32 %v2455, 16
        %v2628 = vrot.slane %v2626, 5
        %v2629 = vsel %vm700, %v2624, %v2628
        %v2631 = vshrl.u32 %v2456, 16
        %v2633 = vrot.slane %v2631, 4
        %v2634 = vshll.u32 %v2456, 16
        %v2636 = vrot.slane %v2634, 5
        %v2637 = vor.u32 %v2633, %v2636
        %v2638 = vrot.slane %v2637, 4
        %v2640 = vshll.u32 %v2457, 16
        %v2642 = vrot.slane %v2640, 5
        %v2643 = vsel %vm700, %v2638, %v2642
        %v2644 = vshrl.u32 %v2457, 16
        %v2646 = vrot.slane %v2644, 4
        %v2647 = vor.u32 %v2646, %v2642
        %v2648 = vrot.slane %v2647, 4
        %v2650 = vshll.u32 %v2458, 16
        %v2652 = vrot.slane %v2650, 5
        %v2653 = vsel %vm700, %v2648, %v2652
        %v2655 = vshrl.u32 %v2459, 16
        %v2657 = vrot.slane %v2655, 4
        %v2658 = vshll.u32 %v2459, 16
        %v2660 = vrot.slane %v2658, 5
        %v2661 = vor.u32 %v2657, %v2660
        %v2662 = vrot.slane %v2661, 4
        %v2664 = vshll.u32 %v2460, 16
        %v2666 = vrot.slane %v2664, 5
        %v2667 = vsel %vm700, %v2662, %v2666
        %v2668 = vshrl.u32 %v2460, 16
        %v2670 = vrot.slane %v2668, 4
        %v2671 = vor.u32 %v2670, %v2666
        %v2672 = vrot.slane %v2671, 4
        %v2674 = vshll.u32 %v2461, 16
        %v2676 = vrot.slane %v2674, 5
        %v2677 = vsel %vm700, %v2672, %v2676
        %v2679 = vshrl.u32 %v2462, 16
        %v2681 = vrot.slane %v2679, 4
        %v2682 = vshll.u32 %v2462, 16
        %v2684 = vrot.slane %v2682, 5
        %v2685 = vor.u32 %v2681, %v2684
        %v2686 = vrot.slane %v2685, 4
        %v2688 = vshll.u32 %v2463, 16
        %v2690 = vrot.slane %v2688, 5
        %v2691 = vsel %vm700, %v2686, %v2690
        %v2692 = vshrl.u32 %v2463, 16
        %v2694 = vrot.slane %v2692, 4
        %v2695 = vor.u32 %v2694, %v2690
        %v2696 = vrot.slane %v2695, 4
        %v2698 = vshll.u32 %v2464, 16
        %v2700 = vrot.slane %v2698, 5
        %v2701 = vsel %vm700, %v2696, %v2700
        %v2703 = vshrl.u32 %v2465, 16
        %v2705 = vrot.slane %v2703, 4
        %v2706 = vshll.u32 %v2465, 16
        %v2708 = vrot.slane %v2706, 5
        %v2709 = vor.u32 %v2705, %v2708
        %v2710 = vrot.slane %v2709, 4
        %v2712 = vshll.u32 %v2466, 16
        %v2714 = vrot.slane %v2712, 5
        %v2715 = vsel %vm700, %v2710, %v2714
        %v2716 = vshrl.u32 %v2466, 16
        %v2718 = vrot.slane %v2716, 4
        %v2719 = vor.u32 %v2718, %v2714
        %v2720 = vrot.slane %v2719, 4
        %v2722 = vshll.u32 %v2467, 16
        %v2724 = vrot.slane %v2722, 5
        %v2725 = vsel %vm700, %v2720, %v2724
        %v2727 = vshrl.u32 %v2468, 16
        %v2729 = vrot.slane %v2727, 4
        %v2730 = vshll.u32 %v2468, 16
        %v2732 = vrot.slane %v2730, 5
        %v2733 = vor.u32 %v2729, %v2732
        %v2734 = vrot.slane %v2733, 4
        %v2736 = vshll.u32 %v2469, 16
        %v2738 = vrot.slane %v2736, 5
        %v2739 = vsel %vm700, %v2734, %v2738
        %v2740 = vshrl.u32 %v2469, 16
        %v2742 = vrot.slane %v2740, 4
        %v2743 = vor.u32 %v2742, %v2738
        %v2744 = vrot.slane %v2743, 4
        %v2746 = vshll.u32 %v2470, 16
        %v2748 = vrot.slane %v2746, 5
        %v2749 = vsel %vm700, %v2744, %v2748
        %v2751 = vshrl.u32 %v2471, 16
        %v2753 = vrot.slane %v2751, 4
        %v2754 = vshll.u32 %v2471, 16
        %v2756 = vrot.slane %v2754, 5
        %v2757 = vor.u32 %v2753, %v2756
        %v2758 = vrot.slane %v2757, 4
        %v2760 = vshll.u32 %v2472, 16
        %v2762 = vrot.slane %v2760, 5
        %v2763 = vsel %vm700, %v2758, %v2762
        %v2764 = vshrl.u32 %v2472, 16
        %v2766 = vrot.slane %v2764, 4
        %v2767 = vor.u32 %v2766, %v2762
        %v2768 = vrot.slane %v2767, 4
        %v2770 = vshll.u32 %v2473, 16
        %v2772 = vrot.slane %v2770, 5
        %v2773 = vsel %vm700, %v2768, %v2772
        %v2775 = vshrl.u32 %v2474, 16
        %v2777 = vrot.slane %v2775, 4
        %v2778 = vshll.u32 %v2474, 16
        %v2780 = vrot.slane %v2778, 5
        %v2781 = vor.u32 %v2777, %v2780
        %v2782 = vrot.slane %v2781, 4
        %v2784 = vshll.u32 %v2475, 16
        %v2786 = vrot.slane %v2784, 5
        %v2787 = vsel %vm700, %v2782, %v2786
        %v2788 = vshrl.u32 %v2475, 16
        %v2790 = vrot.slane %v2788, 4
        %v2791 = vor.u32 %v2790, %v2786
        %v2792 = vrot.slane %v2791, 4
        %v2794 = vshll.u32 %v2476, 16
        %v2796 = vrot.slane %v2794, 5
        %v2797 = vsel %vm700, %v2792, %v2796
        %v2799 = vshrl.u32 %v2477, 16
        %v2801 = vrot.slane %v2799, 4
        %v2802 = vshll.u32 %v2477, 16
        %v2804 = vrot.slane %v2802, 5
        %v2805 = vor.u32 %v2801, %v2804
        %v2806 = vrot.slane %v2805, 4
        %v2808 = vshll.u32 %v2478, 16
        %v2810 = vrot.slane %v2808, 5
        %v2811 = vsel %vm700, %v2806, %v2810
        %v2812 = vshrl.u32 %v2478, 16
        %v2814 = vrot.slane %v2812, 4
        %v2815 = vor.u32 %v2814, %v2810
        %v2816 = vrot.slane %v2815, 4
        %v2818 = vshll.u32 %v2479, 16
        %v2820 = vrot.slane %v2818, 5
        %v2821 = vsel %vm700, %v2816, %v2820
        %v2823 = vshrl.u32 %v2480, 16
        %v2825 = vrot.slane %v2823, 4
        %v2826 = vshll.u32 %v2480, 16
        %v2828 = vrot.slane %v2826, 5
        %v2829 = vor.u32 %v2825, %v2828
        %v2830 = vrot.slane %v2829, 4
        %v2832 = vshll.u32 %v2481, 16
        %v2834 = vrot.slane %v2832, 5
        %v2835 = vsel %vm700, %v2830, %v2834
        %v2836 = vshrl.u32 %v2481, 16
        %v2838 = vrot.slane %v2836, 4
        %v2839 = vor.u32 %v2838, %v2834
        %v2840 = vrot.slane %v2839, 4
        %v2842 = vshll.u32 %v2482, 16
        %v2844 = vrot.slane %v2842, 5
        %v2845 = vsel %vm700, %v2840, %v2844
        %v2847 = vshrl.u32 %v2483, 16
        %v2849 = vrot.slane %v2847, 4
        %v2850 = vshll.u32 %v2483, 16
        %v2852 = vrot.slane %v2850, 5
        %v2853 = vor.u32 %v2849, %v2852
        %v2854 = vrot.slane %v2853, 4
        %v2856 = vshll.u32 %v2484, 16
        %v2858 = vrot.slane %v2856, 5
        %v2859 = vsel %vm700, %v2854, %v2858
        %v2860 = vshrl.u32 %v2484, 16
        %v2862 = vrot.slane %v2860, 4
        %v2863 = vor.u32 %v2862, %v2858
        %v2864 = vrot.slane %v2863, 4
        %v2866 = vshll.u32 %v2485, 16
        %v2868 = vrot.slane %v2866, 5
        %v2869 = vsel %vm700, %v2864, %v2868
        %v2870 = vld [vmem:[#allocation2] sm:$0xff]
        %v2871 = vld [vmem:[#allocation2 + $0x8] sm:$0xff]
        %v2872 = vld [vmem:[#allocation2 + $0x10] sm:$0xff]
        %v2873 = vld [vmem:[#allocation2 + $0x18] sm:$0xff]
        %v2874 = vld [vmem:[#allocation2 + $0x20] sm:$0xff]
        %v2875 = vld [vmem:[#allocation2 + $0x28] sm:$0xff]
        %v2876 = vld [vmem:[#allocation2 + $0x30] sm:$0xff]
        %v2877 = vld [vmem:[#allocation2 + $0x38] sm:$0xff]
        %v2878 = vld [vmem:[#allocation2 + $0x40] sm:$0xff]
        %v2879 = vld [vmem:[#allocation2 + $0x48] sm:$0xff]
        %v2880 = vld [vmem:[#allocation2 + $0x50] sm:$0xff]
        %v2881 = vld [vmem:[#allocation2 + $0x58] sm:$0xff]
        %v2882 = vld [vmem:[#allocation2 + $0x60] sm:$0xff]
        %v2883 = vld [vmem:[#allocation2 + $0x68] sm:$0xff]
        %v2884 = vld [vmem:[#allocation2 + $0x70] sm:$0xff]
        %v2885 = vld [vmem:[#allocation2 + $0x78] sm:$0xff]
        %v2886 = vld [vmem:[#allocation2 + $0x80] sm:$0xff]
        %v2887 = vld [vmem:[#allocation2 + $0x88] sm:$0xff]
        %v2888 = vld [vmem:[#allocation2 + $0x90] sm:$0xff]
        %v2889 = vld [vmem:[#allocation2 + $0x98] sm:$0xff]
        %v2890 = vld [vmem:[#allocation2 + $0xa0] sm:$0xff]
        %v2891 = vld [vmem:[#allocation2 + $0xa8] sm:$0xff]
        %v2892 = vld [vmem:[#allocation2 + $0xb0] sm:$0xff]
        %v2893 = vld [vmem:[#allocation2 + $0xb8] sm:$0xff]
        %v2894 = vld [vmem:[#allocation2 + $0xc0] sm:$0xff]
        %v2895 = vld [vmem:[#allocation2 + $0xc8] sm:$0xff]
        %v2896 = vld [vmem:[#allocation2 + $0xd0] sm:$0xff]
        %v2897 = vld [vmem:[#allocation2 + $0xd8] sm:$0xff]
        %v2898 = vld [vmem:[#allocation2 + $0xe0] sm:$0xff]
        %v2899 = vld [vmem:[#allocation2 + $0xe8] sm:$0xff]
        %v2900 = vld [vmem:[#allocation2 + $0xf0] sm:$0xff]
        %v2901 = vld [vmem:[#allocation2 + $0xf8] sm:$0xff]
        %s2902 = scalar_lea.vmem %s1, 8
        %v2903 = vld [vmem:[%s2902] sm:$0x3]
        %v2904 = vunpack.c.l.b16 %v2499
        %v2905 = vunpack.c.l.b16 %v2509
        %v2906 = vunpack.c.l.b16 %v2523
        %v2907 = vunpack.c.l.b16 %v2533
        %v2908 = vunpack.c.l.b16 %v2547
        %v2909 = vunpack.c.l.b16 %v2557
        %v2910 = vunpack.c.l.b16 %v2571
        %v2911 = vunpack.c.l.b16 %v2581
        %v2912 = vunpack.c.l.b16 %v2595
        %v2913 = vunpack.c.l.b16 %v2605
        %v2914 = vunpack.c.l.b16 %v2619
        %v2915 = vunpack.c.l.b16 %v2629
        %v2916 = vunpack.c.l.b16 %v2643
        %v2917 = vunpack.c.l.b16 %v2653
        %v2918 = vunpack.c.l.b16 %v2667
        %v2919 = vunpack.c.l.b16 %v2677
        %v2920 = vunpack.c.l.b16 %v2691
        %v2921 = vunpack.c.l.b16 %v2701
        %v2922 = vunpack.c.l.b16 %v2715
        %v2923 = vunpack.c.l.b16 %v2725
        %v2924 = vunpack.c.l.b16 %v2739
        %v2925 = vunpack.c.l.b16 %v2749
        %v2926 = vunpack.c.l.b16 %v2763
        %v2927 = vunpack.c.l.b16 %v2773
        %v2928 = vunpack.c.l.b16 %v2787
        %v2929 = vunpack.c.l.b16 %v2797
        %v2930 = vunpack.c.l.b16 %v2811
        %v2931 = vunpack.c.l.b16 %v2821
        %v2932 = vunpack.c.l.b16 %v2835
        %v2933 = vunpack.c.l.b16 %v2845
        %v2934 = vunpack.c.l.b16 %v2859
        %v2935 = vunpack.c.l.b16 %v2869
        %v2936 = vpack.c.b16 %v2905, %v2904
        %v2937 = vpack.c.b16 %v2907, %v2906
        %v2938 = vpack.c.b16 %v2909, %v2908
        %v2939 = vpack.c.b16 %v2911, %v2910
        %v2940 = vpack.c.b16 %v2913, %v2912
        %v2941 = vpack.c.b16 %v2915, %v2914
        %v2942 = vpack.c.b16 %v2917, %v2916
        %v2943 = vpack.c.b16 %v2919, %v2918
        %v2944 = vpack.c.b16 %v2921, %v2920
        %v2945 = vpack.c.b16 %v2923, %v2922
        %v2946 = vpack.c.b16 %v2925, %v2924
        %v2947 = vpack.c.b16 %v2927, %v2926
        %v2948 = vpack.c.b16 %v2929, %v2928
        %v2949 = vpack.c.b16 %v2931, %v2930
        %v2950 = vpack.c.b16 %v2933, %v2932
        %v2951 = vpack.c.b16 %v2935, %v2934
        %v2953 = vsel %vm372, %v2936, 0
        %v2956 = vsel %vm372, %v2937, 0
        %v2959 = vsel %vm372, %v2938, 0
        %v2962 = vsel %vm372, %v2939, 0
        %v2965 = vsel %vm372, %v2940, 0
        %v2968 = vsel %vm372, %v2941, 0
        %v2971 = vsel %vm372, %v2942, 0
        %v2974 = vsel %vm372, %v2943, 0
        %v2977 = vsel %vm372, %v2944, 0
        %v2980 = vsel %vm372, %v2945, 0
        %v2983 = vsel %vm372, %v2946, 0
        %v2986 = vsel %vm372, %v2947, 0
        %v2989 = vsel %vm372, %v2948, 0
        %v2992 = vsel %vm372, %v2949, 0
        %v2995 = vsel %vm372, %v2950, 0
        %v2998 = vsel %vm372, %v2951, 0
        %v3001 = vsel %vm421, %v2903, 0
        %3003 = vmatprep.subr.bf16.mxu0 0
        %3004 = vmatpush1.bf16.msra.mxu0 0
        %3005 = vmatprep.subr.bf16.mxu0 0
        %3006 = vmatpush1.bf16.msra.mxu0 0
        %3007 = vmatprep.subr.bf16.mxu0 0
        %3008 = vmatpush1.bf16.msra.mxu0 0
        %3009 = vmatprep.subr.bf16.mxu0 0
        %3010 = vmatpush1.bf16.msra.mxu0 0
        %3011 = vmatprep.subr.bf16.mxu0 0
        %3012 = vmatpush1.bf16.msra.mxu0 0
        %3013 = vmatprep.subr.bf16.mxu0 0
        %3014 = vmatpush1.bf16.msra.mxu0 0
        %3015 = vmatprep.subr.bf16.mxu0 0
        %3016 = vmatpush1.bf16.msra.mxu0 0
        %3017 = vmatprep.subr.bf16.mxu0 0
        %3018 = vmatpush1.bf16.msra.mxu0 %v3001
        %3019 = vmatprep.subr.bf16.mxu0 0
        %3020 = vmatpush2.bf16.msra.mxu0 0
        %3021 = vmatprep.subr.bf16.mxu0 0
        %3022 = vmatpush2.bf16.msra.mxu0 0
        %3023 = vmatprep.subr.bf16.mxu0 0
        %3024 = vmatpush2.bf16.msra.mxu0 0
        %3025 = vmatprep.subr.bf16.mxu0 0
        %3026 = vmatpush2.bf16.msra.mxu0 0
        %3027 = vmatprep.subr.bf16.mxu0 0
        %3028 = vmatpush2.bf16.msra.mxu0 0
        %3029 = vmatprep.subr.bf16.mxu0 0
        %3030 = vmatpush2.bf16.msra.mxu0 0
        %3031 = vmatprep.subr.bf16.mxu0 0
        %3032 = vmatpush2.bf16.msra.mxu0 0
        %3033 = vmatprep.subr.bf16.mxu0 0
        %3034 = vmatpush2.bf16.msra.mxu0 0
        %3035 = vmatprep.mubr.bf16.mxu0 0
        %3036 = vmatmul.mubr.bf16.gmra.mxu0 %v2953
        %v3037 = vpop.f32.mrf.mxu0
        %v3038 = vadd.f32 0.0, %v3037
        %v3039 = vpop.f32.mrf.mxu0
        %v3040 = vpop.f32.mrf.mxu0
        %v3041 = vadd.f32 0.0, %v3040
        %v3042 = vpop.f32.mrf.mxu0
        %3043 = vmatprep.mubr.bf16.mxu0 0
        %3044 = vmatmul.mubr.bf16.gmra.mxu0 %v2956
        %v3045 = vpop.f32.mrf.mxu0
        %v3046 = vadd.f32 0.0, %v3045
        %v3047 = vpop.f32.mrf.mxu0
        %v3048 = vpop.f32.mrf.mxu0
        %v3049 = vadd.f32 0.0, %v3048
        %v3050 = vpop.f32.mrf.mxu0
        %3051 = vmatprep.mubr.bf16.mxu0 0
        %3052 = vmatmul.mubr.bf16.gmra.mxu0 %v2959
        %v3053 = vpop.f32.mrf.mxu0
        %v3054 = vadd.f32 0.0, %v3053
        %v3055 = vpop.f32.mrf.mxu0
        %v3056 = vpop.f32.mrf.mxu0
        %v3057 = vadd.f32 0.0, %v3056
        %v3058 = vpop.f32.mrf.mxu0
        %3059 = vmatprep.mubr.bf16.mxu0 0
        %3060 = vmatmul.mubr.bf16.gmra.mxu0 %v2962
        %v3061 = vpop.f32.mrf.mxu0
        %v3062 = vadd.f32 0.0, %v3061
        %v3063 = vpop.f32.mrf.mxu0
        %v3064 = vpop.f32.mrf.mxu0
        %v3065 = vadd.f32 0.0, %v3064
        %v3066 = vpop.f32.mrf.mxu0
        %3067 = vmatprep.mubr.bf16.mxu0 0
        %3068 = vmatmul.mubr.bf16.gmra.mxu0 %v2965
        %v3069 = vpop.f32.mrf.mxu0
        %v3070 = vadd.f32 0.0, %v3069
        %v3071 = vpop.f32.mrf.mxu0
        %v3072 = vpop.f32.mrf.mxu0
        %v3073 = vadd.f32 0.0, %v3072
        %v3074 = vpop.f32.mrf.mxu0
        %3075 = vmatprep.mubr.bf16.mxu0 0
        %3076 = vmatmul.mubr.bf16.gmra.mxu0 %v2968
        %v3077 = vpop.f32.mrf.mxu0
        %v3078 = vadd.f32 0.0, %v3077
        %v3079 = vpop.f32.mrf.mxu0
        %v3080 = vpop.f32.mrf.mxu0
        %v3081 = vadd.f32 0.0, %v3080
        %v3082 = vpop.f32.mrf.mxu0
        %3083 = vmatprep.mubr.bf16.mxu0 0
        %3084 = vmatmul.mubr.bf16.gmra.mxu0 %v2971
        %v3085 = vpop.f32.mrf.mxu0
        %v3086 = vadd.f32 0.0, %v3085
        %v3087 = vpop.f32.mrf.mxu0
        %v3088 = vpop.f32.mrf.mxu0
        %v3089 = vadd.f32 0.0, %v3088
        %v3090 = vpop.f32.mrf.mxu0
        %3091 = vmatprep.mubr.bf16.mxu0 0
        %3092 = vmatmul.mubr.bf16.gmra.mxu0 %v2974
        %v3093 = vpop.f32.mrf.mxu0
        %v3094 = vadd.f32 0.0, %v3093
        %v3095 = vpop.f32.mrf.mxu0
        %v3096 = vpop.f32.mrf.mxu0
        %v3097 = vadd.f32 0.0, %v3096
        %v3098 = vpop.f32.mrf.mxu0
        %3099 = vmatprep.mubr.bf16.mxu0 0
        %3100 = vmatmul.mubr.bf16.gmra.mxu0 %v2977
        %v3101 = vpop.f32.mrf.mxu0
        %v3102 = vadd.f32 0.0, %v3101
        %v3103 = vpop.f32.mrf.mxu0
        %v3104 = vpop.f32.mrf.mxu0
        %v3105 = vadd.f32 0.0, %v3104
        %v3106 = vpop.f32.mrf.mxu0
        %3107 = vmatprep.mubr.bf16.mxu0 0
        %3108 = vmatmul.mubr.bf16.gmra.mxu0 %v2980
        %v3109 = vpop.f32.mrf.mxu0
        %v3110 = vadd.f32 0.0, %v3109
        %v3111 = vpop.f32.mrf.mxu0
        %v3112 = vpop.f32.mrf.mxu0
        %v3113 = vadd.f32 0.0, %v3112
        %v3114 = vpop.f32.mrf.mxu0
        %3115 = vmatprep.mubr.bf16.mxu0 0
        %3116 = vmatmul.mubr.bf16.gmra.mxu0 %v2983
        %v3117 = vpop.f32.mrf.mxu0
        %v3118 = vadd.f32 0.0, %v3117
        %v3119 = vpop.f32.mrf.mxu0
        %v3120 = vpop.f32.mrf.mxu0
        %v3121 = vadd.f32 0.0, %v3120
        %v3122 = vpop.f32.mrf.mxu0
        %3123 = vmatprep.mubr.bf16.mxu0 0
        %3124 = vmatmul.mubr.bf16.gmra.mxu0 %v2986
        %v3125 = vpop.f32.mrf.mxu0
        %v3126 = vadd.f32 0.0, %v3125
        %v3127 = vpop.f32.mrf.mxu0
        %v3128 = vpop.f32.mrf.mxu0
        %v3129 = vadd.f32 0.0, %v3128
        %v3130 = vpop.f32.mrf.mxu0
        %3131 = vmatprep.mubr.bf16.mxu0 0
        %3132 = vmatmul.mubr.bf16.gmra.mxu0 %v2989
        %v3133 = vpop.f32.mrf.mxu0
        %v3134 = vadd.f32 0.0, %v3133
        %v3135 = vpop.f32.mrf.mxu0
        %v3136 = vpop.f32.mrf.mxu0
        %v3137 = vadd.f32 0.0, %v3136
        %v3138 = vpop.f32.mrf.mxu0
        %3139 = vmatprep.mubr.bf16.mxu0 0
        %3140 = vmatmul.mubr.bf16.gmra.mxu0 %v2992
        %v3141 = vpop.f32.mrf.mxu0
        %v3142 = vadd.f32 0.0, %v3141
        %v3143 = vpop.f32.mrf.mxu0
        %v3144 = vpop.f32.mrf.mxu0
        %v3145 = vadd.f32 0.0, %v3144
        %v3146 = vpop.f32.mrf.mxu0
        %3147 = vmatprep.mubr.bf16.mxu0 0
        %3148 = vmatmul.mubr.bf16.gmra.mxu0 %v2995
        %v3149 = vpop.f32.mrf.mxu0
        %v3150 = vadd.f32 0.0, %v3149
        %v3151 = vpop.f32.mrf.mxu0
        %v3152 = vpop.f32.mrf.mxu0
        %v3153 = vadd.f32 0.0, %v3152
        %v3154 = vpop.f32.mrf.mxu0
        %3155 = vmatprep.mubr.bf16.mxu0 0
        %3156 = vmatmul.mubr.bf16.gmra.mxu0 %v2998
        %v3157 = vpop.f32.mrf.mxu0
        %v3158 = vadd.f32 0.0, %v3157
        %v3159 = vpop.f32.mrf.mxu0
        %v3160 = vpop.f32.mrf.mxu0
        %v3161 = vadd.f32 0.0, %v3160
        %v3162 = vpop.f32.mrf.mxu0
        %3163 = vdwg.mxu0
        %v3164 = vadd.f32 %v2870, %v3038
        %v3165 = vadd.f32 %v2871, %v3041
        %v3166 = vadd.f32 %v2872, %v3046
        %v3167 = vadd.f32 %v2873, %v3049
        %v3168 = vadd.f32 %v2874, %v3054
        %v3169 = vadd.f32 %v2875, %v3057
        %v3170 = vadd.f32 %v2876, %v3062
        %v3171 = vadd.f32 %v2877, %v3065
        %v3172 = vadd.f32 %v2878, %v3070
        %v3173 = vadd.f32 %v2879, %v3073
        %v3174 = vadd.f32 %v2880, %v3078
        %v3175 = vadd.f32 %v2881, %v3081
        %v3176 = vadd.f32 %v2882, %v3086
        %v3177 = vadd.f32 %v2883, %v3089
        %v3178 = vadd.f32 %v2884, %v3094
        %v3179 = vadd.f32 %v2885, %v3097
        %v3180 = vadd.f32 %v2886, %v3102
        %v3181 = vadd.f32 %v2887, %v3105
        %v3182 = vadd.f32 %v2888, %v3110
        %v3183 = vadd.f32 %v2889, %v3113
        %v3184 = vadd.f32 %v2890, %v3118
        %v3185 = vadd.f32 %v2891, %v3121
        %v3186 = vadd.f32 %v2892, %v3126
        %v3187 = vadd.f32 %v2893, %v3129
        %v3188 = vadd.f32 %v2894, %v3134
        %v3189 = vadd.f32 %v2895, %v3137
        %v3190 = vadd.f32 %v2896, %v3142
        %v3191 = vadd.f32 %v2897, %v3145
        %v3192 = vadd.f32 %v2898, %v3150
        %v3193 = vadd.f32 %v2899, %v3153
        %v3194 = vadd.f32 %v2900, %v3158
        %v3195 = vadd.f32 %v2901, %v3161
        %3196 = vst [vmem:[#allocation2] sm:$0xff] %v3164
        %3197 = vst [vmem:[#allocation2 + $0x8] sm:$0xff] %v3165
        %3198 = vst [vmem:[#allocation2 + $0x10] sm:$0xff] %v3166
        %3199 = vst [vmem:[#allocation2 + $0x18] sm:$0xff] %v3167
        %3200 = vst [vmem:[#allocation2 + $0x20] sm:$0xff] %v3168
        %3201 = vst [vmem:[#allocation2 + $0x28] sm:$0xff] %v3169
        %3202 = vst [vmem:[#allocation2 + $0x30] sm:$0xff] %v3170
        %3203 = vst [vmem:[#allocation2 + $0x38] sm:$0xff] %v3171
        %3204 = vst [vmem:[#allocation2 + $0x40] sm:$0xff] %v3172
        %3205 = vst [vmem:[#allocation2 + $0x48] sm:$0xff] %v3173
        %3206 = vst [vmem:[#allocation2 + $0x50] sm:$0xff] %v3174
        %3207 = vst [vmem:[#allocation2 + $0x58] sm:$0xff] %v3175
        %3208 = vst [vmem:[#allocation2 + $0x60] sm:$0xff] %v3176
        %3209 = vst [vmem:[#allocation2 + $0x68] sm:$0xff] %v3177
        %3210 = vst [vmem:[#allocation2 + $0x70] sm:$0xff] %v3178
        %3211 = vst [vmem:[#allocation2 + $0x78] sm:$0xff] %v3179
        %3212 = vst [vmem:[#allocation2 + $0x80] sm:$0xff] %v3180
        %3213 = vst [vmem:[#allocation2 + $0x88] sm:$0xff] %v3181
        %3214 = vst [vmem:[#allocation2 + $0x90] sm:$0xff] %v3182
        %3215 = vst [vmem:[#allocation2 + $0x98] sm:$0xff] %v3183
        %3216 = vst [vmem:[#allocation2 + $0xa0] sm:$0xff] %v3184
        %3217 = vst [vmem:[#allocation2 + $0xa8] sm:$0xff] %v3185
        %3218 = vst [vmem:[#allocation2 + $0xb0] sm:$0xff] %v3186
        %3219 = vst [vmem:[#allocation2 + $0xb8] sm:$0xff] %v3187
        %3220 = vst [vmem:[#allocation2 + $0xc0] sm:$0xff] %v3188
        %3221 = vst [vmem:[#allocation2 + $0xc8] sm:$0xff] %v3189
        %3222 = vst [vmem:[#allocation2 + $0xd0] sm:$0xff] %v3190
        %3223 = vst [vmem:[#allocation2 + $0xd8] sm:$0xff] %v3191
        %3224 = vst [vmem:[#allocation2 + $0xe0] sm:$0xff] %v3192
        %3225 = vst [vmem:[#allocation2 + $0xe8] sm:$0xff] %v3193
        %3226 = vst [vmem:[#allocation2 + $0xf0] sm:$0xff] %v3194
        %3227 = vst [vmem:[#allocation2 + $0xf8] sm:$0xff] %v3195
        %v3228 = vld [vmem:[%s2015] sm:$0xe]
        %v3229 = vld [vmem:[%s2015 + $0x4] sm:$0xf]
        %v3230 = vld [vmem:[%s2015 + $0x8] sm:$0x1]
        %v3231 = vld [vmem:[%s2015 + $0xc] sm:$0xe]
        %v3232 = vld [vmem:[%s2015 + $0x10] sm:$0xf]
        %v3233 = vld [vmem:[%s2015 + $0x14] sm:$0x1]
        %v3234 = vld [vmem:[%s2015 + $0x18] sm:$0xe]
        %v3235 = vld [vmem:[%s2015 + $0x1c] sm:$0xf]
        %v3236 = vld [vmem:[%s2015 + $0x20] sm:$0x1]
        %v3237 = vld [vmem:[%s2015 + $0x24] sm:$0xe]
        %v3238 = vld [vmem:[%s2015 + $0x28] sm:$0xf]
        %v3239 = vld [vmem:[%s2015 + $0x2c] sm:$0x1]
        %v3240 = vld [vmem:[%s2015 + $0x30] sm:$0xe]
        %v3241 = vld [vmem:[%s2015 + $0x34] sm:$0xf]
        %v3242 = vld [vmem:[%s2015 + $0x38] sm:$0x1]
        %v3243 = vld [vmem:[%s2015 + $0x3c] sm:$0xe]
        %v3244 = vld [vmem:[%s2015 + $0x40] sm:$0xf]
        %v3245 = vld [vmem:[%s2015 + $0x44] sm:$0x1]
        %v3246 = vld [vmem:[%s2015 + $0x48] sm:$0xe]
        %v3247 = vld [vmem:[%s2015 + $0x4c] sm:$0xf]
        %v3248 = vld [vmem:[%s2015 + $0x50] sm:$0x1]
        %v3249 = vld [vmem:[%s2015 + $0x54] sm:$0xe]
        %v3250 = vld [vmem:[%s2015 + $0x58] sm:$0xf]
        %v3251 = vld [vmem:[%s2015 + $0x5c] sm:$0x1]
        %v3252 = vld [vmem:[%s2015 + $0x60] sm:$0xe]
        %v3253 = vld [vmem:[%s2015 + $0x64] sm:$0xf]
        %v3254 = vld [vmem:[%s2015 + $0x68] sm:$0x1]
        %v3255 = vld [vmem:[%s2015 + $0x6c] sm:$0xe]
        %v3256 = vld [vmem:[%s2015 + $0x70] sm:$0xf]
        %v3257 = vld [vmem:[%s2015 + $0x74] sm:$0x1]
        %v3258 = vld [vmem:[%s2015 + $0x78] sm:$0xe]
        %v3259 = vld [vmem:[%s2015 + $0x7c] sm:$0xf]
        %v3260 = vld [vmem:[%s2015 + $0x80] sm:$0x1]
        %v3261 = vld [vmem:[%s2015 + $0x84] sm:$0xe]
        %v3262 = vld [vmem:[%s2015 + $0x88] sm:$0xf]
        %v3263 = vld [vmem:[%s2015 + $0x8c] sm:$0x1]
        %v3264 = vld [vmem:[%s2015 + $0x90] sm:$0xe]
        %v3265 = vld [vmem:[%s2015 + $0x94] sm:$0xf]
        %v3266 = vld [vmem:[%s2015 + $0x98] sm:$0x1]
        %v3267 = vld [vmem:[%s2015 + $0x9c] sm:$0xe]
        %v3268 = vld [vmem:[%s2015 + $0xa0] sm:$0xf]
        %v3269 = vld [vmem:[%s2015 + $0xa4] sm:$0x1]
        %v3270 = vld [vmem:[%s2015 + $0xa8] sm:$0xe]
        %v3271 = vld [vmem:[%s2015 + $0xac] sm:$0xf]
        %v3272 = vld [vmem:[%s2015 + $0xb0] sm:$0x1]
        %v3273 = vld [vmem:[%s2015 + $0xb4] sm:$0xe]
        %v3274 = vld [vmem:[%s2015 + $0xb8] sm:$0xf]
        %v3275 = vld [vmem:[%s2015 + $0xbc] sm:$0x1]
        %v3324 = vrot.slane %v3228, 5
        %v3325 = vrot.slane %v3324, 4
        %v3326 = vrot.slane %v3229, 5
        %v3327 = vsel %vm1541, %v3325, %v3326
        %v3328 = vrot.slane %v3326, 4
        %v3329 = vrot.slane %v3230, 5
        %v3330 = vsel %vm1541, %v3328, %v3329
        %v3331 = vrot.slane %v3231, 5
        %v3332 = vrot.slane %v3331, 4
        %v3333 = vrot.slane %v3232, 5
        %v3334 = vsel %vm1541, %v3332, %v3333
        %v3335 = vrot.slane %v3333, 4
        %v3336 = vrot.slane %v3233, 5
        %v3337 = vsel %vm1541, %v3335, %v3336
        %v3338 = vrot.slane %v3234, 5
        %v3339 = vrot.slane %v3338, 4
        %v3340 = vrot.slane %v3235, 5
        %v3341 = vsel %vm1541, %v3339, %v3340
        %v3342 = vrot.slane %v3340, 4
        %v3343 = vrot.slane %v3236, 5
        %v3344 = vsel %vm1541, %v3342, %v3343
        %v3345 = vrot.slane %v3237, 5
        %v3346 = vrot.slane %v3345, 4
        %v3347 = vrot.slane %v3238, 5
        %v3348 = vsel %vm1541, %v3346, %v3347
        %v3349 = vrot.slane %v3347, 4
        %v3350 = vrot.slane %v3239, 5
        %v3351 = vsel %vm1541, %v3349, %v3350
        %v3352 = vrot.slane %v3240, 5
        %v3353 = vrot.slane %v3352, 4
        %v3354 = vrot.slane %v3241, 5
        %v3355 = vsel %vm1541, %v3353, %v3354
        %v3356 = vrot.slane %v3354, 4
        %v3357 = vrot.slane %v3242, 5
        %v3358 = vsel %vm1541, %v3356, %v3357
        %v3359 = vrot.slane %v3243, 5
        %v3360 = vrot.slane %v3359, 4
        %v3361 = vrot.slane %v3244, 5
        %v3362 = vsel %vm1541, %v3360, %v3361
        %v3363 = vrot.slane %v3361, 4
        %v3364 = vrot.slane %v3245, 5
        %v3365 = vsel %vm1541, %v3363, %v3364
        %v3366 = vrot.slane %v3246, 5
        %v3367 = vrot.slane %v3366, 4
        %v3368 = vrot.slane %v3247, 5
        %v3369 = vsel %vm1541, %v3367, %v3368
        %v3370 = vrot.slane %v3368, 4
        %v3371 = vrot.slane %v3248, 5
        %v3372 = vsel %vm1541, %v3370, %v3371
        %v3373 = vrot.slane %v3249, 5
        %v3374 = vrot.slane %v3373, 4
        %v3375 = vrot.slane %v3250, 5
        %v3376 = vsel %vm1541, %v3374, %v3375
        %v3377 = vrot.slane %v3375, 4
        %v3378 = vrot.slane %v3251, 5
        %v3379 = vsel %vm1541, %v3377, %v3378
        %v3380 = vrot.slane %v3252, 5
        %v3381 = vrot.slane %v3380, 4
        %v3382 = vrot.slane %v3253, 5
        %v3383 = vsel %vm1541, %v3381, %v3382
        %v3384 = vrot.slane %v3382, 4
        %v3385 = vrot.slane %v3254, 5
        %v3386 = vsel %vm1541, %v3384, %v3385
        %v3387 = vrot.slane %v3255, 5
        %v3388 = vrot.slane %v3387, 4
        %v3389 = vrot.slane %v3256, 5
        %v3390 = vsel %vm1541, %v3388, %v3389
        %v3391 = vrot.slane %v3389, 4
        %v3392 = vrot.slane %v3257, 5
        %v3393 = vsel %vm1541, %v3391, %v3392
        %v3394 = vrot.slane %v3258, 5
        %v3395 = vrot.slane %v3394, 4
        %v3396 = vrot.slane %v3259, 5
        %v3397 = vsel %vm1541, %v3395, %v3396
        %v3398 = vrot.slane %v3396, 4
        %v3399 = vrot.slane %v3260, 5
        %v3400 = vsel %vm1541, %v3398, %v3399
        %v3401 = vrot.slane %v3261, 5
        %v3402 = vrot.slane %v3401, 4
        %v3403 = vrot.slane %v3262, 5
        %v3404 = vsel %vm1541, %v3402, %v3403
        %v3405 = vrot.slane %v3403, 4
        %v3406 = vrot.slane %v3263, 5
        %v3407 = vsel %vm1541, %v3405, %v3406
        %v3408 = vrot.slane %v3264, 5
        %v3409 = vrot.slane %v3408, 4
        %v3410 = vrot.slane %v3265, 5
        %v3411 = vsel %vm1541, %v3409, %v3410
        %v3412 = vrot.slane %v3410, 4
        %v3413 = vrot.slane %v3266, 5
        %v3414 = vsel %vm1541, %v3412, %v3413
        %v3415 = vrot.slane %v3267, 5
        %v3416 = vrot.slane %v3415, 4
        %v3417 = vrot.slane %v3268, 5
        %v3418 = vsel %vm1541, %v3416, %v3417
        %v3419 = vrot.slane %v3417, 4
        %v3420 = vrot.slane %v3269, 5
        %v3421 = vsel %vm1541, %v3419, %v3420
        %v3422 = vrot.slane %v3270, 5
        %v3423 = vrot.slane %v3422, 4
        %v3424 = vrot.slane %v3271, 5
        %v3425 = vsel %vm1541, %v3423, %v3424
        %v3426 = vrot.slane %v3424, 4
        %v3427 = vrot.slane %v3272, 5
        %v3428 = vsel %vm1541, %v3426, %v3427
        %v3429 = vrot.slane %v3273, 5
        %v3430 = vrot.slane %v3429, 4
        %v3431 = vrot.slane %v3274, 5
        %v3432 = vsel %vm1541, %v3430, %v3431
        %v3433 = vrot.slane %v3431, 4
        %v3434 = vrot.slane %v3275, 5
        %v3435 = vsel %vm1541, %v3433, %v3434
        %v3436 = vld [vmem:[#allocation2] sm:$0xff]
        %v3437 = vld [vmem:[#allocation2 + $0x8] sm:$0xff]
        %v3438 = vld [vmem:[#allocation2 + $0x10] sm:$0xff]
        %v3439 = vld [vmem:[#allocation2 + $0x18] sm:$0xff]
        %v3440 = vld [vmem:[#allocation2 + $0x20] sm:$0xff]
        %v3441 = vld [vmem:[#allocation2 + $0x28] sm:$0xff]
        %v3442 = vld [vmem:[#allocation2 + $0x30] sm:$0xff]
        %v3443 = vld [vmem:[#allocation2 + $0x38] sm:$0xff]
        %v3444 = vld [vmem:[#allocation2 + $0x40] sm:$0xff]
        %v3445 = vld [vmem:[#allocation2 + $0x48] sm:$0xff]
        %v3446 = vld [vmem:[#allocation2 + $0x50] sm:$0xff]
        %v3447 = vld [vmem:[#allocation2 + $0x58] sm:$0xff]
        %v3448 = vld [vmem:[#allocation2 + $0x60] sm:$0xff]
        %v3449 = vld [vmem:[#allocation2 + $0x68] sm:$0xff]
        %v3450 = vld [vmem:[#allocation2 + $0x70] sm:$0xff]
        %v3451 = vld [vmem:[#allocation2 + $0x78] sm:$0xff]
        %v3452 = vld [vmem:[#allocation2 + $0x80] sm:$0xff]
        %v3453 = vld [vmem:[#allocation2 + $0x88] sm:$0xff]
        %v3454 = vld [vmem:[#allocation2 + $0x90] sm:$0xff]
        %v3455 = vld [vmem:[#allocation2 + $0x98] sm:$0xff]
        %v3456 = vld [vmem:[#allocation2 + $0xa0] sm:$0xff]
        %v3457 = vld [vmem:[#allocation2 + $0xa8] sm:$0xff]
        %v3458 = vld [vmem:[#allocation2 + $0xb0] sm:$0xff]
        %v3459 = vld [vmem:[#allocation2 + $0xb8] sm:$0xff]
        %v3460 = vld [vmem:[#allocation2 + $0xc0] sm:$0xff]
        %v3461 = vld [vmem:[#allocation2 + $0xc8] sm:$0xff]
        %v3462 = vld [vmem:[#allocation2 + $0xd0] sm:$0xff]
        %v3463 = vld [vmem:[#allocation2 + $0xd8] sm:$0xff]
        %v3464 = vld [vmem:[#allocation2 + $0xe0] sm:$0xff]
        %v3465 = vld [vmem:[#allocation2 + $0xe8] sm:$0xff]
        %v3466 = vld [vmem:[#allocation2 + $0xf0] sm:$0xff]
        %v3467 = vld [vmem:[#allocation2 + $0xf8] sm:$0xff]
        %s3468 = scalar_lea.vmem %s1, 10
        %v3469 = vld [vmem:[%s3468] sm:$0x3]
        %v3470 = vunpack.c.l.b16 %v3327
        %v3471 = vunpack.c.l.b16 %v3330
        %v3472 = vunpack.c.l.b16 %v3334
        %v3473 = vunpack.c.l.b16 %v3337
        %v3474 = vunpack.c.l.b16 %v3341
        %v3475 = vunpack.c.l.b16 %v3344
        %v3476 = vunpack.c.l.b16 %v3348
        %v3477 = vunpack.c.l.b16 %v3351
        %v3478 = vunpack.c.l.b16 %v3355
        %v3479 = vunpack.c.l.b16 %v3358
        %v3480 = vunpack.c.l.b16 %v3362
        %v3481 = vunpack.c.l.b16 %v3365
        %v3482 = vunpack.c.l.b16 %v3369
        %v3483 = vunpack.c.l.b16 %v3372
        %v3484 = vunpack.c.l.b16 %v3376
        %v3485 = vunpack.c.l.b16 %v3379
        %v3486 = vunpack.c.l.b16 %v3383
        %v3487 = vunpack.c.l.b16 %v3386
        %v3488 = vunpack.c.l.b16 %v3390
        %v3489 = vunpack.c.l.b16 %v3393
        %v3490 = vunpack.c.l.b16 %v3397
        %v3491 = vunpack.c.l.b16 %v3400
        %v3492 = vunpack.c.l.b16 %v3404
        %v3493 = vunpack.c.l.b16 %v3407
        %v3494 = vunpack.c.l.b16 %v3411
        %v3495 = vunpack.c.l.b16 %v3414
        %v3496 = vunpack.c.l.b16 %v3418
        %v3497 = vunpack.c.l.b16 %v3421
        %v3498 = vunpack.c.l.b16 %v3425
        %v3499 = vunpack.c.l.b16 %v3428
        %v3500 = vunpack.c.l.b16 %v3432
        %v3501 = vunpack.c.l.b16 %v3435
        %v3502 = vpack.c.b16 %v3471, %v3470
        %v3503 = vpack.c.b16 %v3473, %v3472
        %v3504 = vpack.c.b16 %v3475, %v3474
        %v3505 = vpack.c.b16 %v3477, %v3476
        %v3506 = vpack.c.b16 %v3479, %v3478
        %v3507 = vpack.c.b16 %v3481, %v3480
        %v3508 = vpack.c.b16 %v3483, %v3482
        %v3509 = vpack.c.b16 %v3485, %v3484
        %v3510 = vpack.c.b16 %v3487, %v3486
        %v3511 = vpack.c.b16 %v3489, %v3488
        %v3512 = vpack.c.b16 %v3491, %v3490
        %v3513 = vpack.c.b16 %v3493, %v3492
        %v3514 = vpack.c.b16 %v3495, %v3494
        %v3515 = vpack.c.b16 %v3497, %v3496
        %v3516 = vpack.c.b16 %v3499, %v3498
        %v3517 = vpack.c.b16 %v3501, %v3500
        %v3519 = vsel %vm372, %v3502, 0
        %v3522 = vsel %vm372, %v3503, 0
        %v3525 = vsel %vm372, %v3504, 0
        %v3528 = vsel %vm372, %v3505, 0
        %v3531 = vsel %vm372, %v3506, 0
        %v3534 = vsel %vm372, %v3507, 0
        %v3537 = vsel %vm372, %v3508, 0
        %v3540 = vsel %vm372, %v3509, 0
        %v3543 = vsel %vm372, %v3510, 0
        %v3546 = vsel %vm372, %v3511, 0
        %v3549 = vsel %vm372, %v3512, 0
        %v3552 = vsel %vm372, %v3513, 0
        %v3555 = vsel %vm372, %v3514, 0
        %v3558 = vsel %vm372, %v3515, 0
        %v3561 = vsel %vm372, %v3516, 0
        %v3564 = vsel %vm372, %v3517, 0
        %v3567 = vsel %vm421, %v3469, 0
        %3569 = vmatprep.subr.bf16.mxu0 0
        %3570 = vmatpush1.bf16.msra.mxu0 0
        %3571 = vmatprep.subr.bf16.mxu0 0
        %3572 = vmatpush1.bf16.msra.mxu0 0
        %3573 = vmatprep.subr.bf16.mxu0 0
        %3574 = vmatpush1.bf16.msra.mxu0 0
        %3575 = vmatprep.subr.bf16.mxu0 0
        %3576 = vmatpush1.bf16.msra.mxu0 0
        %3577 = vmatprep.subr.bf16.mxu0 0
        %3578 = vmatpush1.bf16.msra.mxu0 0
        %3579 = vmatprep.subr.bf16.mxu0 0
        %3580 = vmatpush1.bf16.msra.mxu0 0
        %3581 = vmatprep.subr.bf16.mxu0 0
        %3582 = vmatpush1.bf16.msra.mxu0 0
        %3583 = vmatprep.subr.bf16.mxu0 0
        %3584 = vmatpush1.bf16.msra.mxu0 %v3567
        %3585 = vmatprep.subr.bf16.mxu0 0
        %3586 = vmatpush2.bf16.msra.mxu0 0
        %3587 = vmatprep.subr.bf16.mxu0 0
        %3588 = vmatpush2.bf16.msra.mxu0 0
        %3589 = vmatprep.subr.bf16.mxu0 0
        %3590 = vmatpush2.bf16.msra.mxu0 0
        %3591 = vmatprep.subr.bf16.mxu0 0
        %3592 = vmatpush2.bf16.msra.mxu0 0
        %3593 = vmatprep.subr.bf16.mxu0 0
        %3594 = vmatpush2.bf16.msra.mxu0 0
        %3595 = vmatprep.subr.bf16.mxu0 0
        %3596 = vmatpush2.bf16.msra.mxu0 0
        %3597 = vmatprep.subr.bf16.mxu0 0
        %3598 = vmatpush2.bf16.msra.mxu0 0
        %3599 = vmatprep.subr.bf16.mxu0 0
        %3600 = vmatpush2.bf16.msra.mxu0 0
        %3601 = vmatprep.mubr.bf16.mxu0 0
        %3602 = vmatmul.mubr.bf16.gmra.mxu0 %v3519
        %v3603 = vpop.f32.mrf.mxu0
        %v3604 = vadd.f32 0.0, %v3603
        %v3605 = vpop.f32.mrf.mxu0
        %v3606 = vpop.f32.mrf.mxu0
        %v3607 = vadd.f32 0.0, %v3606
        %v3608 = vpop.f32.mrf.mxu0
        %3609 = vmatprep.mubr.bf16.mxu0 0
        %3610 = vmatmul.mubr.bf16.gmra.mxu0 %v3522
        %v3611 = vpop.f32.mrf.mxu0
        %v3612 = vadd.f32 0.0, %v3611
        %v3613 = vpop.f32.mrf.mxu0
        %v3614 = vpop.f32.mrf.mxu0
        %v3615 = vadd.f32 0.0, %v3614
        %v3616 = vpop.f32.mrf.mxu0
        %3617 = vmatprep.mubr.bf16.mxu0 0
        %3618 = vmatmul.mubr.bf16.gmra.mxu0 %v3525
        %v3619 = vpop.f32.mrf.mxu0
        %v3620 = vadd.f32 0.0, %v3619
        %v3621 = vpop.f32.mrf.mxu0
        %v3622 = vpop.f32.mrf.mxu0
        %v3623 = vadd.f32 0.0, %v3622
        %v3624 = vpop.f32.mrf.mxu0
        %3625 = vmatprep.mubr.bf16.mxu0 0
        %3626 = vmatmul.mubr.bf16.gmra.mxu0 %v3528
        %v3627 = vpop.f32.mrf.mxu0
        %v3628 = vadd.f32 0.0, %v3627
        %v3629 = vpop.f32.mrf.mxu0
        %v3630 = vpop.f32.mrf.mxu0
        %v3631 = vadd.f32 0.0, %v3630
        %v3632 = vpop.f32.mrf.mxu0
        %3633 = vmatprep.mubr.bf16.mxu0 0
        %3634 = vmatmul.mubr.bf16.gmra.mxu0 %v3531
        %v3635 = vpop.f32.mrf.mxu0
        %v3636 = vadd.f32 0.0, %v3635
        %v3637 = vpop.f32.mrf.mxu0
        %v3638 = vpop.f32.mrf.mxu0
        %v3639 = vadd.f32 0.0, %v3638
        %v3640 = vpop.f32.mrf.mxu0
        %3641 = vmatprep.mubr.bf16.mxu0 0
        %3642 = vmatmul.mubr.bf16.gmra.mxu0 %v3534
        %v3643 = vpop.f32.mrf.mxu0
        %v3644 = vadd.f32 0.0, %v3643
        %v3645 = vpop.f32.mrf.mxu0
        %v3646 = vpop.f32.mrf.mxu0
        %v3647 = vadd.f32 0.0, %v3646
        %v3648 = vpop.f32.mrf.mxu0
        %3649 = vmatprep.mubr.bf16.mxu0 0
        %3650 = vmatmul.mubr.bf16.gmra.mxu0 %v3537
        %v3651 = vpop.f32.mrf.mxu0
        %v3652 = vadd.f32 0.0, %v3651
        %v3653 = vpop.f32.mrf.mxu0
        %v3654 = vpop.f32.mrf.mxu0
        %v3655 = vadd.f32 0.0, %v3654
        %v3656 = vpop.f32.mrf.mxu0
        %3657 = vmatprep.mubr.bf16.mxu0 0
        %3658 = vmatmul.mubr.bf16.gmra.mxu0 %v3540
        %v3659 = vpop.f32.mrf.mxu0
        %v3660 = vadd.f32 0.0, %v3659
        %v3661 = vpop.f32.mrf.mxu0
        %v3662 = vpop.f32.mrf.mxu0
        %v3663 = vadd.f32 0.0, %v3662
        %v3664 = vpop.f32.mrf.mxu0
        %3665 = vmatprep.mubr.bf16.mxu0 0
        %3666 = vmatmul.mubr.bf16.gmra.mxu0 %v3543
        %v3667 = vpop.f32.mrf.mxu0
        %v3668 = vadd.f32 0.0, %v3667
        %v3669 = vpop.f32.mrf.mxu0
        %v3670 = vpop.f32.mrf.mxu0
        %v3671 = vadd.f32 0.0, %v3670
        %v3672 = vpop.f32.mrf.mxu0
        %3673 = vmatprep.mubr.bf16.mxu0 0
        %3674 = vmatmul.mubr.bf16.gmra.mxu0 %v3546
        %v3675 = vpop.f32.mrf.mxu0
        %v3676 = vadd.f32 0.0, %v3675
        %v3677 = vpop.f32.mrf.mxu0
        %v3678 = vpop.f32.mrf.mxu0
        %v3679 = vadd.f32 0.0, %v3678
        %v3680 = vpop.f32.mrf.mxu0
        %3681 = vmatprep.mubr.bf16.mxu0 0
        %3682 = vmatmul.mubr.bf16.gmra.mxu0 %v3549
        %v3683 = vpop.f32.mrf.mxu0
        %v3684 = vadd.f32 0.0, %v3683
        %v3685 = vpop.f32.mrf.mxu0
        %v3686 = vpop.f32.mrf.mxu0
        %v3687 = vadd.f32 0.0, %v3686
        %v3688 = vpop.f32.mrf.mxu0
        %3689 = vmatprep.mubr.bf16.mxu0 0
        %3690 = vmatmul.mubr.bf16.gmra.mxu0 %v3552
        %v3691 = vpop.f32.mrf.mxu0
        %v3692 = vadd.f32 0.0, %v3691
        %v3693 = vpop.f32.mrf.mxu0
        %v3694 = vpop.f32.mrf.mxu0
        %v3695 = vadd.f32 0.0, %v3694
        %v3696 = vpop.f32.mrf.mxu0
        %3697 = vmatprep.mubr.bf16.mxu0 0
        %3698 = vmatmul.mubr.bf16.gmra.mxu0 %v3555
        %v3699 = vpop.f32.mrf.mxu0
        %v3700 = vadd.f32 0.0, %v3699
        %v3701 = vpop.f32.mrf.mxu0
        %v3702 = vpop.f32.mrf.mxu0
        %v3703 = vadd.f32 0.0, %v3702
        %v3704 = vpop.f32.mrf.mxu0
        %3705 = vmatprep.mubr.bf16.mxu0 0
        %3706 = vmatmul.mubr.bf16.gmra.mxu0 %v3558
        %v3707 = vpop.f32.mrf.mxu0
        %v3708 = vadd.f32 0.0, %v3707
        %v3709 = vpop.f32.mrf.mxu0
        %v3710 = vpop.f32.mrf.mxu0
        %v3711 = vadd.f32 0.0, %v3710
        %v3712 = vpop.f32.mrf.mxu0
        %3713 = vmatprep.mubr.bf16.mxu0 0
        %3714 = vmatmul.mubr.bf16.gmra.mxu0 %v3561
        %v3715 = vpop.f32.mrf.mxu0
        %v3716 = vadd.f32 0.0, %v3715
        %v3717 = vpop.f32.mrf.mxu0
        %v3718 = vpop.f32.mrf.mxu0
        %v3719 = vadd.f32 0.0, %v3718
        %v3720 = vpop.f32.mrf.mxu0
        %3721 = vmatprep.mubr.bf16.mxu0 0
        %3722 = vmatmul.mubr.bf16.gmra.mxu0 %v3564
        %v3723 = vpop.f32.mrf.mxu0
        %v3724 = vadd.f32 0.0, %v3723
        %v3725 = vpop.f32.mrf.mxu0
        %v3726 = vpop.f32.mrf.mxu0
        %v3727 = vadd.f32 0.0, %v3726
        %v3728 = vpop.f32.mrf.mxu0
        %3729 = vdwg.mxu0
        %v3730 = vadd.f32 %v3436, %v3604
        %v3731 = vadd.f32 %v3437, %v3607
        %v3732 = vadd.f32 %v3438, %v3612
        %v3733 = vadd.f32 %v3439, %v3615
        %v3734 = vadd.f32 %v3440, %v3620
        %v3735 = vadd.f32 %v3441, %v3623
        %v3736 = vadd.f32 %v3442, %v3628
        %v3737 = vadd.f32 %v3443, %v3631
        %v3738 = vadd.f32 %v3444, %v3636
        %v3739 = vadd.f32 %v3445, %v3639
        %v3740 = vadd.f32 %v3446, %v3644
        %v3741 = vadd.f32 %v3447, %v3647
        %v3742 = vadd.f32 %v3448, %v3652
        %v3743 = vadd.f32 %v3449, %v3655
        %v3744 = vadd.f32 %v3450, %v3660
        %v3745 = vadd.f32 %v3451, %v3663
        %v3746 = vadd.f32 %v3452, %v3668
        %v3747 = vadd.f32 %v3453, %v3671
        %v3748 = vadd.f32 %v3454, %v3676
        %v3749 = vadd.f32 %v3455, %v3679
        %v3750 = vadd.f32 %v3456, %v3684
        %v3751 = vadd.f32 %v3457, %v3687
        %v3752 = vadd.f32 %v3458, %v3692
        %v3753 = vadd.f32 %v3459, %v3695
        %v3754 = vadd.f32 %v3460, %v3700
        %v3755 = vadd.f32 %v3461, %v3703
        %v3756 = vadd.f32 %v3462, %v3708
        %v3757 = vadd.f32 %v3463, %v3711
        %v3758 = vadd.f32 %v3464, %v3716
        %v3759 = vadd.f32 %v3465, %v3719
        %v3760 = vadd.f32 %v3466, %v3724
        %v3761 = vadd.f32 %v3467, %v3727
        %3762 = vst [vmem:[#allocation2] sm:$0xff] %v3730
        %3763 = vst [vmem:[#allocation2 + $0x8] sm:$0xff] %v3731
        %3764 = vst [vmem:[#allocation2 + $0x10] sm:$0xff] %v3732
        %3765 = vst [vmem:[#allocation2 + $0x18] sm:$0xff] %v3733
        %3766 = vst [vmem:[#allocation2 + $0x20] sm:$0xff] %v3734
        %3767 = vst [vmem:[#allocation2 + $0x28] sm:$0xff] %v3735
        %3768 = vst [vmem:[#allocation2 + $0x30] sm:$0xff] %v3736
        %3769 = vst [vmem:[#allocation2 + $0x38] sm:$0xff] %v3737
        %3770 = vst [vmem:[#allocation2 + $0x40] sm:$0xff] %v3738
        %3771 = vst [vmem:[#allocation2 + $0x48] sm:$0xff] %v3739
        %3772 = vst [vmem:[#allocation2 + $0x50] sm:$0xff] %v3740
        %3773 = vst [vmem:[#allocation2 + $0x58] sm:$0xff] %v3741
        %3774 = vst [vmem:[#allocation2 + $0x60] sm:$0xff] %v3742
        %3775 = vst [vmem:[#allocation2 + $0x68] sm:$0xff] %v3743
        %3776 = vst [vmem:[#allocation2 + $0x70] sm:$0xff] %v3744
        %3777 = vst [vmem:[#allocation2 + $0x78] sm:$0xff] %v3745
        %3778 = vst [vmem:[#allocation2 + $0x80] sm:$0xff] %v3746
        %3779 = vst [vmem:[#allocation2 + $0x88] sm:$0xff] %v3747
        %3780 = vst [vmem:[#allocation2 + $0x90] sm:$0xff] %v3748
        %3781 = vst [vmem:[#allocation2 + $0x98] sm:$0xff] %v3749
        %3782 = vst [vmem:[#allocation2 + $0xa0] sm:$0xff] %v3750
        %3783 = vst [vmem:[#allocation2 + $0xa8] sm:$0xff] %v3751
        %3784 = vst [vmem:[#allocation2 + $0xb0] sm:$0xff] %v3752
        %3785 = vst [vmem:[#allocation2 + $0xb8] sm:$0xff] %v3753
        %3786 = vst [vmem:[#allocation2 + $0xc0] sm:$0xff] %v3754
        %3787 = vst [vmem:[#allocation2 + $0xc8] sm:$0xff] %v3755
        %3788 = vst [vmem:[#allocation2 + $0xd0] sm:$0xff] %v3756
        %3789 = vst [vmem:[#allocation2 + $0xd8] sm:$0xff] %v3757
        %3790 = vst [vmem:[#allocation2 + $0xe0] sm:$0xff] %v3758
        %3791 = vst [vmem:[#allocation2 + $0xe8] sm:$0xff] %v3759
        %3792 = vst [vmem:[#allocation2 + $0xf0] sm:$0xff] %v3760
        %3793 = vst [vmem:[#allocation2 + $0xf8] sm:$0xff] %v3761
        %s3794 = sadd.s32 %s191, 2
        %s3795 = smul.u32 %s3794, 3
        %s3796 = smul.addr %s3795, 4
        %s3797 = scalar_lea.vmem %s186, %s3796
        %v3798 = vld [vmem:[%s3797] sm:$0xf]
        %v3799 = vld [vmem:[%s3797 + $0x4] sm:$0xf]
        %v3800 = vld [vmem:[%s3797 + $0xc] sm:$0xf]
        %v3801 = vld [vmem:[%s3797 + $0x10] sm:$0xf]
        %v3802 = vld [vmem:[%s3797 + $0x18] sm:$0xf]
        %v3803 = vld [vmem:[%s3797 + $0x1c] sm:$0xf]
        %v3804 = vld [vmem:[%s3797 + $0x24] sm:$0xf]
        %v3805 = vld [vmem:[%s3797 + $0x28] sm:$0xf]
        %v3806 = vld [vmem:[%s3797 + $0x30] sm:$0xf]
        %v3807 = vld [vmem:[%s3797 + $0x34] sm:$0xf]
        %v3808 = vld [vmem:[%s3797 + $0x3c] sm:$0xf]
        %v3809 = vld [vmem:[%s3797 + $0x40] sm:$0xf]
        %v3810 = vld [vmem:[%s3797 + $0x48] sm:$0xf]
        %v3811 = vld [vmem:[%s3797 + $0x4c] sm:$0xf]
        %v3812 = vld [vmem:[%s3797 + $0x54] sm:$0xf]
        %v3813 = vld [vmem:[%s3797 + $0x58] sm:$0xf]
        %v3814 = vld [vmem:[%s3797 + $0x60] sm:$0xf]
        %v3815 = vld [vmem:[%s3797 + $0x64] sm:$0xf]
        %v3816 = vld [vmem:[%s3797 + $0x6c] sm:$0xf]
        %v3817 = vld [vmem:[%s3797 + $0x70] sm:$0xf]
        %v3818 = vld [vmem:[%s3797 + $0x78] sm:$0xf]
        %v3819 = vld [vmem:[%s3797 + $0x7c] sm:$0xf]
        %v3820 = vld [vmem:[%s3797 + $0x84] sm:$0xf]
        %v3821 = vld [vmem:[%s3797 + $0x88] sm:$0xf]
        %v3822 = vld [vmem:[%s3797 + $0x90] sm:$0xf]
        %v3823 = vld [vmem:[%s3797 + $0x94] sm:$0xf]
        %v3824 = vld [vmem:[%s3797 + $0x9c] sm:$0xf]
        %v3825 = vld [vmem:[%s3797 + $0xa0] sm:$0xf]
        %v3826 = vld [vmem:[%s3797 + $0xa8] sm:$0xf]
        %v3827 = vld [vmem:[%s3797 + $0xac] sm:$0xf]
        %v3828 = vld [vmem:[%s3797 + $0xb4] sm:$0xf]
        %v3829 = vld [vmem:[%s3797 + $0xb8] sm:$0xf]
        %v3830 = vld [vmem:[#allocation2] sm:$0xff]
        %v3831 = vld [vmem:[#allocation2 + $0x8] sm:$0xff]
        %v3832 = vld [vmem:[#allocation2 + $0x10] sm:$0xff]
        %v3833 = vld [vmem:[#allocation2 + $0x18] sm:$0xff]
        %v3834 = vld [vmem:[#allocation2 + $0x20] sm:$0xff]
        %v3835 = vld [vmem:[#allocation2 + $0x28] sm:$0xff]
        %v3836 = vld [vmem:[#allocation2 + $0x30] sm:$0xff]
        %v3837 = vld [vmem:[#allocation2 + $0x38] sm:$0xff]
        %v3838 = vld [vmem:[#allocation2 + $0x40] sm:$0xff]
        %v3839 = vld [vmem:[#allocation2 + $0x48] sm:$0xff]
        %v3840 = vld [vmem:[#allocation2 + $0x50] sm:$0xff]
        %v3841 = vld [vmem:[#allocation2 + $0x58] sm:$0xff]
        %v3842 = vld [vmem:[#allocation2 + $0x60] sm:$0xff]
        %v3843 = vld [vmem:[#allocation2 + $0x68] sm:$0xff]
        %v3844 = vld [vmem:[#allocation2 + $0x70] sm:$0xff]
        %v3845 = vld [vmem:[#allocation2 + $0x78] sm:$0xff]
        %v3846 = vld [vmem:[#allocation2 + $0x80] sm:$0xff]
        %v3847 = vld [vmem:[#allocation2 + $0x88] sm:$0xff]
        %v3848 = vld [vmem:[#allocation2 + $0x90] sm:$0xff]
        %v3849 = vld [vmem:[#allocation2 + $0x98] sm:$0xff]
        %v3850 = vld [vmem:[#allocation2 + $0xa0] sm:$0xff]
        %v3851 = vld [vmem:[#allocation2 + $0xa8] sm:$0xff]
        %v3852 = vld [vmem:[#allocation2 + $0xb0] sm:$0xff]
        %v3853 = vld [vmem:[#allocation2 + $0xb8] sm:$0xff]
        %v3854 = vld [vmem:[#allocation2 + $0xc0] sm:$0xff]
        %v3855 = vld [vmem:[#allocation2 + $0xc8] sm:$0xff]
        %v3856 = vld [vmem:[#allocation2 + $0xd0] sm:$0xff]
        %v3857 = vld [vmem:[#allocation2 + $0xd8] sm:$0xff]
        %v3858 = vld [vmem:[#allocation2 + $0xe0] sm:$0xff]
        %v3859 = vld [vmem:[#allocation2 + $0xe8] sm:$0xff]
        %v3860 = vld [vmem:[#allocation2 + $0xf0] sm:$0xff]
        %v3861 = vld [vmem:[#allocation2 + $0xf8] sm:$0xff]
        %s3862 = scalar_lea.vmem %s1, 12
        %v3863 = vld [vmem:[%s3862] sm:$0x3]
        %v3896 = vunpack.c.l.b16 %v3798
        %v3897 = vunpack.c.l.b16 %v3799
        %v3898 = vunpack.c.l.b16 %v3800
        %v3899 = vunpack.c.l.b16 %v3801
        %v3900 = vunpack.c.l.b16 %v3802
        %v3901 = vunpack.c.l.b16 %v3803
        %v3902 = vunpack.c.l.b16 %v3804
        %v3903 = vunpack.c.l.b16 %v3805
        %v3904 = vunpack.c.l.b16 %v3806
        %v3905 = vunpack.c.l.b16 %v3807
        %v3906 = vunpack.c.l.b16 %v3808
        %v3907 = vunpack.c.l.b16 %v3809
        %v3908 = vunpack.c.l.b16 %v3810
        %v3909 = vunpack.c.l.b16 %v3811
        %v3910 = vunpack.c.l.b16 %v3812
        %v3911 = vunpack.c.l.b16 %v3813
        %v3912 = vunpack.c.l.b16 %v3814
        %v3913 = vunpack.c.l.b16 %v3815
        %v3914 = vunpack.c.l.b16 %v3816
        %v3915 = vunpack.c.l.b16 %v3817
        %v3916 = vunpack.c.l.b16 %v3818
        %v3917 = vunpack.c.l.b16 %v3819
        %v3918 = vunpack.c.l.b16 %v3820
        %v3919 = vunpack.c.l.b16 %v3821
        %v3920 = vunpack.c.l.b16 %v3822
        %v3921 = vunpack.c.l.b16 %v3823
        %v3922 = vunpack.c.l.b16 %v3824
        %v3923 = vunpack.c.l.b16 %v3825
        %v3924 = vunpack.c.l.b16 %v3826
        %v3925 = vunpack.c.l.b16 %v3827
        %v3926 = vunpack.c.l.b16 %v3828
        %v3927 = vunpack.c.l.b16 %v3829
        %v3928 = vpack.c.b16 %v3897, %v3896
        %v3929 = vpack.c.b16 %v3899, %v3898
        %v3930 = vpack.c.b16 %v3901, %v3900
        %v3931 = vpack.c.b16 %v3903, %v3902
        %v3932 = vpack.c.b16 %v3905, %v3904
        %v3933 = vpack.c.b16 %v3907, %v3906
        %v3934 = vpack.c.b16 %v3909, %v3908
        %v3935 = vpack.c.b16 %v3911, %v3910
        %v3936 = vpack.c.b16 %v3913, %v3912
        %v3937 = vpack.c.b16 %v3915, %v3914
        %v3938 = vpack.c.b16 %v3917, %v3916
        %v3939 = vpack.c.b16 %v3919, %v3918
        %v3940 = vpack.c.b16 %v3921, %v3920
        %v3941 = vpack.c.b16 %v3923, %v3922
        %v3942 = vpack.c.b16 %v3925, %v3924
        %v3943 = vpack.c.b16 %v3927, %v3926
        %v3945 = vsel %vm372, %v3928, 0
        %v3948 = vsel %vm372, %v3929, 0
        %v3951 = vsel %vm372, %v3930, 0
        %v3954 = vsel %vm372, %v3931, 0
        %v3957 = vsel %vm372, %v3932, 0
        %v3960 = vsel %vm372, %v3933, 0
        %v3963 = vsel %vm372, %v3934, 0
        %v3966 = vsel %vm372, %v3935, 0
        %v3969 = vsel %vm372, %v3936, 0
        %v3972 = vsel %vm372, %v3937, 0
        %v3975 = vsel %vm372, %v3938, 0
        %v3978 = vsel %vm372, %v3939, 0
        %v3981 = vsel %vm372, %v3940, 0
        %v3984 = vsel %vm372, %v3941, 0
        %v3987 = vsel %vm372, %v3942, 0
        %v3990 = vsel %vm372, %v3943, 0
        %v3993 = vsel %vm421, %v3863, 0
        %3995 = vmatprep.subr.bf16.mxu0 0
        %3996 = vmatpush1.bf16.msra.mxu0 0
        %3997 = vmatprep.subr.bf16.mxu0 0
        %3998 = vmatpush1.bf16.msra.mxu0 0
        %3999 = vmatprep.subr.bf16.mxu0 0
        %4000 = vmatpush1.bf16.msra.mxu0 0
        %4001 = vmatprep.subr.bf16.mxu0 0
        %4002 = vmatpush1.bf16.msra.mxu0 0
        %4003 = vmatprep.subr.bf16.mxu0 0
        %4004 = vmatpush1.bf16.msra.mxu0 0
        %4005 = vmatprep.subr.bf16.mxu0 0
        %4006 = vmatpush1.bf16.msra.mxu0 0
        %4007 = vmatprep.subr.bf16.mxu0 0
        %4008 = vmatpush1.bf16.msra.mxu0 0
        %4009 = vmatprep.subr.bf16.mxu0 0
        %4010 = vmatpush1.bf16.msra.mxu0 %v3993
        %4011 = vmatprep.subr.bf16.mxu0 0
        %4012 = vmatpush2.bf16.msra.mxu0 0
        %4013 = vmatprep.subr.bf16.mxu0 0
        %4014 = vmatpush2.bf16.msra.mxu0 0
        %4015 = vmatprep.subr.bf16.mxu0 0
        %4016 = vmatpush2.bf16.msra.mxu0 0
        %4017 = vmatprep.subr.bf16.mxu0 0
        %4018 = vmatpush2.bf16.msra.mxu0 0
        %4019 = vmatprep.subr.bf16.mxu0 0
        %4020 = vmatpush2.bf16.msra.mxu0 0
        %4021 = vmatprep.subr.bf16.mxu0 0
        %4022 = vmatpush2.bf16.msra.mxu0 0
        %4023 = vmatprep.subr.bf16.mxu0 0
        %4024 = vmatpush2.bf16.msra.mxu0 0
        %4025 = vmatprep.subr.bf16.mxu0 0
        %4026 = vmatpush2.bf16.msra.mxu0 0
        %4027 = vmatprep.mubr.bf16.mxu0 0
        %4028 = vmatmul.mubr.bf16.gmra.mxu0 %v3945
        %v4029 = vpop.f32.mrf.mxu0
        %v4030 = vadd.f32 0.0, %v4029
        %v4031 = vpop.f32.mrf.mxu0
        %v4032 = vpop.f32.mrf.mxu0
        %v4033 = vadd.f32 0.0, %v4032
        %v4034 = vpop.f32.mrf.mxu0
        %4035 = vmatprep.mubr.bf16.mxu0 0
        %4036 = vmatmul.mubr.bf16.gmra.mxu0 %v3948
        %v4037 = vpop.f32.mrf.mxu0
        %v4038 = vadd.f32 0.0, %v4037
        %v4039 = vpop.f32.mrf.mxu0
        %v4040 = vpop.f32.mrf.mxu0
        %v4041 = vadd.f32 0.0, %v4040
        %v4042 = vpop.f32.mrf.mxu0
        %4043 = vmatprep.mubr.bf16.mxu0 0
        %4044 = vmatmul.mubr.bf16.gmra.mxu0 %v3951
        %v4045 = vpop.f32.mrf.mxu0
        %v4046 = vadd.f32 0.0, %v4045
        %v4047 = vpop.f32.mrf.mxu0
        %v4048 = vpop.f32.mrf.mxu0
        %v4049 = vadd.f32 0.0, %v4048
        %v4050 = vpop.f32.mrf.mxu0
        %4051 = vmatprep.mubr.bf16.mxu0 0
        %4052 = vmatmul.mubr.bf16.gmra.mxu0 %v3954
        %v4053 = vpop.f32.mrf.mxu0
        %v4054 = vadd.f32 0.0, %v4053
        %v4055 = vpop.f32.mrf.mxu0
        %v4056 = vpop.f32.mrf.mxu0
        %v4057 = vadd.f32 0.0, %v4056
        %v4058 = vpop.f32.mrf.mxu0
        %4059 = vmatprep.mubr.bf16.mxu0 0
        %4060 = vmatmul.mubr.bf16.gmra.mxu0 %v3957
        %v4061 = vpop.f32.mrf.mxu0
        %v4062 = vadd.f32 0.0, %v4061
        %v4063 = vpop.f32.mrf.mxu0
        %v4064 = vpop.f32.mrf.mxu0
        %v4065 = vadd.f32 0.0, %v4064
        %v4066 = vpop.f32.mrf.mxu0
        %4067 = vmatprep.mubr.bf16.mxu0 0
        %4068 = vmatmul.mubr.bf16.gmra.mxu0 %v3960
        %v4069 = vpop.f32.mrf.mxu0
        %v4070 = vadd.f32 0.0, %v4069
        %v4071 = vpop.f32.mrf.mxu0
        %v4072 = vpop.f32.mrf.mxu0
        %v4073 = vadd.f32 0.0, %v4072
        %v4074 = vpop.f32.mrf.mxu0
        %4075 = vmatprep.mubr.bf16.mxu0 0
        %4076 = vmatmul.mubr.bf16.gmra.mxu0 %v3963
        %v4077 = vpop.f32.mrf.mxu0
        %v4078 = vadd.f32 0.0, %v4077
        %v4079 = vpop.f32.mrf.mxu0
        %v4080 = vpop.f32.mrf.mxu0
        %v4081 = vadd.f32 0.0, %v4080
        %v4082 = vpop.f32.mrf.mxu0
        %4083 = vmatprep.mubr.bf16.mxu0 0
        %4084 = vmatmul.mubr.bf16.gmra.mxu0 %v3966
        %v4085 = vpop.f32.mrf.mxu0
        %v4086 = vadd.f32 0.0, %v4085
        %v4087 = vpop.f32.mrf.mxu0
        %v4088 = vpop.f32.mrf.mxu0
        %v4089 = vadd.f32 0.0, %v4088
        %v4090 = vpop.f32.mrf.mxu0
        %4091 = vmatprep.mubr.bf16.mxu0 0
        %4092 = vmatmul.mubr.bf16.gmra.mxu0 %v3969
        %v4093 = vpop.f32.mrf.mxu0
        %v4094 = vadd.f32 0.0, %v4093
        %v4095 = vpop.f32.mrf.mxu0
        %v4096 = vpop.f32.mrf.mxu0
        %v4097 = vadd.f32 0.0, %v4096
        %v4098 = vpop.f32.mrf.mxu0
        %4099 = vmatprep.mubr.bf16.mxu0 0
        %4100 = vmatmul.mubr.bf16.gmra.mxu0 %v3972
        %v4101 = vpop.f32.mrf.mxu0
        %v4102 = vadd.f32 0.0, %v4101
        %v4103 = vpop.f32.mrf.mxu0
        %v4104 = vpop.f32.mrf.mxu0
        %v4105 = vadd.f32 0.0, %v4104
        %v4106 = vpop.f32.mrf.mxu0
        %4107 = vmatprep.mubr.bf16.mxu0 0
        %4108 = vmatmul.mubr.bf16.gmra.mxu0 %v3975
        %v4109 = vpop.f32.mrf.mxu0
        %v4110 = vadd.f32 0.0, %v4109
        %v4111 = vpop.f32.mrf.mxu0
        %v4112 = vpop.f32.mrf.mxu0
        %v4113 = vadd.f32 0.0, %v4112
        %v4114 = vpop.f32.mrf.mxu0
        %4115 = vmatprep.mubr.bf16.mxu0 0
        %4116 = vmatmul.mubr.bf16.gmra.mxu0 %v3978
        %v4117 = vpop.f32.mrf.mxu0
        %v4118 = vadd.f32 0.0, %v4117
        %v4119 = vpop.f32.mrf.mxu0
        %v4120 = vpop.f32.mrf.mxu0
        %v4121 = vadd.f32 0.0, %v4120
        %v4122 = vpop.f32.mrf.mxu0
        %4123 = vmatprep.mubr.bf16.mxu0 0
        %4124 = vmatmul.mubr.bf16.gmra.mxu0 %v3981
        %v4125 = vpop.f32.mrf.mxu0
        %v4126 = vadd.f32 0.0, %v4125
        %v4127 = vpop.f32.mrf.mxu0
        %v4128 = vpop.f32.mrf.mxu0
        %v4129 = vadd.f32 0.0, %v4128
        %v4130 = vpop.f32.mrf.mxu0
        %4131 = vmatprep.mubr.bf16.mxu0 0
        %4132 = vmatmul.mubr.bf16.gmra.mxu0 %v3984
        %v4133 = vpop.f32.mrf.mxu0
        %v4134 = vadd.f32 0.0, %v4133
        %v4135 = vpop.f32.mrf.mxu0
        %v4136 = vpop.f32.mrf.mxu0
        %v4137 = vadd.f32 0.0, %v4136
        %v4138 = vpop.f32.mrf.mxu0
        %4139 = vmatprep.mubr.bf16.mxu0 0
        %4140 = vmatmul.mubr.bf16.gmra.mxu0 %v3987
        %v4141 = vpop.f32.mrf.mxu0
        %v4142 = vadd.f32 0.0, %v4141
        %v4143 = vpop.f32.mrf.mxu0
        %v4144 = vpop.f32.mrf.mxu0
        %v4145 = vadd.f32 0.0, %v4144
        %v4146 = vpop.f32.mrf.mxu0
        %4147 = vmatprep.mubr.bf16.mxu0 0
        %4148 = vmatmul.mubr.bf16.gmra.mxu0 %v3990
        %v4149 = vpop.f32.mrf.mxu0
        %v4150 = vadd.f32 0.0, %v4149
        %v4151 = vpop.f32.mrf.mxu0
        %v4152 = vpop.f32.mrf.mxu0
        %v4153 = vadd.f32 0.0, %v4152
        %v4154 = vpop.f32.mrf.mxu0
        %4155 = vdwg.mxu0
        %v4156 = vadd.f32 %v3830, %v4030
        %v4157 = vadd.f32 %v3831, %v4033
        %v4158 = vadd.f32 %v3832, %v4038
        %v4159 = vadd.f32 %v3833, %v4041
        %v4160 = vadd.f32 %v3834, %v4046
        %v4161 = vadd.f32 %v3835, %v4049
        %v4162 = vadd.f32 %v3836, %v4054
        %v4163 = vadd.f32 %v3837, %v4057
        %v4164 = vadd.f32 %v3838, %v4062
        %v4165 = vadd.f32 %v3839, %v4065
        %v4166 = vadd.f32 %v3840, %v4070
        %v4167 = vadd.f32 %v3841, %v4073
        %v4168 = vadd.f32 %v3842, %v4078
        %v4169 = vadd.f32 %v3843, %v4081
        %v4170 = vadd.f32 %v3844, %v4086
        %v4171 = vadd.f32 %v3845, %v4089
        %v4172 = vadd.f32 %v3846, %v4094
        %v4173 = vadd.f32 %v3847, %v4097
        %v4174 = vadd.f32 %v3848, %v4102
        %v4175 = vadd.f32 %v3849, %v4105
        %v4176 = vadd.f32 %v3850, %v4110
        %v4177 = vadd.f32 %v3851, %v4113
        %v4178 = vadd.f32 %v3852, %v4118
        %v4179 = vadd.f32 %v3853, %v4121
        %v4180 = vadd.f32 %v3854, %v4126
        %v4181 = vadd.f32 %v3855, %v4129
        %v4182 = vadd.f32 %v3856, %v4134
        %v4183 = vadd.f32 %v3857, %v4137
        %v4184 = vadd.f32 %v3858, %v4142
        %v4185 = vadd.f32 %v3859, %v4145
        %v4186 = vadd.f32 %v3860, %v4150
        %v4187 = vadd.f32 %v3861, %v4153
        %4188 = vst [vmem:[#allocation2] sm:$0xff] %v4156
        %4189 = vst [vmem:[#allocation2 + $0x8] sm:$0xff] %v4157
        %4190 = vst [vmem:[#allocation2 + $0x10] sm:$0xff] %v4158
        %4191 = vst [vmem:[#allocation2 + $0x18] sm:$0xff] %v4159
        %4192 = vst [vmem:[#allocation2 + $0x20] sm:$0xff] %v4160
        %4193 = vst [vmem:[#allocation2 + $0x28] sm:$0xff] %v4161
        %4194 = vst [vmem:[#allocation2 + $0x30] sm:$0xff] %v4162
        %4195 = vst [vmem:[#allocation2 + $0x38] sm:$0xff] %v4163
        %4196 = vst [vmem:[#allocation2 + $0x40] sm:$0xff] %v4164
        %4197 = vst [vmem:[#allocation2 + $0x48] sm:$0xff] %v4165
        %4198 = vst [vmem:[#allocation2 + $0x50] sm:$0xff] %v4166
        %4199 = vst [vmem:[#allocation2 + $0x58] sm:$0xff] %v4167
        %4200 = vst [vmem:[#allocation2 + $0x60] sm:$0xff] %v4168
        %4201 = vst [vmem:[#allocation2 + $0x68] sm:$0xff] %v4169
        %4202 = vst [vmem:[#allocation2 + $0x70] sm:$0xff] %v4170
        %4203 = vst [vmem:[#allocation2 + $0x78] sm:$0xff] %v4171
        %4204 = vst [vmem:[#allocation2 + $0x80] sm:$0xff] %v4172
        %4205 = vst [vmem:[#allocation2 + $0x88] sm:$0xff] %v4173
        %4206 = vst [vmem:[#allocation2 + $0x90] sm:$0xff] %v4174
        %4207 = vst [vmem:[#allocation2 + $0x98] sm:$0xff] %v4175
        %4208 = vst [vmem:[#allocation2 + $0xa0] sm:$0xff] %v4176
        %4209 = vst [vmem:[#allocation2 + $0xa8] sm:$0xff] %v4177
        %4210 = vst [vmem:[#allocation2 + $0xb0] sm:$0xff] %v4178
        %4211 = vst [vmem:[#allocation2 + $0xb8] sm:$0xff] %v4179
        %4212 = vst [vmem:[#allocation2 + $0xc0] sm:$0xff] %v4180
        %4213 = vst [vmem:[#allocation2 + $0xc8] sm:$0xff] %v4181
        %4214 = vst [vmem:[#allocation2 + $0xd0] sm:$0xff] %v4182
        %4215 = vst [vmem:[#allocation2 + $0xd8] sm:$0xff] %v4183
        %4216 = vst [vmem:[#allocation2 + $0xe0] sm:$0xff] %v4184
        %4217 = vst [vmem:[#allocation2 + $0xe8] sm:$0xff] %v4185
        %4218 = vst [vmem:[#allocation2 + $0xf0] sm:$0xff] %v4186
        %4219 = vst [vmem:[#allocation2 + $0xf8] sm:$0xff] %v4187
        %v4220 = vld [vmem:[%s3797] sm:$0xf]
        %v4221 = vld [vmem:[%s3797 + $0x4] sm:$0xf]
        %v4222 = vld [vmem:[%s3797 + $0x8] sm:$0x1]
        %v4223 = vld [vmem:[%s3797 + $0xc] sm:$0xf]
        %v4224 = vld [vmem:[%s3797 + $0x10] sm:$0xf]
        %v4225 = vld [vmem:[%s3797 + $0x14] sm:$0x1]
        %v4226 = vld [vmem:[%s3797 + $0x18] sm:$0xf]
        %v4227 = vld [vmem:[%s3797 + $0x1c] sm:$0xf]
        %v4228 = vld [vmem:[%s3797 + $0x20] sm:$0x1]
        %v4229 = vld [vmem:[%s3797 + $0x24] sm:$0xf]
        %v4230 = vld [vmem:[%s3797 + $0x28] sm:$0xf]
        %v4231 = vld [vmem:[%s3797 + $0x2c] sm:$0x1]
        %v4232 = vld [vmem:[%s3797 + $0x30] sm:$0xf]
        %v4233 = vld [vmem:[%s3797 + $0x34] sm:$0xf]
        %v4234 = vld [vmem:[%s3797 + $0x38] sm:$0x1]
        %v4235 = vld [vmem:[%s3797 + $0x3c] sm:$0xf]
        %v4236 = vld [vmem:[%s3797 + $0x40] sm:$0xf]
        %v4237 = vld [vmem:[%s3797 + $0x44] sm:$0x1]
        %v4238 = vld [vmem:[%s3797 + $0x48] sm:$0xf]
        %v4239 = vld [vmem:[%s3797 + $0x4c] sm:$0xf]
        %v4240 = vld [vmem:[%s3797 + $0x50] sm:$0x1]
        %v4241 = vld [vmem:[%s3797 + $0x54] sm:$0xf]
        %v4242 = vld [vmem:[%s3797 + $0x58] sm:$0xf]
        %v4243 = vld [vmem:[%s3797 + $0x5c] sm:$0x1]
        %v4244 = vld [vmem:[%s3797 + $0x60] sm:$0xf]
        %v4245 = vld [vmem:[%s3797 + $0x64] sm:$0xf]
        %v4246 = vld [vmem:[%s3797 + $0x68] sm:$0x1]
        %v4247 = vld [vmem:[%s3797 + $0x6c] sm:$0xf]
        %v4248 = vld [vmem:[%s3797 + $0x70] sm:$0xf]
        %v4249 = vld [vmem:[%s3797 + $0x74] sm:$0x1]
        %v4250 = vld [vmem:[%s3797 + $0x78] sm:$0xf]
        %v4251 = vld [vmem:[%s3797 + $0x7c] sm:$0xf]
        %v4252 = vld [vmem:[%s3797 + $0x80] sm:$0x1]
        %v4253 = vld [vmem:[%s3797 + $0x84] sm:$0xf]
        %v4254 = vld [vmem:[%s3797 + $0x88] sm:$0xf]
        %v4255 = vld [vmem:[%s3797 + $0x8c] sm:$0x1]
        %v4256 = vld [vmem:[%s3797 + $0x90] sm:$0xf]
        %v4257 = vld [vmem:[%s3797 + $0x94] sm:$0xf]
        %v4258 = vld [vmem:[%s3797 + $0x98] sm:$0x1]
        %v4259 = vld [vmem:[%s3797 + $0x9c] sm:$0xf]
        %v4260 = vld [vmem:[%s3797 + $0xa0] sm:$0xf]
        %v4261 = vld [vmem:[%s3797 + $0xa4] sm:$0x1]
        %v4262 = vld [vmem:[%s3797 + $0xa8] sm:$0xf]
        %v4263 = vld [vmem:[%s3797 + $0xac] sm:$0xf]
        %v4264 = vld [vmem:[%s3797 + $0xb0] sm:$0x1]
        %v4265 = vld [vmem:[%s3797 + $0xb4] sm:$0xf]
        %v4266 = vld [vmem:[%s3797 + $0xb8] sm:$0xf]
        %v4267 = vld [vmem:[%s3797 + $0xbc] sm:$0x1]
        %v4269 = vshrl.u32 %v4220, 16
        %v4271 = vrot.slane %v4269, 4
        %v4272 = vshll.u32 %v4220, 16
        %v4274 = vrot.slane %v4272, 5
        %v4275 = vor.u32 %v4271, %v4274
        %v4276 = vrot.slane %v4275, 4
        %v4278 = vshll.u32 %v4221, 16
        %v4280 = vrot.slane %v4278, 5
        %v4281 = vsel %vm700, %v4276, %v4280
        %v4282 = vshrl.u32 %v4221, 16
        %v4284 = vrot.slane %v4282, 4
        %v4285 = vor.u32 %v4284, %v4280
        %v4286 = vrot.slane %v4285, 4
        %v4288 = vshll.u32 %v4222, 16
        %v4290 = vrot.slane %v4288, 5
        %v4291 = vsel %vm700, %v4286, %v4290
        %v4293 = vshrl.u32 %v4223, 16
        %v4295 = vrot.slane %v4293, 4
        %v4296 = vshll.u32 %v4223, 16
        %v4298 = vrot.slane %v4296, 5
        %v4299 = vor.u32 %v4295, %v4298
        %v4300 = vrot.slane %v4299, 4
        %v4302 = vshll.u32 %v4224, 16
        %v4304 = vrot.slane %v4302, 5
        %v4305 = vsel %vm700, %v4300, %v4304
        %v4306 = vshrl.u32 %v4224, 16
        %v4308 = vrot.slane %v4306, 4
        %v4309 = vor.u32 %v4308, %v4304
        %v4310 = vrot.slane %v4309, 4
        %v4312 = vshll.u32 %v4225, 16
        %v4314 = vrot.slane %v4312, 5
        %v4315 = vsel %vm700, %v4310, %v4314
        %v4317 = vshrl.u32 %v4226, 16
        %v4319 = vrot.slane %v4317, 4
        %v4320 = vshll.u32 %v4226, 16
        %v4322 = vrot.slane %v4320, 5
        %v4323 = vor.u32 %v4319, %v4322
        %v4324 = vrot.slane %v4323, 4
        %v4326 = vshll.u32 %v4227, 16
        %v4328 = vrot.slane %v4326, 5
        %v4329 = vsel %vm700, %v4324, %v4328
        %v4330 = vshrl.u32 %v4227, 16
        %v4332 = vrot.slane %v4330, 4
        %v4333 = vor.u32 %v4332, %v4328
        %v4334 = vrot.slane %v4333, 4
        %v4336 = vshll.u32 %v4228, 16
        %v4338 = vrot.slane %v4336, 5
        %v4339 = vsel %vm700, %v4334, %v4338
        %v4341 = vshrl.u32 %v4229, 16
        %v4343 = vrot.slane %v4341, 4
        %v4344 = vshll.u32 %v4229, 16
        %v4346 = vrot.slane %v4344, 5
        %v4347 = vor.u32 %v4343, %v4346
        %v4348 = vrot.slane %v4347, 4
        %v4350 = vshll.u32 %v4230, 16
        %v4352 = vrot.slane %v4350, 5
        %v4353 = vsel %vm700, %v4348, %v4352
        %v4354 = vshrl.u32 %v4230, 16
        %v4356 = vrot.slane %v4354, 4
        %v4357 = vor.u32 %v4356, %v4352
        %v4358 = vrot.slane %v4357, 4
        %v4360 = vshll.u32 %v4231, 16
        %v4362 = vrot.slane %v4360, 5
        %v4363 = vsel %vm700, %v4358, %v4362
        %v4365 = vshrl.u32 %v4232, 16
        %v4367 = vrot.slane %v4365, 4
        %v4368 = vshll.u32 %v4232, 16
        %v4370 = vrot.slane %v4368, 5
        %v4371 = vor.u32 %v4367, %v4370
        %v4372 = vrot.slane %v4371, 4
        %v4374 = vshll.u32 %v4233, 16
        %v4376 = vrot.slane %v4374, 5
        %v4377 = vsel %vm700, %v4372, %v4376
        %v4378 = vshrl.u32 %v4233, 16
        %v4380 = vrot.slane %v4378, 4
        %v4381 = vor.u32 %v4380, %v4376
        %v4382 = vrot.slane %v4381, 4
        %v4384 = vshll.u32 %v4234, 16
        %v4386 = vrot.slane %v4384, 5
        %v4387 = vsel %vm700, %v4382, %v4386
        %v4389 = vshrl.u32 %v4235, 16
        %v4391 = vrot.slane %v4389, 4
        %v4392 = vshll.u32 %v4235, 16
        %v4394 = vrot.slane %v4392, 5
        %v4395 = vor.u32 %v4391, %v4394
        %v4396 = vrot.slane %v4395, 4
        %v4398 = vshll.u32 %v4236, 16
        %v4400 = vrot.slane %v4398, 5
        %v4401 = vsel %vm700, %v4396, %v4400
        %v4402 = vshrl.u32 %v4236, 16
        %v4404 = vrot.slane %v4402, 4
        %v4405 = vor.u32 %v4404, %v4400
        %v4406 = vrot.slane %v4405, 4
        %v4408 = vshll.u32 %v4237, 16
        %v4410 = vrot.slane %v4408, 5
        %v4411 = vsel %vm700, %v4406, %v4410
        %v4413 = vshrl.u32 %v4238, 16
        %v4415 = vrot.slane %v4413, 4
        %v4416 = vshll.u32 %v4238, 16
        %v4418 = vrot.slane %v4416, 5
        %v4419 = vor.u32 %v4415, %v4418
        %v4420 = vrot.slane %v4419, 4
        %v4422 = vshll.u32 %v4239, 16
        %v4424 = vrot.slane %v4422, 5
        %v4425 = vsel %vm700, %v4420, %v4424
        %v4426 = vshrl.u32 %v4239, 16
        %v4428 = vrot.slane %v4426, 4
        %v4429 = vor.u32 %v4428, %v4424
        %v4430 = vrot.slane %v4429, 4
        %v4432 = vshll.u32 %v4240, 16
        %v4434 = vrot.slane %v4432, 5
        %v4435 = vsel %vm700, %v4430, %v4434
        %v4437 = vshrl.u32 %v4241, 16
        %v4439 = vrot.slane %v4437, 4
        %v4440 = vshll.u32 %v4241, 16
        %v4442 = vrot.slane %v4440, 5
        %v4443 = vor.u32 %v4439, %v4442
        %v4444 = vrot.slane %v4443, 4
        %v4446 = vshll.u32 %v4242, 16
        %v4448 = vrot.slane %v4446, 5
        %v4449 = vsel %vm700, %v4444, %v4448
        %v4450 = vshrl.u32 %v4242, 16
        %v4452 = vrot.slane %v4450, 4
        %v4453 = vor.u32 %v4452, %v4448
        %v4454 = vrot.slane %v4453, 4
        %v4456 = vshll.u32 %v4243, 16
        %v4458 = vrot.slane %v4456, 5
        %v4459 = vsel %vm700, %v4454, %v4458
        %v4461 = vshrl.u32 %v4244, 16
        %v4463 = vrot.slane %v4461, 4
        %v4464 = vshll.u32 %v4244, 16
        %v4466 = vrot.slane %v4464, 5
        %v4467 = vor.u32 %v4463, %v4466
        %v4468 = vrot.slane %v4467, 4
        %v4470 = vshll.u32 %v4245, 16
        %v4472 = vrot.slane %v4470, 5
        %v4473 = vsel %vm700, %v4468, %v4472
        %v4474 = vshrl.u32 %v4245, 16
        %v4476 = vrot.slane %v4474, 4
        %v4477 = vor.u32 %v4476, %v4472
        %v4478 = vrot.slane %v4477, 4
        %v4480 = vshll.u32 %v4246, 16
        %v4482 = vrot.slane %v4480, 5
        %v4483 = vsel %vm700, %v4478, %v4482
        %v4485 = vshrl.u32 %v4247, 16
        %v4487 = vrot.slane %v4485, 4
        %v4488 = vshll.u32 %v4247, 16
        %v4490 = vrot.slane %v4488, 5
        %v4491 = vor.u32 %v4487, %v4490
        %v4492 = vrot.slane %v4491, 4
        %v4494 = vshll.u32 %v4248, 16
        %v4496 = vrot.slane %v4494, 5
        %v4497 = vsel %vm700, %v4492, %v4496
        %v4498 = vshrl.u32 %v4248, 16
        %v4500 = vrot.slane %v4498, 4
        %v4501 = vor.u32 %v4500, %v4496
        %v4502 = vrot.slane %v4501, 4
        %v4504 = vshll.u32 %v4249, 16
        %v4506 = vrot.slane %v4504, 5
        %v4507 = vsel %vm700, %v4502, %v4506
        %v4509 = vshrl.u32 %v4250, 16
        %v4511 = vrot.slane %v4509, 4
        %v4512 = vshll.u32 %v4250, 16
        %v4514 = vrot.slane %v4512, 5
        %v4515 = vor.u32 %v4511, %v4514
        %v4516 = vrot.slane %v4515, 4
        %v4518 = vshll.u32 %v4251, 16
        %v4520 = vrot.slane %v4518, 5
        %v4521 = vsel %vm700, %v4516, %v4520
        %v4522 = vshrl.u32 %v4251, 16
        %v4524 = vrot.slane %v4522, 4
        %v4525 = vor.u32 %v4524, %v4520
        %v4526 = vrot.slane %v4525, 4
        %v4528 = vshll.u32 %v4252, 16
        %v4530 = vrot.slane %v4528, 5
        %v4531 = vsel %vm700, %v4526, %v4530
        %v4533 = vshrl.u32 %v4253, 16
        %v4535 = vrot.slane %v4533, 4
        %v4536 = vshll.u32 %v4253, 16
        %v4538 = vrot.slane %v4536, 5
        %v4539 = vor.u32 %v4535, %v4538
        %v4540 = vrot.slane %v4539, 4
        %v4542 = vshll.u32 %v4254, 16
        %v4544 = vrot.slane %v4542, 5
        %v4545 = vsel %vm700, %v4540, %v4544
        %v4546 = vshrl.u32 %v4254, 16
        %v4548 = vrot.slane %v4546, 4
        %v4549 = vor.u32 %v4548, %v4544
        %v4550 = vrot.slane %v4549, 4
        %v4552 = vshll.u32 %v4255, 16
        %v4554 = vrot.slane %v4552, 5
        %v4555 = vsel %vm700, %v4550, %v4554
        %v4557 = vshrl.u32 %v4256, 16
        %v4559 = vrot.slane %v4557, 4
        %v4560 = vshll.u32 %v4256, 16
        %v4562 = vrot.slane %v4560, 5
        %v4563 = vor.u32 %v4559, %v4562
        %v4564 = vrot.slane %v4563, 4
        %v4566 = vshll.u32 %v4257, 16
        %v4568 = vrot.slane %v4566, 5
        %v4569 = vsel %vm700, %v4564, %v4568
        %v4570 = vshrl.u32 %v4257, 16
        %v4572 = vrot.slane %v4570, 4
        %v4573 = vor.u32 %v4572, %v4568
        %v4574 = vrot.slane %v4573, 4
        %v4576 = vshll.u32 %v4258, 16
        %v4578 = vrot.slane %v4576, 5
        %v4579 = vsel %vm700, %v4574, %v4578
        %v4581 = vshrl.u32 %v4259, 16
        %v4583 = vrot.slane %v4581, 4
        %v4584 = vshll.u32 %v4259, 16
        %v4586 = vrot.slane %v4584, 5
        %v4587 = vor.u32 %v4583, %v4586
        %v4588 = vrot.slane %v4587, 4
        %v4590 = vshll.u32 %v4260, 16
        %v4592 = vrot.slane %v4590, 5
        %v4593 = vsel %vm700, %v4588, %v4592
        %v4594 = vshrl.u32 %v4260, 16
        %v4596 = vrot.slane %v4594, 4
        %v4597 = vor.u32 %v4596, %v4592
        %v4598 = vrot.slane %v4597, 4
        %v4600 = vshll.u32 %v4261, 16
        %v4602 = vrot.slane %v4600, 5
        %v4603 = vsel %vm700, %v4598, %v4602
        %v4605 = vshrl.u32 %v4262, 16
        %v4607 = vrot.slane %v4605, 4
        %v4608 = vshll.u32 %v4262, 16
        %v4610 = vrot.slane %v4608, 5
        %v4611 = vor.u32 %v4607, %v4610
        %v4612 = vrot.slane %v4611, 4
        %v4614 = vshll.u32 %v4263, 16
        %v4616 = vrot.slane %v4614, 5
        %v4617 = vsel %vm700, %v4612, %v4616
        %v4618 = vshrl.u32 %v4263, 16
        %v4620 = vrot.slane %v4618, 4
        %v4621 = vor.u32 %v4620, %v4616
        %v4622 = vrot.slane %v4621, 4
        %v4624 = vshll.u32 %v4264, 16
        %v4626 = vrot.slane %v4624, 5
        %v4627 = vsel %vm700, %v4622, %v4626
        %v4629 = vshrl.u32 %v4265, 16
        %v4631 = vrot.slane %v4629, 4
        %v4632 = vshll.u32 %v4265, 16
        %v4634 = vrot.slane %v4632, 5
        %v4635 = vor.u32 %v4631, %v4634
        %v4636 = vrot.slane %v4635, 4
        %v4638 = vshll.u32 %v4266, 16
        %v4640 = vrot.slane %v4638, 5
        %v4641 = vsel %vm700, %v4636, %v4640
        %v4642 = vshrl.u32 %v4266, 16
        %v4644 = vrot.slane %v4642, 4
        %v4645 = vor.u32 %v4644, %v4640
        %v4646 = vrot.slane %v4645, 4
        %v4648 = vshll.u32 %v4267, 16
        %v4650 = vrot.slane %v4648, 5
        %v4651 = vsel %vm700, %v4646, %v4650
        %v4652 = vld [vmem:[#allocation2] sm:$0xff]
        %v4653 = vld [vmem:[#allocation2 + $0x8] sm:$0xff]
        %v4654 = vld [vmem:[#allocation2 + $0x10] sm:$0xff]
        %v4655 = vld [vmem:[#allocation2 + $0x18] sm:$0xff]
        %v4656 = vld [vmem:[#allocation2 + $0x20] sm:$0xff]
        %v4657 = vld [vmem:[#allocation2 + $0x28] sm:$0xff]
        %v4658 = vld [vmem:[#allocation2 + $0x30] sm:$0xff]
        %v4659 = vld [vmem:[#allocation2 + $0x38] sm:$0xff]
        %v4660 = vld [vmem:[#allocation2 + $0x40] sm:$0xff]
        %v4661 = vld [vmem:[#allocation2 + $0x48] sm:$0xff]
        %v4662 = vld [vmem:[#allocation2 + $0x50] sm:$0xff]
        %v4663 = vld [vmem:[#allocation2 + $0x58] sm:$0xff]
        %v4664 = vld [vmem:[#allocation2 + $0x60] sm:$0xff]
        %v4665 = vld [vmem:[#allocation2 + $0x68] sm:$0xff]
        %v4666 = vld [vmem:[#allocation2 + $0x70] sm:$0xff]
        %v4667 = vld [vmem:[#allocation2 + $0x78] sm:$0xff]
        %v4668 = vld [vmem:[#allocation2 + $0x80] sm:$0xff]
        %v4669 = vld [vmem:[#allocation2 + $0x88] sm:$0xff]
        %v4670 = vld [vmem:[#allocation2 + $0x90] sm:$0xff]
        %v4671 = vld [vmem:[#allocation2 + $0x98] sm:$0xff]
        %v4672 = vld [vmem:[#allocation2 + $0xa0] sm:$0xff]
        %v4673 = vld [vmem:[#allocation2 + $0xa8] sm:$0xff]
        %v4674 = vld [vmem:[#allocation2 + $0xb0] sm:$0xff]
        %v4675 = vld [vmem:[#allocation2 + $0xb8] sm:$0xff]
        %v4676 = vld [vmem:[#allocation2 + $0xc0] sm:$0xff]
        %v4677 = vld [vmem:[#allocation2 + $0xc8] sm:$0xff]
        %v4678 = vld [vmem:[#allocation2 + $0xd0] sm:$0xff]
        %v4679 = vld [vmem:[#allocation2 + $0xd8] sm:$0xff]
        %v4680 = vld [vmem:[#allocation2 + $0xe0] sm:$0xff]
        %v4681 = vld [vmem:[#allocation2 + $0xe8] sm:$0xff]
        %v4682 = vld [vmem:[#allocation2 + $0xf0] sm:$0xff]
        %v4683 = vld [vmem:[#allocation2 + $0xf8] sm:$0xff]
        %s4684 = scalar_lea.vmem %s1, 14
        %v4685 = vld [vmem:[%s4684] sm:$0x3]
        %v4686 = vunpack.c.l.b16 %v4281
        %v4687 = vunpack.c.l.b16 %v4291
        %v4688 = vunpack.c.l.b16 %v4305
        %v4689 = vunpack.c.l.b16 %v4315
        %v4690 = vunpack.c.l.b16 %v4329
        %v4691 = vunpack.c.l.b16 %v4339
        %v4692 = vunpack.c.l.b16 %v4353
        %v4693 = vunpack.c.l.b16 %v4363
        %v4694 = vunpack.c.l.b16 %v4377
        %v4695 = vunpack.c.l.b16 %v4387
        %v4696 = vunpack.c.l.b16 %v4401
        %v4697 = vunpack.c.l.b16 %v4411
        %v4698 = vunpack.c.l.b16 %v4425
        %v4699 = vunpack.c.l.b16 %v4435
        %v4700 = vunpack.c.l.b16 %v4449
        %v4701 = vunpack.c.l.b16 %v4459
        %v4702 = vunpack.c.l.b16 %v4473
        %v4703 = vunpack.c.l.b16 %v4483
        %v4704 = vunpack.c.l.b16 %v4497
        %v4705 = vunpack.c.l.b16 %v4507
        %v4706 = vunpack.c.l.b16 %v4521
        %v4707 = vunpack.c.l.b16 %v4531
        %v4708 = vunpack.c.l.b16 %v4545
        %v4709 = vunpack.c.l.b16 %v4555
        %v4710 = vunpack.c.l.b16 %v4569
        %v4711 = vunpack.c.l.b16 %v4579
        %v4712 = vunpack.c.l.b16 %v4593
        %v4713 = vunpack.c.l.b16 %v4603
        %v4714 = vunpack.c.l.b16 %v4617
        %v4715 = vunpack.c.l.b16 %v4627
        %v4716 = vunpack.c.l.b16 %v4641
        %v4717 = vunpack.c.l.b16 %v4651
        %v4718 = vpack.c.b16 %v4687, %v4686
        %v4719 = vpack.c.b16 %v4689, %v4688
        %v4720 = vpack.c.b16 %v4691, %v4690
        %v4721 = vpack.c.b16 %v4693, %v4692
        %v4722 = vpack.c.b16 %v4695, %v4694
        %v4723 = vpack.c.b16 %v4697, %v4696
        %v4724 = vpack.c.b16 %v4699, %v4698
        %v4725 = vpack.c.b16 %v4701, %v4700
        %v4726 = vpack.c.b16 %v4703, %v4702
        %v4727 = vpack.c.b16 %v4705, %v4704
        %v4728 = vpack.c.b16 %v4707, %v4706
        %v4729 = vpack.c.b16 %v4709, %v4708
        %v4730 = vpack.c.b16 %v4711, %v4710
        %v4731 = vpack.c.b16 %v4713, %v4712
        %v4732 = vpack.c.b16 %v4715, %v4714
        %v4733 = vpack.c.b16 %v4717, %v4716
        %v4735 = vsel %vm372, %v4718, 0
        %v4738 = vsel %vm372, %v4719, 0
        %v4741 = vsel %vm372, %v4720, 0
        %v4744 = vsel %vm372, %v4721, 0
        %v4747 = vsel %vm372, %v4722, 0
        %v4750 = vsel %vm372, %v4723, 0
        %v4753 = vsel %vm372, %v4724, 0
        %v4756 = vsel %vm372, %v4725, 0
        %v4759 = vsel %vm372, %v4726, 0
        %v4762 = vsel %vm372, %v4727, 0
        %v4765 = vsel %vm372, %v4728, 0
        %v4768 = vsel %vm372, %v4729, 0
        %v4771 = vsel %vm372, %v4730, 0
        %v4774 = vsel %vm372, %v4731, 0
        %v4777 = vsel %vm372, %v4732, 0
        %v4780 = vsel %vm372, %v4733, 0
        %v4783 = vsel %vm421, %v4685, 0
        %4785 = vmatprep.subr.bf16.mxu0 0
        %4786 = vmatpush1.bf16.msra.mxu0 0
        %4787 = vmatprep.subr.bf16.mxu0 0
        %4788 = vmatpush1.bf16.msra.mxu0 0
        %4789 = vmatprep.subr.bf16.mxu0 0
        %4790 = vmatpush1.bf16.msra.mxu0 0
        %4791 = vmatprep.subr.bf16.mxu0 0
        %4792 = vmatpush1.bf16.msra.mxu0 0
        %4793 = vmatprep.subr.bf16.mxu0 0
        %4794 = vmatpush1.bf16.msra.mxu0 0
        %4795 = vmatprep.subr.bf16.mxu0 0
        %4796 = vmatpush1.bf16.msra.mxu0 0
        %4797 = vmatprep.subr.bf16.mxu0 0
        %4798 = vmatpush1.bf16.msra.mxu0 0
        %4799 = vmatprep.subr.bf16.mxu0 0
        %4800 = vmatpush1.bf16.msra.mxu0 %v4783
        %4801 = vmatprep.subr.bf16.mxu0 0
        %4802 = vmatpush2.bf16.msra.mxu0 0
        %4803 = vmatprep.subr.bf16.mxu0 0
        %4804 = vmatpush2.bf16.msra.mxu0 0
        %4805 = vmatprep.subr.bf16.mxu0 0
        %4806 = vmatpush2.bf16.msra.mxu0 0
        %4807 = vmatprep.subr.bf16.mxu0 0
        %4808 = vmatpush2.bf16.msra.mxu0 0
        %4809 = vmatprep.subr.bf16.mxu0 0
        %4810 = vmatpush2.bf16.msra.mxu0 0
        %4811 = vmatprep.subr.bf16.mxu0 0
        %4812 = vmatpush2.bf16.msra.mxu0 0
        %4813 = vmatprep.subr.bf16.mxu0 0
        %4814 = vmatpush2.bf16.msra.mxu0 0
        %4815 = vmatprep.subr.bf16.mxu0 0
        %4816 = vmatpush2.bf16.msra.mxu0 0
        %4817 = vmatprep.mubr.bf16.mxu0 0
        %4818 = vmatmul.mubr.bf16.gmra.mxu0 %v4735
        %v4819 = vpop.f32.mrf.mxu0
        %v4820 = vadd.f32 0.0, %v4819
        %v4821 = vpop.f32.mrf.mxu0
        %v4822 = vpop.f32.mrf.mxu0
        %v4823 = vadd.f32 0.0, %v4822
        %v4824 = vpop.f32.mrf.mxu0
        %4825 = vmatprep.mubr.bf16.mxu0 0
        %4826 = vmatmul.mubr.bf16.gmra.mxu0 %v4738
        %v4827 = vpop.f32.mrf.mxu0
        %v4828 = vadd.f32 0.0, %v4827
        %v4829 = vpop.f32.mrf.mxu0
        %v4830 = vpop.f32.mrf.mxu0
        %v4831 = vadd.f32 0.0, %v4830
        %v4832 = vpop.f32.mrf.mxu0
        %4833 = vmatprep.mubr.bf16.mxu0 0
        %4834 = vmatmul.mubr.bf16.gmra.mxu0 %v4741
        %v4835 = vpop.f32.mrf.mxu0
        %v4836 = vadd.f32 0.0, %v4835
        %v4837 = vpop.f32.mrf.mxu0
        %v4838 = vpop.f32.mrf.mxu0
        %v4839 = vadd.f32 0.0, %v4838
        %v4840 = vpop.f32.mrf.mxu0
        %4841 = vmatprep.mubr.bf16.mxu0 0
        %4842 = vmatmul.mubr.bf16.gmra.mxu0 %v4744
        %v4843 = vpop.f32.mrf.mxu0
        %v4844 = vadd.f32 0.0, %v4843
        %v4845 = vpop.f32.mrf.mxu0
        %v4846 = vpop.f32.mrf.mxu0
        %v4847 = vadd.f32 0.0, %v4846
        %v4848 = vpop.f32.mrf.mxu0
        %4849 = vmatprep.mubr.bf16.mxu0 0
        %4850 = vmatmul.mubr.bf16.gmra.mxu0 %v4747
        %v4851 = vpop.f32.mrf.mxu0
        %v4852 = vadd.f32 0.0, %v4851
        %v4853 = vpop.f32.mrf.mxu0
        %v4854 = vpop.f32.mrf.mxu0
        %v4855 = vadd.f32 0.0, %v4854
        %v4856 = vpop.f32.mrf.mxu0
        %4857 = vmatprep.mubr.bf16.mxu0 0
        %4858 = vmatmul.mubr.bf16.gmra.mxu0 %v4750
        %v4859 = vpop.f32.mrf.mxu0
        %v4860 = vadd.f32 0.0, %v4859
        %v4861 = vpop.f32.mrf.mxu0
        %v4862 = vpop.f32.mrf.mxu0
        %v4863 = vadd.f32 0.0, %v4862
        %v4864 = vpop.f32.mrf.mxu0
        %4865 = vmatprep.mubr.bf16.mxu0 0
        %4866 = vmatmul.mubr.bf16.gmra.mxu0 %v4753
        %v4867 = vpop.f32.mrf.mxu0
        %v4868 = vadd.f32 0.0, %v4867
        %v4869 = vpop.f32.mrf.mxu0
        %v4870 = vpop.f32.mrf.mxu0
        %v4871 = vadd.f32 0.0, %v4870
        %v4872 = vpop.f32.mrf.mxu0
        %4873 = vmatprep.mubr.bf16.mxu0 0
        %4874 = vmatmul.mubr.bf16.gmra.mxu0 %v4756
        %v4875 = vpop.f32.mrf.mxu0
        %v4876 = vadd.f32 0.0, %v4875
        %v4877 = vpop.f32.mrf.mxu0
        %v4878 = vpop.f32.mrf.mxu0
        %v4879 = vadd.f32 0.0, %v4878
        %v4880 = vpop.f32.mrf.mxu0
        %4881 = vmatprep.mubr.bf16.mxu0 0
        %4882 = vmatmul.mubr.bf16.gmra.mxu0 %v4759
        %v4883 = vpop.f32.mrf.mxu0
        %v4884 = vadd.f32 0.0, %v4883
        %v4885 = vpop.f32.mrf.mxu0
        %v4886 = vpop.f32.mrf.mxu0
        %v4887 = vadd.f32 0.0, %v4886
        %v4888 = vpop.f32.mrf.mxu0
        %4889 = vmatprep.mubr.bf16.mxu0 0
        %4890 = vmatmul.mubr.bf16.gmra.mxu0 %v4762
        %v4891 = vpop.f32.mrf.mxu0
        %v4892 = vadd.f32 0.0, %v4891
        %v4893 = vpop.f32.mrf.mxu0
        %v4894 = vpop.f32.mrf.mxu0
        %v4895 = vadd.f32 0.0, %v4894
        %v4896 = vpop.f32.mrf.mxu0
        %4897 = vmatprep.mubr.bf16.mxu0 0
        %4898 = vmatmul.mubr.bf16.gmra.mxu0 %v4765
        %v4899 = vpop.f32.mrf.mxu0
        %v4900 = vadd.f32 0.0, %v4899
        %v4901 = vpop.f32.mrf.mxu0
        %v4902 = vpop.f32.mrf.mxu0
        %v4903 = vadd.f32 0.0, %v4902
        %v4904 = vpop.f32.mrf.mxu0
        %4905 = vmatprep.mubr.bf16.mxu0 0
        %4906 = vmatmul.mubr.bf16.gmra.mxu0 %v4768
        %v4907 = vpop.f32.mrf.mxu0
        %v4908 = vadd.f32 0.0, %v4907
        %v4909 = vpop.f32.mrf.mxu0
        %v4910 = vpop.f32.mrf.mxu0
        %v4911 = vadd.f32 0.0, %v4910
        %v4912 = vpop.f32.mrf.mxu0
        %4913 = vmatprep.mubr.bf16.mxu0 0
        %4914 = vmatmul.mubr.bf16.gmra.mxu0 %v4771
        %v4915 = vpop.f32.mrf.mxu0
        %v4916 = vadd.f32 0.0, %v4915
        %v4917 = vpop.f32.mrf.mxu0
        %v4918 = vpop.f32.mrf.mxu0
        %v4919 = vadd.f32 0.0, %v4918
        %v4920 = vpop.f32.mrf.mxu0
        %4921 = vmatprep.mubr.bf16.mxu0 0
        %4922 = vmatmul.mubr.bf16.gmra.mxu0 %v4774
        %v4923 = vpop.f32.mrf.mxu0
        %v4924 = vadd.f32 0.0, %v4923
        %v4925 = vpop.f32.mrf.mxu0
        %v4926 = vpop.f32.mrf.mxu0
        %v4927 = vadd.f32 0.0, %v4926
        %v4928 = vpop.f32.mrf.mxu0
        %4929 = vmatprep.mubr.bf16.mxu0 0
        %4930 = vmatmul.mubr.bf16.gmra.mxu0 %v4777
        %v4931 = vpop.f32.mrf.mxu0
        %v4932 = vadd.f32 0.0, %v4931
        %v4933 = vpop.f32.mrf.mxu0
        %v4934 = vpop.f32.mrf.mxu0
        %v4935 = vadd.f32 0.0, %v4934
        %v4936 = vpop.f32.mrf.mxu0
        %4937 = vmatprep.mubr.bf16.mxu0 0
        %4938 = vmatmul.mubr.bf16.gmra.mxu0 %v4780
        %v4939 = vpop.f32.mrf.mxu0
        %v4940 = vadd.f32 0.0, %v4939
        %v4941 = vpop.f32.mrf.mxu0
        %v4942 = vpop.f32.mrf.mxu0
        %v4943 = vadd.f32 0.0, %v4942
        %v4944 = vpop.f32.mrf.mxu0
        %4945 = vdwg.mxu0
        %v4946 = vadd.f32 %v4652, %v4820
        %v4947 = vadd.f32 %v4653, %v4823
        %v4948 = vadd.f32 %v4654, %v4828
        %v4949 = vadd.f32 %v4655, %v4831
        %v4950 = vadd.f32 %v4656, %v4836
        %v4951 = vadd.f32 %v4657, %v4839
        %v4952 = vadd.f32 %v4658, %v4844
        %v4953 = vadd.f32 %v4659, %v4847
        %v4954 = vadd.f32 %v4660, %v4852
        %v4955 = vadd.f32 %v4661, %v4855
        %v4956 = vadd.f32 %v4662, %v4860
        %v4957 = vadd.f32 %v4663, %v4863
        %v4958 = vadd.f32 %v4664, %v4868
        %v4959 = vadd.f32 %v4665, %v4871
        %v4960 = vadd.f32 %v4666, %v4876
        %v4961 = vadd.f32 %v4667, %v4879
        %v4962 = vadd.f32 %v4668, %v4884
        %v4963 = vadd.f32 %v4669, %v4887
        %v4964 = vadd.f32 %v4670, %v4892
        %v4965 = vadd.f32 %v4671, %v4895
        %v4966 = vadd.f32 %v4672, %v4900
        %v4967 = vadd.f32 %v4673, %v4903
        %v4968 = vadd.f32 %v4674, %v4908
        %v4969 = vadd.f32 %v4675, %v4911
        %v4970 = vadd.f32 %v4676, %v4916
        %v4971 = vadd.f32 %v4677, %v4919
        %v4972 = vadd.f32 %v4678, %v4924
        %v4973 = vadd.f32 %v4679, %v4927
        %v4974 = vadd.f32 %v4680, %v4932
        %v4975 = vadd.f32 %v4681, %v4935
        %v4976 = vadd.f32 %v4682, %v4940
        %v4977 = vadd.f32 %v4683, %v4943
        %4978 = vst [vmem:[#allocation2] sm:$0xff] %v4946
        %4979 = vst [vmem:[#allocation2 + $0x8] sm:$0xff] %v4947
        %4980 = vst [vmem:[#allocation2 + $0x10] sm:$0xff] %v4948
        %4981 = vst [vmem:[#allocation2 + $0x18] sm:$0xff] %v4949
        %4982 = vst [vmem:[#allocation2 + $0x20] sm:$0xff] %v4950
        %4983 = vst [vmem:[#allocation2 + $0x28] sm:$0xff] %v4951
        %4984 = vst [vmem:[#allocation2 + $0x30] sm:$0xff] %v4952
        %4985 = vst [vmem:[#allocation2 + $0x38] sm:$0xff] %v4953
        %4986 = vst [vmem:[#allocation2 + $0x40] sm:$0xff] %v4954
        %4987 = vst [vmem:[#allocation2 + $0x48] sm:$0xff] %v4955
        %4988 = vst [vmem:[#allocation2 + $0x50] sm:$0xff] %v4956
        %4989 = vst [vmem:[#allocation2 + $0x58] sm:$0xff] %v4957
        %4990 = vst [vmem:[#allocation2 + $0x60] sm:$0xff] %v4958
        %4991 = vst [vmem:[#allocation2 + $0x68] sm:$0xff] %v4959
        %4992 = vst [vmem:[#allocation2 + $0x70] sm:$0xff] %v4960
        %4993 = vst [vmem:[#allocation2 + $0x78] sm:$0xff] %v4961
        %4994 = vst [vmem:[#allocation2 + $0x80] sm:$0xff] %v4962
        %4995 = vst [vmem:[#allocation2 + $0x88] sm:$0xff] %v4963
        %4996 = vst [vmem:[#allocation2 + $0x90] sm:$0xff] %v4964
        %4997 = vst [vmem:[#allocation2 + $0x98] sm:$0xff] %v4965
        %4998 = vst [vmem:[#allocation2 + $0xa0] sm:$0xff] %v4966
        %4999 = vst [vmem:[#allocation2 + $0xa8] sm:$0xff] %v4967
        %5000 = vst [vmem:[#allocation2 + $0xb0] sm:$0xff] %v4968
        %5001 = vst [vmem:[#allocation2 + $0xb8] sm:$0xff] %v4969
        %5002 = vst [vmem:[#allocation2 + $0xc0] sm:$0xff] %v4970
        %5003 = vst [vmem:[#allocation2 + $0xc8] sm:$0xff] %v4971
        %5004 = vst [vmem:[#allocation2 + $0xd0] sm:$0xff] %v4972
        %5005 = vst [vmem:[#allocation2 + $0xd8] sm:$0xff] %v4973
        %5006 = vst [vmem:[#allocation2 + $0xe0] sm:$0xff] %v4974
        %5007 = vst [vmem:[#allocation2 + $0xe8] sm:$0xff] %v4975
        %5008 = vst [vmem:[#allocation2 + $0xf0] sm:$0xff] %v4976
        %5009 = vst [vmem:[#allocation2 + $0xf8] sm:$0xff] %v4977
        %v5010 = vld [vmem:[%s3797] sm:$0xe]
        %v5011 = vld [vmem:[%s3797 + $0x4] sm:$0xf]
        %v5012 = vld [vmem:[%s3797 + $0x8] sm:$0x1]
        %v5013 = vld [vmem:[%s3797 + $0xc] sm:$0xe]
        %v5014 = vld [vmem:[%s3797 + $0x10] sm:$0xf]
        %v5015 = vld [vmem:[%s3797 + $0x14] sm:$0x1]
        %v5016 = vld [vmem:[%s3797 + $0x18] sm:$0xe]
        %v5017 = vld [vmem:[%s3797 + $0x1c] sm:$0xf]
        %v5018 = vld [vmem:[%s3797 + $0x20] sm:$0x1]
        %v5019 = vld [vmem:[%s3797 + $0x24] sm:$0xe]
        %v5020 = vld [vmem:[%s3797 + $0x28] sm:$0xf]
        %v5021 = vld [vmem:[%s3797 + $0x2c] sm:$0x1]
        %v5022 = vld [vmem:[%s3797 + $0x30] sm:$0xe]
        %v5023 = vld [vmem:[%s3797 + $0x34] sm:$0xf]
        %v5024 = vld [vmem:[%s3797 + $0x38] sm:$0x1]
        %v5025 = vld [vmem:[%s3797 + $0x3c] sm:$0xe]
        %v5026 = vld [vmem:[%s3797 + $0x40] sm:$0xf]
        %v5027 = vld [vmem:[%s3797 + $0x44] sm:$0x1]
        %v5028 = vld [vmem:[%s3797 + $0x48] sm:$0xe]
        %v5029 = vld [vmem:[%s3797 + $0x4c] sm:$0xf]
        %v5030 = vld [vmem:[%s3797 + $0x50] sm:$0x1]
        %v5031 = vld [vmem:[%s3797 + $0x54] sm:$0xe]
        %v5032 = vld [vmem:[%s3797 + $0x58] sm:$0xf]
        %v5033 = vld [vmem:[%s3797 + $0x5c] sm:$0x1]
        %v5034 = vld [vmem:[%s3797 + $0x60] sm:$0xe]
        %v5035 = vld [vmem:[%s3797 + $0x64] sm:$0xf]
        %v5036 = vld [vmem:[%s3797 + $0x68] sm:$0x1]
        %v5037 = vld [vmem:[%s3797 + $0x6c] sm:$0xe]
        %v5038 = vld [vmem:[%s3797 + $0x70] sm:$0xf]
        %v5039 = vld [vmem:[%s3797 + $0x74] sm:$0x1]
        %v5040 = vld [vmem:[%s3797 + $0x78] sm:$0xe]
        %v5041 = vld [vmem:[%s3797 + $0x7c] sm:$0xf]
        %v5042 = vld [vmem:[%s3797 + $0x80] sm:$0x1]
        %v5043 = vld [vmem:[%s3797 + $0x84] sm:$0xe]
        %v5044 = vld [vmem:[%s3797 + $0x88] sm:$0xf]
        %v5045 = vld [vmem:[%s3797 + $0x8c] sm:$0x1]
        %v5046 = vld [vmem:[%s3797 + $0x90] sm:$0xe]
        %v5047 = vld [vmem:[%s3797 + $0x94] sm:$0xf]
        %v5048 = vld [vmem:[%s3797 + $0x98] sm:$0x1]
        %v5049 = vld [vmem:[%s3797 + $0x9c] sm:$0xe]
        %v5050 = vld [vmem:[%s3797 + $0xa0] sm:$0xf]
        %v5051 = vld [vmem:[%s3797 + $0xa4] sm:$0x1]
        %v5052 = vld [vmem:[%s3797 + $0xa8] sm:$0xe]
        %v5053 = vld [vmem:[%s3797 + $0xac] sm:$0xf]
        %v5054 = vld [vmem:[%s3797 + $0xb0] sm:$0x1]
        %v5055 = vld [vmem:[%s3797 + $0xb4] sm:$0xe]
        %v5056 = vld [vmem:[%s3797 + $0xb8] sm:$0xf]
        %v5057 = vld [vmem:[%s3797 + $0xbc] sm:$0x1]
        %v5106 = vrot.slane %v5010, 5
        %v5107 = vrot.slane %v5106, 4
        %v5108 = vrot.slane %v5011, 5
        %v5109 = vsel %vm1541, %v5107, %v5108
        %v5110 = vrot.slane %v5108, 4
        %v5111 = vrot.slane %v5012, 5
        %v5112 = vsel %vm1541, %v5110, %v5111
        %v5113 = vrot.slane %v5013, 5
        %v5114 = vrot.slane %v5113, 4
        %v5115 = vrot.slane %v5014, 5
        %v5116 = vsel %vm1541, %v5114, %v5115
        %v5117 = vrot.slane %v5115, 4
        %v5118 = vrot.slane %v5015, 5
        %v5119 = vsel %vm1541, %v5117, %v5118
        %v5120 = vrot.slane %v5016, 5
        %v5121 = vrot.slane %v5120, 4
        %v5122 = vrot.slane %v5017, 5
        %v5123 = vsel %vm1541, %v5121, %v5122
        %v5124 = vrot.slane %v5122, 4
        %v5125 = vrot.slane %v5018, 5
        %v5126 = vsel %vm1541, %v5124, %v5125
        %v5127 = vrot.slane %v5019, 5
        %v5128 = vrot.slane %v5127, 4
        %v5129 = vrot.slane %v5020, 5
        %v5130 = vsel %vm1541, %v5128, %v5129
        %v5131 = vrot.slane %v5129, 4
        %v5132 = vrot.slane %v5021, 5
        %v5133 = vsel %vm1541, %v5131, %v5132
        %v5134 = vrot.slane %v5022, 5
        %v5135 = vrot.slane %v5134, 4
        %v5136 = vrot.slane %v5023, 5
        %v5137 = vsel %vm1541, %v5135, %v5136
        %v5138 = vrot.slane %v5136, 4
        %v5139 = vrot.slane %v5024, 5
        %v5140 = vsel %vm1541, %v5138, %v5139
        %v5141 = vrot.slane %v5025, 5
        %v5142 = vrot.slane %v5141, 4
        %v5143 = vrot.slane %v5026, 5
        %v5144 = vsel %vm1541, %v5142, %v5143
        %v5145 = vrot.slane %v5143, 4
        %v5146 = vrot.slane %v5027, 5
        %v5147 = vsel %vm1541, %v5145, %v5146
        %v5148 = vrot.slane %v5028, 5
        %v5149 = vrot.slane %v5148, 4
        %v5150 = vrot.slane %v5029, 5
        %v5151 = vsel %vm1541, %v5149, %v5150
        %v5152 = vrot.slane %v5150, 4
        %v5153 = vrot.slane %v5030, 5
        %v5154 = vsel %vm1541, %v5152, %v5153
        %v5155 = vrot.slane %v5031, 5
        %v5156 = vrot.slane %v5155, 4
        %v5157 = vrot.slane %v5032, 5
        %v5158 = vsel %vm1541, %v5156, %v5157
        %v5159 = vrot.slane %v5157, 4
        %v5160 = vrot.slane %v5033, 5
        %v5161 = vsel %vm1541, %v5159, %v5160
        %v5162 = vrot.slane %v5034, 5
        %v5163 = vrot.slane %v5162, 4
        %v5164 = vrot.slane %v5035, 5
        %v5165 = vsel %vm1541, %v5163, %v5164
        %v5166 = vrot.slane %v5164, 4
        %v5167 = vrot.slane %v5036, 5
        %v5168 = vsel %vm1541, %v5166, %v5167
        %v5169 = vrot.slane %v5037, 5
        %v5170 = vrot.slane %v5169, 4
        %v5171 = vrot.slane %v5038, 5
        %v5172 = vsel %vm1541, %v5170, %v5171
        %v5173 = vrot.slane %v5171, 4
        %v5174 = vrot.slane %v5039, 5
        %v5175 = vsel %vm1541, %v5173, %v5174
        %v5176 = vrot.slane %v5040, 5
        %v5177 = vrot.slane %v5176, 4
        %v5178 = vrot.slane %v5041, 5
        %v5179 = vsel %vm1541, %v5177, %v5178
        %v5180 = vrot.slane %v5178, 4
        %v5181 = vrot.slane %v5042, 5
        %v5182 = vsel %vm1541, %v5180, %v5181
        %v5183 = vrot.slane %v5043, 5
        %v5184 = vrot.slane %v5183, 4
        %v5185 = vrot.slane %v5044, 5
        %v5186 = vsel %vm1541, %v5184, %v5185
        %v5187 = vrot.slane %v5185, 4
        %v5188 = vrot.slane %v5045, 5
        %v5189 = vsel %vm1541, %v5187, %v5188
        %v5190 = vrot.slane %v5046, 5
        %v5191 = vrot.slane %v5190, 4
        %v5192 = vrot.slane %v5047, 5
        %v5193 = vsel %vm1541, %v5191, %v5192
        %v5194 = vrot.slane %v5192, 4
        %v5195 = vrot.slane %v5048, 5
        %v5196 = vsel %vm1541, %v5194, %v5195
        %v5197 = vrot.slane %v5049, 5
        %v5198 = vrot.slane %v5197, 4
        %v5199 = vrot.slane %v5050, 5
        %v5200 = vsel %vm1541, %v5198, %v5199
        %v5201 = vrot.slane %v5199, 4
        %v5202 = vrot.slane %v5051, 5
        %v5203 = vsel %vm1541, %v5201, %v5202
        %v5204 = vrot.slane %v5052, 5
        %v5205 = vrot.slane %v5204, 4
        %v5206 = vrot.slane %v5053, 5
        %v5207 = vsel %vm1541, %v5205, %v5206
        %v5208 = vrot.slane %v5206, 4
        %v5209 = vrot.slane %v5054, 5
        %v5210 = vsel %vm1541, %v5208, %v5209
        %v5211 = vrot.slane %v5055, 5
        %v5212 = vrot.slane %v5211, 4
        %v5213 = vrot.slane %v5056, 5
        %v5214 = vsel %vm1541, %v5212, %v5213
        %v5215 = vrot.slane %v5213, 4
        %v5216 = vrot.slane %v5057, 5
        %v5217 = vsel %vm1541, %v5215, %v5216
        %v5218 = vld [vmem:[#allocation2] sm:$0xff]
        %v5219 = vld [vmem:[#allocation2 + $0x8] sm:$0xff]
        %v5220 = vld [vmem:[#allocation2 + $0x10] sm:$0xff]
        %v5221 = vld [vmem:[#allocation2 + $0x18] sm:$0xff]
        %v5222 = vld [vmem:[#allocation2 + $0x20] sm:$0xff]
        %v5223 = vld [vmem:[#allocation2 + $0x28] sm:$0xff]
        %v5224 = vld [vmem:[#allocation2 + $0x30] sm:$0xff]
        %v5225 = vld [vmem:[#allocation2 + $0x38] sm:$0xff]
        %v5226 = vld [vmem:[#allocation2 + $0x40] sm:$0xff]
        %v5227 = vld [vmem:[#allocation2 + $0x48] sm:$0xff]
        %v5228 = vld [vmem:[#allocation2 + $0x50] sm:$0xff]
        %v5229 = vld [vmem:[#allocation2 + $0x58] sm:$0xff]
        %v5230 = vld [vmem:[#allocation2 + $0x60] sm:$0xff]
        %v5231 = vld [vmem:[#allocation2 + $0x68] sm:$0xff]
        %v5232 = vld [vmem:[#allocation2 + $0x70] sm:$0xff]
        %v5233 = vld [vmem:[#allocation2 + $0x78] sm:$0xff]
        %v5234 = vld [vmem:[#allocation2 + $0x80] sm:$0xff]
        %v5235 = vld [vmem:[#allocation2 + $0x88] sm:$0xff]
        %v5236 = vld [vmem:[#allocation2 + $0x90] sm:$0xff]
        %v5237 = vld [vmem:[#allocation2 + $0x98] sm:$0xff]
        %v5238 = vld [vmem:[#allocation2 + $0xa0] sm:$0xff]
        %v5239 = vld [vmem:[#allocation2 + $0xa8] sm:$0xff]
        %v5240 = vld [vmem:[#allocation2 + $0xb0] sm:$0xff]
        %v5241 = vld [vmem:[#allocation2 + $0xb8] sm:$0xff]
        %v5242 = vld [vmem:[#allocation2 + $0xc0] sm:$0xff]
        %v5243 = vld [vmem:[#allocation2 + $0xc8] sm:$0xff]
        %v5244 = vld [vmem:[#allocation2 + $0xd0] sm:$0xff]
        %v5245 = vld [vmem:[#allocation2 + $0xd8] sm:$0xff]
        %v5246 = vld [vmem:[#allocation2 + $0xe0] sm:$0xff]
        %v5247 = vld [vmem:[#allocation2 + $0xe8] sm:$0xff]
        %v5248 = vld [vmem:[#allocation2 + $0xf0] sm:$0xff]
        %v5249 = vld [vmem:[#allocation2 + $0xf8] sm:$0xff]
        %s5250 = scalar_lea.vmem %s1, 16
        %v5251 = vld [vmem:[%s5250] sm:$0x3]
        %v5252 = vunpack.c.l.b16 %v5109
        %v5253 = vunpack.c.l.b16 %v5112
        %v5254 = vunpack.c.l.b16 %v5116
        %v5255 = vunpack.c.l.b16 %v5119
        %v5256 = vunpack.c.l.b16 %v5123
        %v5257 = vunpack.c.l.b16 %v5126
        %v5258 = vunpack.c.l.b16 %v5130
        %v5259 = vunpack.c.l.b16 %v5133
        %v5260 = vunpack.c.l.b16 %v5137
        %v5261 = vunpack.c.l.b16 %v5140
        %v5262 = vunpack.c.l.b16 %v5144
        %v5263 = vunpack.c.l.b16 %v5147
        %v5264 = vunpack.c.l.b16 %v5151
        %v5265 = vunpack.c.l.b16 %v5154
        %v5266 = vunpack.c.l.b16 %v5158
        %v5267 = vunpack.c.l.b16 %v5161
        %v5268 = vunpack.c.l.b16 %v5165
        %v5269 = vunpack.c.l.b16 %v5168
        %v5270 = vunpack.c.l.b16 %v5172
        %v5271 = vunpack.c.l.b16 %v5175
        %v5272 = vunpack.c.l.b16 %v5179
        %v5273 = vunpack.c.l.b16 %v5182
        %v5274 = vunpack.c.l.b16 %v5186
        %v5275 = vunpack.c.l.b16 %v5189
        %v5276 = vunpack.c.l.b16 %v5193
        %v5277 = vunpack.c.l.b16 %v5196
        %v5278 = vunpack.c.l.b16 %v5200
        %v5279 = vunpack.c.l.b16 %v5203
        %v5280 = vunpack.c.l.b16 %v5207
        %v5281 = vunpack.c.l.b16 %v5210
        %v5282 = vunpack.c.l.b16 %v5214
        %v5283 = vunpack.c.l.b16 %v5217
        %v5284 = vpack.c.b16 %v5253, %v5252
        %v5285 = vpack.c.b16 %v5255, %v5254
        %v5286 = vpack.c.b16 %v5257, %v5256
        %v5287 = vpack.c.b16 %v5259, %v5258
        %v5288 = vpack.c.b16 %v5261, %v5260
        %v5289 = vpack.c.b16 %v5263, %v5262
        %v5290 = vpack.c.b16 %v5265, %v5264
        %v5291 = vpack.c.b16 %v5267, %v5266
        %v5292 = vpack.c.b16 %v5269, %v5268
        %v5293 = vpack.c.b16 %v5271, %v5270
        %v5294 = vpack.c.b16 %v5273, %v5272
        %v5295 = vpack.c.b16 %v5275, %v5274
        %v5296 = vpack.c.b16 %v5277, %v5276
        %v5297 = vpack.c.b16 %v5279, %v5278
        %v5298 = vpack.c.b16 %v5281, %v5280
        %v5299 = vpack.c.b16 %v5283, %v5282
        %v5301 = vsel %vm372, %v5284, 0
        %v5304 = vsel %vm372, %v5285, 0
        %v5307 = vsel %vm372, %v5286, 0
        %v5310 = vsel %vm372, %v5287, 0
        %v5313 = vsel %vm372, %v5288, 0
        %v5316 = vsel %vm372, %v5289, 0
        %v5319 = vsel %vm372, %v5290, 0
        %v5322 = vsel %vm372, %v5291, 0
        %v5325 = vsel %vm372, %v5292, 0
        %v5328 = vsel %vm372, %v5293, 0
        %v5331 = vsel %vm372, %v5294, 0
        %v5334 = vsel %vm372, %v5295, 0
        %v5337 = vsel %vm372, %v5296, 0
        %v5340 = vsel %vm372, %v5297, 0
        %v5343 = vsel %vm372, %v5298, 0
        %v5346 = vsel %vm372, %v5299, 0
        %v5349 = vsel %vm421, %v5251, 0
        %5351 = vmatprep.subr.bf16.mxu0 0
        %5352 = vmatpush1.bf16.msra.mxu0 0
        %5353 = vmatprep.subr.bf16.mxu0 0
        %5354 = vmatpush1.bf16.msra.mxu0 0
        %5355 = vmatprep.subr.bf16.mxu0 0
        %5356 = vmatpush1.bf16.msra.mxu0 0
        %5357 = vmatprep.subr.bf16.mxu0 0
        %5358 = vmatpush1.bf16.msra.mxu0 0
        %5359 = vmatprep.subr.bf16.mxu0 0
        %5360 = vmatpush1.bf16.msra.mxu0 0
        %5361 = vmatprep.subr.bf16.mxu0 0
        %5362 = vmatpush1.bf16.msra.mxu0 0
        %5363 = vmatprep.subr.bf16.mxu0 0
        %5364 = vmatpush1.bf16.msra.mxu0 0
        %5365 = vmatprep.subr.bf16.mxu0 0
        %5366 = vmatpush1.bf16.msra.mxu0 %v5349
        %5367 = vmatprep.subr.bf16.mxu0 0
        %5368 = vmatpush2.bf16.msra.mxu0 0
        %5369 = vmatprep.subr.bf16.mxu0 0
        %5370 = vmatpush2.bf16.msra.mxu0 0
        %5371 = vmatprep.subr.bf16.mxu0 0
        %5372 = vmatpush2.bf16.msra.mxu0 0
        %5373 = vmatprep.subr.bf16.mxu0 0
        %5374 = vmatpush2.bf16.msra.mxu0 0
        %5375 = vmatprep.subr.bf16.mxu0 0
        %5376 = vmatpush2.bf16.msra.mxu0 0
        %5377 = vmatprep.subr.bf16.mxu0 0
        %5378 = vmatpush2.bf16.msra.mxu0 0
        %5379 = vmatprep.subr.bf16.mxu0 0
        %5380 = vmatpush2.bf16.msra.mxu0 0
        %5381 = vmatprep.subr.bf16.mxu0 0
        %5382 = vmatpush2.bf16.msra.mxu0 0
        %5383 = vmatprep.mubr.bf16.mxu0 0
        %5384 = vmatmul.mubr.bf16.gmra.mxu0 %v5301
        %v5385 = vpop.f32.mrf.mxu0
        %v5386 = vadd.f32 0.0, %v5385
        %v5387 = vpop.f32.mrf.mxu0
        %v5388 = vpop.f32.mrf.mxu0
        %v5389 = vadd.f32 0.0, %v5388
        %v5390 = vpop.f32.mrf.mxu0
        %5391 = vmatprep.mubr.bf16.mxu0 0
        %5392 = vmatmul.mubr.bf16.gmra.mxu0 %v5304
        %v5393 = vpop.f32.mrf.mxu0
        %v5394 = vadd.f32 0.0, %v5393
        %v5395 = vpop.f32.mrf.mxu0
        %v5396 = vpop.f32.mrf.mxu0
        %v5397 = vadd.f32 0.0, %v5396
        %v5398 = vpop.f32.mrf.mxu0
        %5399 = vmatprep.mubr.bf16.mxu0 0
        %5400 = vmatmul.mubr.bf16.gmra.mxu0 %v5307
        %v5401 = vpop.f32.mrf.mxu0
        %v5402 = vadd.f32 0.0, %v5401
        %v5403 = vpop.f32.mrf.mxu0
        %v5404 = vpop.f32.mrf.mxu0
        %v5405 = vadd.f32 0.0, %v5404
        %v5406 = vpop.f32.mrf.mxu0
        %5407 = vmatprep.mubr.bf16.mxu0 0
        %5408 = vmatmul.mubr.bf16.gmra.mxu0 %v5310
        %v5409 = vpop.f32.mrf.mxu0
        %v5410 = vadd.f32 0.0, %v5409
        %v5411 = vpop.f32.mrf.mxu0
        %v5412 = vpop.f32.mrf.mxu0
        %v5413 = vadd.f32 0.0, %v5412
        %v5414 = vpop.f32.mrf.mxu0
        %5415 = vmatprep.mubr.bf16.mxu0 0
        %5416 = vmatmul.mubr.bf16.gmra.mxu0 %v5313
        %v5417 = vpop.f32.mrf.mxu0
        %v5418 = vadd.f32 0.0, %v5417
        %v5419 = vpop.f32.mrf.mxu0
        %v5420 = vpop.f32.mrf.mxu0
        %v5421 = vadd.f32 0.0, %v5420
        %v5422 = vpop.f32.mrf.mxu0
        %5423 = vmatprep.mubr.bf16.mxu0 0
        %5424 = vmatmul.mubr.bf16.gmra.mxu0 %v5316
        %v5425 = vpop.f32.mrf.mxu0
        %v5426 = vadd.f32 0.0, %v5425
        %v5427 = vpop.f32.mrf.mxu0
        %v5428 = vpop.f32.mrf.mxu0
        %v5429 = vadd.f32 0.0, %v5428
        %v5430 = vpop.f32.mrf.mxu0
        %5431 = vmatprep.mubr.bf16.mxu0 0
        %5432 = vmatmul.mubr.bf16.gmra.mxu0 %v5319
        %v5433 = vpop.f32.mrf.mxu0
        %v5434 = vadd.f32 0.0, %v5433
        %v5435 = vpop.f32.mrf.mxu0
        %v5436 = vpop.f32.mrf.mxu0
        %v5437 = vadd.f32 0.0, %v5436
        %v5438 = vpop.f32.mrf.mxu0
        %5439 = vmatprep.mubr.bf16.mxu0 0
        %5440 = vmatmul.mubr.bf16.gmra.mxu0 %v5322
        %v5441 = vpop.f32.mrf.mxu0
        %v5442 = vadd.f32 0.0, %v5441
        %v5443 = vpop.f32.mrf.mxu0
        %v5444 = vpop.f32.mrf.mxu0
        %v5445 = vadd.f32 0.0, %v5444
        %v5446 = vpop.f32.mrf.mxu0
        %5447 = vmatprep.mubr.bf16.mxu0 0
        %5448 = vmatmul.mubr.bf16.gmra.mxu0 %v5325
        %v5449 = vpop.f32.mrf.mxu0
        %v5450 = vadd.f32 0.0, %v5449
        %v5451 = vpop.f32.mrf.mxu0
        %v5452 = vpop.f32.mrf.mxu0
        %v5453 = vadd.f32 0.0, %v5452
        %v5454 = vpop.f32.mrf.mxu0
        %5455 = vmatprep.mubr.bf16.mxu0 0
        %5456 = vmatmul.mubr.bf16.gmra.mxu0 %v5328
        %v5457 = vpop.f32.mrf.mxu0
        %v5458 = vadd.f32 0.0, %v5457
        %v5459 = vpop.f32.mrf.mxu0
        %v5460 = vpop.f32.mrf.mxu0
        %v5461 = vadd.f32 0.0, %v5460
        %v5462 = vpop.f32.mrf.mxu0
        %5463 = vmatprep.mubr.bf16.mxu0 0
        %5464 = vmatmul.mubr.bf16.gmra.mxu0 %v5331
        %v5465 = vpop.f32.mrf.mxu0
        %v5466 = vadd.f32 0.0, %v5465
        %v5467 = vpop.f32.mrf.mxu0
        %v5468 = vpop.f32.mrf.mxu0
        %v5469 = vadd.f32 0.0, %v5468
        %v5470 = vpop.f32.mrf.mxu0
        %5471 = vmatprep.mubr.bf16.mxu0 0
        %5472 = vmatmul.mubr.bf16.gmra.mxu0 %v5334
        %v5473 = vpop.f32.mrf.mxu0
        %v5474 = vadd.f32 0.0, %v5473
        %v5475 = vpop.f32.mrf.mxu0
        %v5476 = vpop.f32.mrf.mxu0
        %v5477 = vadd.f32 0.0, %v5476
        %v5478 = vpop.f32.mrf.mxu0
        %5479 = vmatprep.mubr.bf16.mxu0 0
        %5480 = vmatmul.mubr.bf16.gmra.mxu0 %v5337
        %v5481 = vpop.f32.mrf.mxu0
        %v5482 = vadd.f32 0.0, %v5481
        %v5483 = vpop.f32.mrf.mxu0
        %v5484 = vpop.f32.mrf.mxu0
        %v5485 = vadd.f32 0.0, %v5484
        %v5486 = vpop.f32.mrf.mxu0
        %5487 = vmatprep.mubr.bf16.mxu0 0
        %5488 = vmatmul.mubr.bf16.gmra.mxu0 %v5340
        %v5489 = vpop.f32.mrf.mxu0
        %v5490 = vadd.f32 0.0, %v5489
        %v5491 = vpop.f32.mrf.mxu0
        %v5492 = vpop.f32.mrf.mxu0
        %v5493 = vadd.f32 0.0, %v5492
        %v5494 = vpop.f32.mrf.mxu0
        %5495 = vmatprep.mubr.bf16.mxu0 0
        %5496 = vmatmul.mubr.bf16.gmra.mxu0 %v5343
        %v5497 = vpop.f32.mrf.mxu0
        %v5498 = vadd.f32 0.0, %v5497
        %v5499 = vpop.f32.mrf.mxu0
        %v5500 = vpop.f32.mrf.mxu0
        %v5501 = vadd.f32 0.0, %v5500
        %v5502 = vpop.f32.mrf.mxu0
        %5503 = vmatprep.mubr.bf16.mxu0 0
        %5504 = vmatmul.mubr.bf16.gmra.mxu0 %v5346
        %v5505 = vpop.f32.mrf.mxu0
        %v5506 = vadd.f32 0.0, %v5505
        %v5507 = vpop.f32.mrf.mxu0
        %v5508 = vpop.f32.mrf.mxu0
        %v5509 = vadd.f32 0.0, %v5508
        %v5510 = vpop.f32.mrf.mxu0
        %5511 = vdwg.mxu0
        %v5512 = vadd.f32 %v5218, %v5386
        %v5513 = vadd.f32 %v5219, %v5389
        %v5514 = vadd.f32 %v5220, %v5394
        %v5515 = vadd.f32 %v5221, %v5397
        %v5516 = vadd.f32 %v5222, %v5402
        %v5517 = vadd.f32 %v5223, %v5405
        %v5518 = vadd.f32 %v5224, %v5410
        %v5519 = vadd.f32 %v5225, %v5413
        %v5520 = vadd.f32 %v5226, %v5418
        %v5521 = vadd.f32 %v5227, %v5421
        %v5522 = vadd.f32 %v5228, %v5426
        %v5523 = vadd.f32 %v5229, %v5429
        %v5524 = vadd.f32 %v5230, %v5434
        %v5525 = vadd.f32 %v5231, %v5437
        %v5526 = vadd.f32 %v5232, %v5442
        %v5527 = vadd.f32 %v5233, %v5445
        %v5528 = vadd.f32 %v5234, %v5450
        %v5529 = vadd.f32 %v5235, %v5453
        %v5530 = vadd.f32 %v5236, %v5458
        %v5531 = vadd.f32 %v5237, %v5461
        %v5532 = vadd.f32 %v5238, %v5466
        %v5533 = vadd.f32 %v5239, %v5469
        %v5534 = vadd.f32 %v5240, %v5474
        %v5535 = vadd.f32 %v5241, %v5477
        %v5536 = vadd.f32 %v5242, %v5482
        %v5537 = vadd.f32 %v5243, %v5485
        %v5538 = vadd.f32 %v5244, %v5490
        %v5539 = vadd.f32 %v5245, %v5493
        %v5540 = vadd.f32 %v5246, %v5498
        %v5541 = vadd.f32 %v5247, %v5501
        %v5542 = vadd.f32 %v5248, %v5506
        %v5543 = vadd.f32 %v5249, %v5509
        %5544 = vst [vmem:[#allocation2] sm:$0xff] %v5512
        %5545 = vst [vmem:[#allocation2 + $0x8] sm:$0xff] %v5513
        %5546 = vst [vmem:[#allocation2 + $0x10] sm:$0xff] %v5514
        %5547 = vst [vmem:[#allocation2 + $0x18] sm:$0xff] %v5515
        %5548 = vst [vmem:[#allocation2 + $0x20] sm:$0xff] %v5516
        %5549 = vst [vmem:[#allocation2 + $0x28] sm:$0xff] %v5517
        %5550 = vst [vmem:[#allocation2 + $0x30] sm:$0xff] %v5518
        %5551 = vst [vmem:[#allocation2 + $0x38] sm:$0xff] %v5519
        %5552 = vst [vmem:[#allocation2 + $0x40] sm:$0xff] %v5520
        %5553 = vst [vmem:[#allocation2 + $0x48] sm:$0xff] %v5521
        %5554 = vst [vmem:[#allocation2 + $0x50] sm:$0xff] %v5522
        %5555 = vst [vmem:[#allocation2 + $0x58] sm:$0xff] %v5523
        %5556 = vst [vmem:[#allocation2 + $0x60] sm:$0xff] %v5524
        %5557 = vst [vmem:[#allocation2 + $0x68] sm:$0xff] %v5525
        %5558 = vst [vmem:[#allocation2 + $0x70] sm:$0xff] %v5526
        %5559 = vst [vmem:[#allocation2 + $0x78] sm:$0xff] %v5527
        %5560 = vst [vmem:[#allocation2 + $0x80] sm:$0xff] %v5528
        %5561 = vst [vmem:[#allocation2 + $0x88] sm:$0xff] %v5529
        %5562 = vst [vmem:[#allocation2 + $0x90] sm:$0xff] %v5530
        %5563 = vst [vmem:[#allocation2 + $0x98] sm:$0xff] %v5531
        %5564 = vst [vmem:[#allocation2 + $0xa0] sm:$0xff] %v5532
        %5565 = vst [vmem:[#allocation2 + $0xa8] sm:$0xff] %v5533
        %5566 = vst [vmem:[#allocation2 + $0xb0] sm:$0xff] %v5534
        %5567 = vst [vmem:[#allocation2 + $0xb8] sm:$0xff] %v5535
        %5568 = vst [vmem:[#allocation2 + $0xc0] sm:$0xff] %v5536
        %5569 = vst [vmem:[#allocation2 + $0xc8] sm:$0xff] %v5537
        %5570 = vst [vmem:[#allocation2 + $0xd0] sm:$0xff] %v5538
        %5571 = vst [vmem:[#allocation2 + $0xd8] sm:$0xff] %v5539
        %5572 = vst [vmem:[#allocation2 + $0xe0] sm:$0xff] %v5540
        %5573 = vst [vmem:[#allocation2 + $0xe8] sm:$0xff] %v5541
        %5574 = vst [vmem:[#allocation2 + $0xf0] sm:$0xff] %v5542
        %5575 = vst [vmem:[#allocation2 + $0xf8] sm:$0xff] %v5543
        %v5576 = vld [vmem:[#allocation2] sm:$0xff]
        %v5577 = vld [vmem:[#allocation2 + $0x8] sm:$0xff]
        %v5578 = vld [vmem:[#allocation2 + $0x10] sm:$0xff]
        %v5579 = vld [vmem:[#allocation2 + $0x18] sm:$0xff]
        %v5580 = vld [vmem:[#allocation2 + $0x20] sm:$0xff]
        %v5581 = vld [vmem:[#allocation2 + $0x28] sm:$0xff]
        %v5582 = vld [vmem:[#allocation2 + $0x30] sm:$0xff]
        %v5583 = vld [vmem:[#allocation2 + $0x38] sm:$0xff]
        %v5584 = vld [vmem:[#allocation2 + $0x40] sm:$0xff]
        %v5585 = vld [vmem:[#allocation2 + $0x48] sm:$0xff]
        %v5586 = vld [vmem:[#allocation2 + $0x50] sm:$0xff]
        %v5587 = vld [vmem:[#allocation2 + $0x58] sm:$0xff]
        %v5588 = vld [vmem:[#allocation2 + $0x60] sm:$0xff]
        %v5589 = vld [vmem:[#allocation2 + $0x68] sm:$0xff]
        %v5590 = vld [vmem:[#allocation2 + $0x70] sm:$0xff]
        %v5591 = vld [vmem:[#allocation2 + $0x78] sm:$0xff]
        %v5592 = vld [vmem:[#allocation2 + $0x80] sm:$0xff]
        %v5593 = vld [vmem:[#allocation2 + $0x88] sm:$0xff]
        %v5594 = vld [vmem:[#allocation2 + $0x90] sm:$0xff]
        %v5595 = vld [vmem:[#allocation2 + $0x98] sm:$0xff]
        %v5596 = vld [vmem:[#allocation2 + $0xa0] sm:$0xff]
        %v5597 = vld [vmem:[#allocation2 + $0xa8] sm:$0xff]
        %v5598 = vld [vmem:[#allocation2 + $0xb0] sm:$0xff]
        %v5599 = vld [vmem:[#allocation2 + $0xb8] sm:$0xff]
        %v5600 = vld [vmem:[#allocation2 + $0xc0] sm:$0xff]
        %v5601 = vld [vmem:[#allocation2 + $0xc8] sm:$0xff]
        %v5602 = vld [vmem:[#allocation2 + $0xd0] sm:$0xff]
        %v5603 = vld [vmem:[#allocation2 + $0xd8] sm:$0xff]
        %v5604 = vld [vmem:[#allocation2 + $0xe0] sm:$0xff]
        %v5605 = vld [vmem:[#allocation2 + $0xe8] sm:$0xff]
        %v5606 = vld [vmem:[#allocation2 + $0xf0] sm:$0xff]
        %v5607 = vld [vmem:[#allocation2 + $0xf8] sm:$0xff]
        %v5608 = vld [vmem:[%s2] sm:$0x1]
        %v5610 = vlaneseq
        %v5611 = vshrl.u32 %v5610, 7
        %v5612 = vsub.s32 0, %v5611
        %v5613 = vrot.slane %v5608, %v5612
        %v5615 = vadd.f32 %v5576, %v5613
        %v5616 = vadd.f32 %v5577, %v5613
        %v5617 = vadd.f32 %v5578, %v5613
        %v5618 = vadd.f32 %v5579, %v5613
        %v5619 = vadd.f32 %v5580, %v5613
        %v5620 = vadd.f32 %v5581, %v5613
        %v5621 = vadd.f32 %v5582, %v5613
        %v5622 = vadd.f32 %v5583, %v5613
        %v5623 = vadd.f32 %v5584, %v5613
        %v5624 = vadd.f32 %v5585, %v5613
        %v5625 = vadd.f32 %v5586, %v5613
        %v5626 = vadd.f32 %v5587, %v5613
        %v5627 = vadd.f32 %v5588, %v5613
        %v5628 = vadd.f32 %v5589, %v5613
        %v5629 = vadd.f32 %v5590, %v5613
        %v5630 = vadd.f32 %v5591, %v5613
        %v5631 = vadd.f32 %v5592, %v5613
        %v5632 = vadd.f32 %v5593, %v5613
        %v5633 = vadd.f32 %v5594, %v5613
        %v5634 = vadd.f32 %v5595, %v5613
        %v5635 = vadd.f32 %v5596, %v5613
        %v5636 = vadd.f32 %v5597, %v5613
        %v5637 = vadd.f32 %v5598, %v5613
        %v5638 = vadd.f32 %v5599, %v5613
        %v5639 = vadd.f32 %v5600, %v5613
        %v5640 = vadd.f32 %v5601, %v5613
        %v5641 = vadd.f32 %v5602, %v5613
        %v5642 = vadd.f32 %v5603, %v5613
        %v5643 = vadd.f32 %v5604, %v5613
        %v5644 = vadd.f32 %v5605, %v5613
        %v5645 = vadd.f32 %v5606, %v5613
        %v5646 = vadd.f32 %v5607, %v5613
        %vm5647 = vcmp.gt.f32.partialorder %v5615, 0.0
        %vm5648 = vcmp.gt.f32.partialorder %v5616, 0.0
        %vm5649 = vcmp.gt.f32.partialorder %v5617, 0.0
        %vm5650 = vcmp.gt.f32.partialorder %v5618, 0.0
        %vm5651 = vcmp.gt.f32.partialorder %v5619, 0.0
        %vm5652 = vcmp.gt.f32.partialorder %v5620, 0.0
        %vm5653 = vcmp.gt.f32.partialorder %v5621, 0.0
        %vm5654 = vcmp.gt.f32.partialorder %v5622, 0.0
        %vm5655 = vcmp.gt.f32.partialorder %v5623, 0.0
        %vm5656 = vcmp.gt.f32.partialorder %v5624, 0.0
        %vm5657 = vcmp.gt.f32.partialorder %v5625, 0.0
        %vm5658 = vcmp.gt.f32.partialorder %v5626, 0.0
        %vm5659 = vcmp.gt.f32.partialorder %v5627, 0.0
        %vm5660 = vcmp.gt.f32.partialorder %v5628, 0.0
        %vm5661 = vcmp.gt.f32.partialorder %v5629, 0.0
        %vm5662 = vcmp.gt.f32.partialorder %v5630, 0.0
        %vm5663 = vcmp.gt.f32.partialorder %v5631, 0.0
        %vm5664 = vcmp.gt.f32.partialorder %v5632, 0.0
        %vm5665 = vcmp.gt.f32.partialorder %v5633, 0.0
        %vm5666 = vcmp.gt.f32.partialorder %v5634, 0.0
        %vm5667 = vcmp.gt.f32.partialorder %v5635, 0.0
        %vm5668 = vcmp.gt.f32.partialorder %v5636, 0.0
        %vm5669 = vcmp.gt.f32.partialorder %v5637, 0.0
        %vm5670 = vcmp.gt.f32.partialorder %v5638, 0.0
        %vm5671 = vcmp.gt.f32.partialorder %v5639, 0.0
        %vm5672 = vcmp.gt.f32.partialorder %v5640, 0.0
        %vm5673 = vcmp.gt.f32.partialorder %v5641, 0.0
        %vm5674 = vcmp.gt.f32.partialorder %v5642, 0.0
        %vm5675 = vcmp.gt.f32.partialorder %v5643, 0.0
        %vm5676 = vcmp.gt.f32.partialorder %v5644, 0.0
        %vm5677 = vcmp.gt.f32.partialorder %v5645, 0.0
        %vm5678 = vcmp.gt.f32.partialorder %v5646, 0.0
        %v5679 = vmul.f32 %v5615, 0.1
        %v5680 = vmul.f32 %v5616, 0.1
        %v5681 = vmul.f32 %v5617, 0.1
        %v5682 = vmul.f32 %v5618, 0.1
        %v5683 = vmul.f32 %v5619, 0.1
        %v5684 = vmul.f32 %v5620, 0.1
        %v5685 = vmul.f32 %v5621, 0.1
        %v5686 = vmul.f32 %v5622, 0.1
        %v5687 = vmul.f32 %v5623, 0.1
        %v5688 = vmul.f32 %v5624, 0.1
        %v5689 = vmul.f32 %v5625, 0.1
        %v5690 = vmul.f32 %v5626, 0.1
        %v5691 = vmul.f32 %v5627, 0.1
        %v5692 = vmul.f32 %v5628, 0.1
        %v5693 = vmul.f32 %v5629, 0.1
        %v5694 = vmul.f32 %v5630, 0.1
        %v5695 = vmul.f32 %v5631, 0.1
        %v5696 = vmul.f32 %v5632, 0.1
        %v5697 = vmul.f32 %v5633, 0.1
        %v5698 = vmul.f32 %v5634, 0.1
        %v5699 = vmul.f32 %v5635, 0.1
        %v5700 = vmul.f32 %v5636, 0.1
        %v5701 = vmul.f32 %v5637, 0.1
        %v5702 = vmul.f32 %v5638, 0.1
        %v5703 = vmul.f32 %v5639, 0.1
        %v5704 = vmul.f32 %v5640, 0.1
        %v5705 = vmul.f32 %v5641, 0.1
        %v5706 = vmul.f32 %v5642, 0.1
        %v5707 = vmul.f32 %v5643, 0.1
        %v5708 = vmul.f32 %v5644, 0.1
        %v5709 = vmul.f32 %v5645, 0.1
        %v5710 = vmul.f32 %v5646, 0.1
        %v5711 = vsel %vm5647, %v5615, %v5679
        %v5712 = vsel %vm5648, %v5616, %v5680
        %v5713 = vsel %vm5649, %v5617, %v5681
        %v5714 = vsel %vm5650, %v5618, %v5682
        %v5715 = vsel %vm5651, %v5619, %v5683
        %v5716 = vsel %vm5652, %v5620, %v5684
        %v5717 = vsel %vm5653, %v5621, %v5685
        %v5718 = vsel %vm5654, %v5622, %v5686
        %v5719 = vsel %vm5655, %v5623, %v5687
        %v5720 = vsel %vm5656, %v5624, %v5688
        %v5721 = vsel %vm5657, %v5625, %v5689
        %v5722 = vsel %vm5658, %v5626, %v5690
        %v5723 = vsel %vm5659, %v5627, %v5691
        %v5724 = vsel %vm5660, %v5628, %v5692
        %v5725 = vsel %vm5661, %v5629, %v5693
        %v5726 = vsel %vm5662, %v5630, %v5694
        %v5727 = vsel %vm5663, %v5631, %v5695
        %v5728 = vsel %vm5664, %v5632, %v5696
        %v5729 = vsel %vm5665, %v5633, %v5697
        %v5730 = vsel %vm5666, %v5634, %v5698
        %v5731 = vsel %vm5667, %v5635, %v5699
        %v5732 = vsel %vm5668, %v5636, %v5700
        %v5733 = vsel %vm5669, %v5637, %v5701
        %v5734 = vsel %vm5670, %v5638, %v5702
        %v5735 = vsel %vm5671, %v5639, %v5703
        %v5736 = vsel %vm5672, %v5640, %v5704
        %v5737 = vsel %vm5673, %v5641, %v5705
        %v5738 = vsel %vm5674, %v5642, %v5706
        %v5739 = vsel %vm5675, %v5643, %v5707
        %v5740 = vsel %vm5676, %v5644, %v5708
        %v5741 = vsel %vm5677, %v5645, %v5709
        %v5742 = vsel %vm5678, %v5646, %v5710
        %5743 = vst [vmem:[%s180] sm:$0xff] %v5711
        %5744 = vst [vmem:[%s180 + $0x8] sm:$0xff] %v5712
        %5745 = vst [vmem:[%s180 + $0x10] sm:$0xff] %v5713
        %5746 = vst [vmem:[%s180 + $0x18] sm:$0xff] %v5714
        %5747 = vst [vmem:[%s180 + $0x20] sm:$0xff] %v5715
        %5748 = vst [vmem:[%s180 + $0x28] sm:$0xff] %v5716
        %5749 = vst [vmem:[%s180 + $0x30] sm:$0xff] %v5717
        %5750 = vst [vmem:[%s180 + $0x38] sm:$0xff] %v5718
        %5751 = vst [vmem:[%s180 + $0x40] sm:$0xff] %v5719
        %5752 = vst [vmem:[%s180 + $0x48] sm:$0xff] %v5720
        %5753 = vst [vmem:[%s180 + $0x50] sm:$0xff] %v5721
        %5754 = vst [vmem:[%s180 + $0x58] sm:$0xff] %v5722
        %5755 = vst [vmem:[%s180 + $0x60] sm:$0xff] %v5723
        %5756 = vst [vmem:[%s180 + $0x68] sm:$0xff] %v5724
        %5757 = vst [vmem:[%s180 + $0x70] sm:$0xff] %v5725
        %5758 = vst [vmem:[%s180 + $0x78] sm:$0xff] %v5726
        %5759 = vst [vmem:[%s180 + $0x80] sm:$0xff] %v5727
        %5760 = vst [vmem:[%s180 + $0x88] sm:$0xff] %v5728
        %5761 = vst [vmem:[%s180 + $0x90] sm:$0xff] %v5729
        %5762 = vst [vmem:[%s180 + $0x98] sm:$0xff] %v5730
        %5763 = vst [vmem:[%s180 + $0xa0] sm:$0xff] %v5731
        %5764 = vst [vmem:[%s180 + $0xa8] sm:$0xff] %v5732
        %5765 = vst [vmem:[%s180 + $0xb0] sm:$0xff] %v5733
        %5766 = vst [vmem:[%s180 + $0xb8] sm:$0xff] %v5734
        %5767 = vst [vmem:[%s180 + $0xc0] sm:$0xff] %v5735
        %5768 = vst [vmem:[%s180 + $0xc8] sm:$0xff] %v5736
        %5769 = vst [vmem:[%s180 + $0xd0] sm:$0xff] %v5737
        %5770 = vst [vmem:[%s180 + $0xd8] sm:$0xff] %v5738
        %5771 = vst [vmem:[%s180 + $0xe0] sm:$0xff] %v5739
        %5772 = vst [vmem:[%s180 + $0xe8] sm:$0xff] %v5740
        %5773 = vst [vmem:[%s180 + $0xf0] sm:$0xff] %v5741
        %5774 = vst [vmem:[%s180 + $0xf8] sm:$0xff] %v5742
        %s5775 = sand.u32 %s107, 1
        %s5776 = scalar_lea.sflag [#allocation4], %s5775
        %s5777 = sand.u32 %s107, 1
        %s5778 = smul.addr %s5777, 256
        %s5779 = scalar_lea.vmem [#allocation3], %s5778
        // Predicated region
        $region33: #{tpu_custom_call.1} parent=31 // pred_check
          %p5780 = pneg %p117
        $region34: #{tpu_custom_call.1} parent=31 // pred_check_branch
          %5782 = sbr.rel (%p5780) target = $region36
        $region35: #{tpu_custom_call.1} parent=31 // pred_region
          %s5783 = sadd.s32 %s21, %s22
          %s5784 = smul.u32 32, %s5783
          %s5786 = ssub.s32 4096, 4096
          %5787 = vsyncadd %s5776, %s5786
          %s5788 = smul.addr %s5784, 128
          %s5789 = scalar_lea.hbm %s3, %s5788
          %s5790 = sshll.u32 %s5779, 4
          %s5791 = int_to_ptr.vmem [resolvable:$true] %s5790
          %5796 = dma.vmem_to_hbm [thread:$0]  %s5791, 4096, %s5789, %s5776, 128, 128, 8
        $region36: #{tpu_custom_call.1} parent=31 // pred_fallthru
          _
      $region32: #{tpu_custom_call.1} parent=5 // pred_fallthru
        _
      %p5797 = scmp.le.s32.totalorder 2, %s12
      // Predicated region
      $region37: #{tpu_custom_call.1} parent=5 // pred_check
        %p5798 = pneg %p5797
      $region38: #{tpu_custom_call.1} parent=5 // pred_check_branch
        %5800 = sbr.rel (%p5798) target = $region40
      $region39: #{tpu_custom_call.1} parent=5 // pred_region
        %s5801 = ssub.s32 %s12, 2
        // Predicated region
        $region41: #{tpu_custom_call.1} parent=39 // pred_check
          %p5802 = pneg %p123
        $region42: #{tpu_custom_call.1} parent=39 // pred_check_branch
          %5804 = sbr.rel (%p5802) target = $region44
        $region43: #{tpu_custom_call.1} parent=39 // pred_region
          %s5805 = sand.u32 %s108, 1
          %s5806 = scalar_lea.sflag [#allocation4], %s5805
          %s5807 = sand.u32 %s108, 1
          %s5808 = smul.addr %s5807, 256
          %s5809 = scalar_lea.vmem [#allocation3], %s5808
          %5810 = dma.done %s5806, 4096
        $region44: #{tpu_custom_call.1} parent=39 // pred_fallthru
          _
      $region40: #{tpu_custom_call.1} parent=5 // pred_fallthru
        _
    $region6: #{tpu_custom_call.1} parent=1 // loop_footer
      %s16 = sadd.s32 1, %s12
    $region7: #{tpu_custom_call.1} parent=1 // loop_footer_branch
      %11 = sbr.rel target = $region3
    $region8: #{tpu_custom_call.1} parent=1 // loop_exit
      _
    %5811 = vsyncpa [#allocation4], 1
    %s5812 = scalar_lea.sflag [#allocation4], 1
    %5813 = vsyncpa %s5812, 1

</llo_original>
